<compile_context>
chip_gen: v7x
topology: tpu7x:2x2x1
jax: 0.10.0
libtpu: 0.0.40
codegen_flags: <defaults>
</compile_context>

<pallas_src>
import functools

import jax
import jax.numpy as jnp
from jax.experimental import pallas as pl
from jax.experimental.pallas import tpu as pltpu


D_IN, H1, H2, H3, D_OUT = 429, 1024, 512, 128, 39
D_OUT_PAD = 128   # 39 -> 128: lane-dense output / w4 columns (zero-padded, exact)


def _round_up(x, m):
    return ((x + m - 1) // m) * m


def _choose_tile(b, block_m=None):
    """Pick (tm, n_chunks) for the 1-D batch grid.

    tm never exceeds the batch for b >= 8; large batches use tiles of up to
    1024 rows but keep >= 2 grid steps (v7x megacore).  n_chunks=2 splits the
    tile inside the kernel into independent sub-tiles for MXU/EUP overlap.
    """
    if block_m is not None:
        tm = max(16, _round_up(block_m, 16))
    elif b <= 256:
        tm = max(8, (b // 16) * 16)            # round down to 16 (min 8)
    else:
        tm = min(1024, _round_up(pl.cdiv(b, 2), 256))
    n_chunks = 2 if (tm >= 128 and tm % 32 == 0) else 1
    return tm, n_chunks


def _vmem_limit_bytes(tm):
    # Resident weights (bf16, single-buffered) + biases (f32).
    w = 2 * (D_IN * H1 + H1 * H2 + H2 * H3 + H3 * D_OUT_PAD)
    w += 4 * (H1 + H2 + H3 + D_OUT_PAD)
    # Double-buffered x / out tiles (f32; x lane-padded 429 -> 512 in layout).
    io = 2 * tm * _round_up(D_IN, 128) * 4 + 2 * tm * D_OUT_PAD * 4
    # Per-layer activation scratch (f32 accumulator + bf16 copy) + x bf16 cast.
    act = tm * (H1 + H2 + H3) * 6 + tm * _round_up(D_IN, 128) * 2
    est = w + io + act
    # 8 MiB Mosaic internal-scratch headroom; clamp well inside v7x's 64 MiB.
    return int(min(max(est + (8 << 20), 16 << 20), 32 << 20))


def _classifier_kernel(x_ref,
                       w1_ref, b1_ref,
                       w2_ref, b2_ref,
                       w3_ref, b3_ref,
                       w4_ref, b4_ref,
                       out_ref, *, n_chunks):
    # x_ref: (tm, 429) f32; weights bf16 (VMEM-resident); biases f32 (1, N);
    # out_ref: (tm, 128) f32.  Static unroll over independent row sub-tiles.
    tm = x_ref.shape[0]
    cm = tm // n_chunks
    for c in range(n_chunks):
        rows = pl.ds(c * cm, cm)
        x = x_ref[rows, :].astype(jnp.bfloat16)

        h = jnp.dot(x, w1_ref[...], preferred_element_type=jnp.float32) + b1_ref[...]
        h = jax.nn.sigmoid(h).astype(jnp.bfloat16)            # (cm, 1024)

        h = jnp.dot(h, w2_ref[...], preferred_element_type=jnp.float32) + b2_ref[...]
        h = jax.nn.sigmoid(h).astype(jnp.bfloat16)            # (cm, 512)

        h = jnp.dot(h, w3_ref[...], preferred_element_type=jnp.float32) + b3_ref[...]
        h = jax.nn.sigmoid(h).astype(jnp.bfloat16)            # (cm, 128)

        o = jnp.dot(h, w4_ref[...], preferred_element_type=jnp.float32) + b4_ref[...]
        out_ref[rows, :] = o.astype(out_ref.dtype)            # (cm, 128)


def prepare_params(params):
    """One-time preprocessing: cast weights to bf16, pad final layer 39 -> 128.

    Weights are (in_features, out_features) (transposed vs torch.nn.Linear),
    biases are (1, out_features) f32.  Zero-padding is numerically exact.
    """
    bf16 = jnp.bfloat16
    w1 = params["w1"].astype(bf16)                              # (429, 1024)
    w2 = params["w2"].astype(bf16)                              # (1024, 512)
    w3 = params["w3"].astype(bf16)                              # (512, 128)
    w4 = jnp.zeros((H3, D_OUT_PAD), bf16).at[:, :D_OUT].set(params["w4"].astype(bf16))
    b1 = params["b1"].astype(jnp.float32)
    b2 = params["b2"].astype(jnp.float32)
    b3 = params["b3"].astype(jnp.float32)
    b4 = jnp.zeros((1, D_OUT_PAD), jnp.float32).at[:, :D_OUT].set(
        params["b4"].astype(jnp.float32))
    return (w1, b1, w2, b2, w3, b3, w4, b4)


@functools.partial(jax.jit, static_argnames=("block_m",))
def classifier_forward(x, prepared, block_m=None):
    """x: (B, 429) f32. prepared: output of prepare_params. Returns (B, 39) f32."""
    B = x.shape[0]
    w1, b1, w2, b2, w3, b3, w4, b4 = prepared
    tm, n_chunks = _choose_tile(B, block_m)

    # Whole array in VMEM, single buffer (no pointless double-buffering of
    # the resident weights/biases; index is constant across the grid).
    resident = pl.BlockSpec(memory_space=pltpu.MemorySpace.VMEM)

    out_pad = pl.pallas_call(
        functools.partial(_classifier_kernel, n_chunks=n_chunks),
        out_shape=jax.ShapeDtypeStruct((B, D_OUT_PAD), jnp.float32),
        grid=(pl.cdiv(B, tm),),
        in_specs=[pl.BlockSpec((tm, D_IN), lambda i: (i, 0)),  # full feature dim
                  resident, resident,
                  resident, resident,
                  resident, resident,
                  resident, resident],
        out_specs=pl.BlockSpec((tm, D_OUT_PAD), lambda i: (i, 0)),
        compiler_params=pltpu.CompilerParams(
            dimension_semantics=("parallel",),
            vmem_limit_bytes=_vmem_limit_bytes(tm)),
    )(x, w1, b1, w2, b2, w3, b3, w4, b4)

    return out_pad[:, :D_OUT]


def init_params(key):
    """Deterministic synthetic parameters with PyTorch Linear-like scaling (f32)."""
    def linear(k, fan_in, fan_out):
        kw, kb = jax.random.split(k)
        bound = 1.0 / jnp.sqrt(fan_in)
        w = jax.random.uniform(kw, (fan_in, fan_out), jnp.float32, -bound, bound)
        b = jax.random.uniform(kb, (1, fan_out), jnp.float32, -bound, bound)
        return w, b

    k1, k2, k3, k4 = jax.random.split(key, 4)
    w1, b1 = linear(k1, D_IN, H1)
    w2, b2 = linear(k2, H1, H2)
    w3, b3 = linear(k3, H2, H3)
    w4, b4 = linear(k4, H3, D_OUT)
    return dict(w1=w1, b1=b1, w2=w2, b2=b2, w3=w3, b3=b3, w4=w4, b4=b4)


def reference_forward(x, p):
    h = jax.nn.sigmoid(x @ p["w1"] + p["b1"])
    h = jax.nn.sigmoid(h @ p["w2"] + p["b2"])
    h = jax.nn.sigmoid(h @ p["w3"] + p["b3"])
    return h @ p["w4"] + p["b4"]


if __name__ == "__main__":
    key = jax.random.PRNGKey(0)
    kx, kp = jax.random.split(key)

    params = init_params(kp)
    prepared = prepare_params(params)

    # Case 1: tiny batch, single exact tile (B=8 -> tm=8, grid=(1,), 1 chunk).
    B1 = 8
    x1 = jax.random.normal(kx, (B1, D_IN), jnp.float32)
    o1 = jax.block_until_ready(classifier_forward(x1, prepared))
    r1 = reference_forward(x1, params)
    assert o1.shape == (B1, D_OUT), o1.shape
    err1 = float(jnp.max(jnp.abs(o1 - r1)))
    assert err1 < 3e-2, f"mismatch vs reference (B=8): max abs err {err1}"

    # Case 2: multi-tile + in-kernel sub-tile split + ragged last tile
    # (B=200, block_m=128 -> grid=(2,), n_chunks=2, last tile has 72 valid rows).
    B2 = 200
    x2 = jax.random.normal(jax.random.PRNGKey(1), (B2, D_IN), jnp.float32)
    o2 = jax.block_until_ready(classifier_forward(x2, prepared, block_m=128))
    r2 = reference_forward(x2, params)
    assert o2.shape == (B2, D_OUT), o2.shape
    err2 = float(jnp.max(jnp.abs(o2 - r2)))
    assert err2 < 3e-2, f"mismatch vs reference (B=200): max abs err {err2}"

    # Case 3: default large-batch tiling path (B=300 -> tm=256, grid=(2,), 2 chunks).
    B3 = 300
    x3 = jax.random.normal(jax.random.PRNGKey(2), (B3, D_IN), jnp.float32)
    o3 = jax.block_until_ready(classifier_forward(x3, prepared))
    r3 = reference_forward(x3, params)
    assert o3.shape == (B3, D_OUT), o3.shape
    err3 = float(jnp.max(jnp.abs(o3 - r3)))
    assert err3 < 3e-2, f"mismatch vs reference (B=300): max abs err {err3}"

    print("KERNEL_OK")
</pallas_src>

<mosaic_0001>
module attributes {stable_mosaic.version = 11 : i64} {
  func.func @_classifier_kernel(%arg0: i32, %arg1: memref<8x429xf32, #tpu.memory_space<vmem>>, %arg2: memref<429x1024xbf16, #tpu.memory_space<vmem>>, %arg3: memref<1x1024xf32, #tpu.memory_space<vmem>>, %arg4: memref<1024x512xbf16, #tpu.memory_space<vmem>>, %arg5: memref<1x512xf32, #tpu.memory_space<vmem>>, %arg6: memref<512x128xbf16, #tpu.memory_space<vmem>>, %arg7: memref<1x128xf32, #tpu.memory_space<vmem>>, %arg8: memref<128x128xbf16, #tpu.memory_space<vmem>>, %arg9: memref<1x128xf32, #tpu.memory_space<vmem>>, %arg10: memref<8x128xf32, #tpu.memory_space<vmem>>) attributes {dimension_semantics = [#tpu.dimension_semantics<parallel>], iteration_bounds = array<i64: 1>, scalar_prefetch = 0 : i64, scratch_operands = 0 : i64, tpu.core_type = #tpu.core_type<tc>, window_params = [{transform_indices = @transform_0, window_bounds = array<i64: 8, 429>}, {pipeline_mode = #tpu.pipeline_mode<synchronous>, transform_indices = @transform_1, window_bounds = array<i64: 429, 1024>}, {pipeline_mode = #tpu.pipeline_mode<synchronous>, transform_indices = @transform_2, window_bounds = array<i64: 1, 1024>}, {pipeline_mode = #tpu.pipeline_mode<synchronous>, transform_indices = @transform_3, window_bounds = array<i64: 1024, 512>}, {pipeline_mode = #tpu.pipeline_mode<synchronous>, transform_indices = @transform_4, window_bounds = array<i64: 1, 512>}, {pipeline_mode = #tpu.pipeline_mode<synchronous>, transform_indices = @transform_5, window_bounds = array<i64: 512, 128>}, {pipeline_mode = #tpu.pipeline_mode<synchronous>, transform_indices = @transform_6, window_bounds = array<i64: 1, 128>}, {pipeline_mode = #tpu.pipeline_mode<synchronous>, transform_indices = @transform_7, window_bounds = array<i64: 128, 128>}, {pipeline_mode = #tpu.pipeline_mode<synchronous>, transform_indices = @transform_8, window_bounds = array<i64: 1, 128>}, {transform_indices = @transform_9, window_bounds = array<i64: 8, 128>}]} {
    %c0 = arith.constant 0 : index
    %c0_0 = arith.constant 0 : index
    %0 = vector.load %arg1[%c0, %c0_0] : memref<8x429xf32, #tpu.memory_space<vmem>>, vector<8x429xf32>
    %1 = arith.truncf %0 : vector<8x429xf32> to vector<8x429xbf16>
    %c0_1 = arith.constant 0 : index
    %c0_2 = arith.constant 0 : index
    %2 = vector.load %arg2[%c0_1, %c0_2] : memref<429x1024xbf16, #tpu.memory_space<vmem>>, vector<429x1024xbf16>
    %cst = arith.constant dense<0.000000e+00> : vector<8x1024xf32>
    %3 = tpu.matmul %1, %2, %cst {dimension_numbers = #tpu.dot_dimension_numbers<[1], [0], [0], [1], [0, 0, 1, 1], [], []>} : vector<8x429xbf16>, vector<429x1024xbf16>, vector<8x1024xf32> -> vector<8x1024xf32>
    %c0_3 = arith.constant 0 : index
    %c0_4 = arith.constant 0 : index
    %4 = vector.load %arg3[%c0_3, %c0_4] : memref<1x1024xf32, #tpu.memory_space<vmem>>, vector<1x1024xf32>
    %5 = vector.broadcast %4 : vector<1x1024xf32> to vector<8x1024xf32>
    %6 = arith.addf %3, %5 : vector<8x1024xf32>
    %7 = arith.negf %6 : vector<8x1024xf32>
    %8 = math.exp %7 : vector<8x1024xf32>
    %cst_5 = arith.constant 1.000000e+00 : f32
    %9 = vector.broadcast %cst_5 : f32 to vector<8x1024xf32>
    %10 = arith.addf %9, %8 : vector<8x1024xf32>
    %11 = arith.divf %9, %10 : vector<8x1024xf32>
    %12 = arith.truncf %11 : vector<8x1024xf32> to vector<8x1024xbf16>
    %c0_6 = arith.constant 0 : index
    %c0_7 = arith.constant 0 : index
    %13 = vector.load %arg4[%c0_6, %c0_7] : memref<1024x512xbf16, #tpu.memory_space<vmem>>, vector<1024x512xbf16>
    %cst_8 = arith.constant dense<0.000000e+00> : vector<8x512xf32>
    %14 = tpu.matmul %12, %13, %cst_8 {dimension_numbers = #tpu.dot_dimension_numbers<[1], [0], [0], [1], [0, 0, 1, 1], [], []>} : vector<8x1024xbf16>, vector<1024x512xbf16>, vector<8x512xf32> -> vector<8x512xf32>
    %c0_9 = arith.constant 0 : index
    %c0_10 = arith.constant 0 : index
    %15 = vector.load %arg5[%c0_9, %c0_10] : memref<1x512xf32, #tpu.memory_space<vmem>>, vector<1x512xf32>
    %16 = vector.broadcast %15 : vector<1x512xf32> to vector<8x512xf32>
    %17 = arith.addf %14, %16 : vector<8x512xf32>
    %18 = arith.negf %17 : vector<8x512xf32>
    %19 = math.exp %18 : vector<8x512xf32>
    %cst_11 = arith.constant 1.000000e+00 : f32
    %20 = vector.broadcast %cst_11 : f32 to vector<8x512xf32>
    %21 = arith.addf %20, %19 : vector<8x512xf32>
    %22 = arith.divf %20, %21 : vector<8x512xf32>
    %23 = arith.truncf %22 : vector<8x512xf32> to vector<8x512xbf16>
    %c0_12 = arith.constant 0 : index
    %c0_13 = arith.constant 0 : index
    %24 = vector.load %arg6[%c0_12, %c0_13] : memref<512x128xbf16, #tpu.memory_space<vmem>>, vector<512x128xbf16>
    %cst_14 = arith.constant dense<0.000000e+00> : vector<8x128xf32>
    %25 = tpu.matmul %23, %24, %cst_14 {dimension_numbers = #tpu.dot_dimension_numbers<[1], [0], [0], [1], [0, 0, 1, 1], [], []>} : vector<8x512xbf16>, vector<512x128xbf16>, vector<8x128xf32> -> vector<8x128xf32>
    %c0_15 = arith.constant 0 : index
    %c0_16 = arith.constant 0 : index
    %26 = vector.load %arg7[%c0_15, %c0_16] : memref<1x128xf32, #tpu.memory_space<vmem>>, vector<1x128xf32>
    %27 = vector.broadcast %26 : vector<1x128xf32> to vector<8x128xf32>
    %28 = arith.addf %25, %27 : vector<8x128xf32>
    %29 = arith.negf %28 : vector<8x128xf32>
    %30 = math.exp %29 : vector<8x128xf32>
    %cst_17 = arith.constant 1.000000e+00 : f32
    %31 = vector.broadcast %cst_17 : f32 to vector<8x128xf32>
    %32 = arith.addf %31, %30 : vector<8x128xf32>
    %33 = arith.divf %31, %32 : vector<8x128xf32>
    %34 = arith.truncf %33 : vector<8x128xf32> to vector<8x128xbf16>
    %c0_18 = arith.constant 0 : index
    %c0_19 = arith.constant 0 : index
    %35 = vector.load %arg8[%c0_18, %c0_19] : memref<128x128xbf16, #tpu.memory_space<vmem>>, vector<128x128xbf16>
    %cst_20 = arith.constant dense<0.000000e+00> : vector<8x128xf32>
    %36 = tpu.matmul %34, %35, %cst_20 {dimension_numbers = #tpu.dot_dimension_numbers<[1], [0], [0], [1], [0, 0, 1, 1], [], []>} : vector<8x128xbf16>, vector<128x128xbf16>, vector<8x128xf32> -> vector<8x128xf32>
    %c0_21 = arith.constant 0 : index
    %c0_22 = arith.constant 0 : index
    %37 = vector.load %arg9[%c0_21, %c0_22] : memref<1x128xf32, #tpu.memory_space<vmem>>, vector<1x128xf32>
    %38 = vector.broadcast %37 : vector<1x128xf32> to vector<8x128xf32>
    %39 = arith.addf %36, %38 : vector<8x128xf32>
    %c0_23 = arith.constant 0 : index
    %c0_24 = arith.constant 0 : index
    %40 = vector.load %arg10[%c0_23, %c0_24] : memref<8x128xf32, #tpu.memory_space<vmem>>, vector<8x128xf32>
    tpu.vector_store %arg10[%c0_23, %c0_24], %39 {strides = array<i32>} : memref<8x128xf32, #tpu.memory_space<vmem>>, vector<8x128xf32>,
    return
  }
  func.func @transform_0(%arg0: i32) -> (i32, i32) {
    %c0_i32 = arith.constant 0 : i32
    %c0_i32_0 = arith.constant 0 : i32
    return %arg0, %c0_i32 : i32, i32
  }
  func.func @transform_1(%arg0: i32) -> (i32, i32) {
    %c0_i32 = arith.constant 0 : i32
    %c0_i32_0 = arith.constant 0 : i32
    %c0_i32_1 = arith.constant 0 : i32
    return %c0_i32, %c0_i32_0 : i32, i32
  }
  func.func @transform_2(%arg0: i32) -> (i32, i32) {
    %c0_i32 = arith.constant 0 : i32
    %c0_i32_0 = arith.constant 0 : i32
    %c0_i32_1 = arith.constant 0 : i32
    return %c0_i32, %c0_i32_0 : i32, i32
  }
  func.func @transform_3(%arg0: i32) -> (i32, i32) {
    %c0_i32 = arith.constant 0 : i32
    %c0_i32_0 = arith.constant 0 : i32
    %c0_i32_1 = arith.constant 0 : i32
    return %c0_i32, %c0_i32_0 : i32, i32
  }
  func.func @transform_4(%arg0: i32) -> (i32, i32) {
    %c0_i32 = arith.constant 0 : i32
    %c0_i32_0 = arith.constant 0 : i32
    %c0_i32_1 = arith.constant 0 : i32
    return %c0_i32, %c0_i32_0 : i32, i32
  }
  func.func @transform_5(%arg0: i32) -> (i32, i32) {
    %c0_i32 = arith.constant 0 : i32
    %c0_i32_0 = arith.constant 0 : i32
    %c0_i32_1 = arith.constant 0 : i32
    return %c0_i32, %c0_i32_0 : i32, i32
  }
  func.func @transform_6(%arg0: i32) -> (i32, i32) {
    %c0_i32 = arith.constant 0 : i32
    %c0_i32_0 = arith.constant 0 : i32
    %c0_i32_1 = arith.constant 0 : i32
    return %c0_i32, %c0_i32_0 : i32, i32
  }
  func.func @transform_7(%arg0: i32) -> (i32, i32) {
    %c0_i32 = arith.constant 0 : i32
    %c0_i32_0 = arith.constant 0 : i32
    %c0_i32_1 = arith.constant 0 : i32
    return %c0_i32, %c0_i32_0 : i32, i32
  }
  func.func @transform_8(%arg0: i32) -> (i32, i32) {
    %c0_i32 = arith.constant 0 : i32
    %c0_i32_0 = arith.constant 0 : i32
    %c0_i32_1 = arith.constant 0 : i32
    return %c0_i32, %c0_i32_0 : i32, i32
  }
  func.func @transform_9(%arg0: i32) -> (i32, i32) {
    %c0_i32 = arith.constant 0 : i32
    %c0_i32_0 = arith.constant 0 : i32
    return %arg0, %c0_i32 : i32, i32
  }
}

</mosaic_0001>

<llo_original>
// kernel: classifier_forward.1
$region0: #{classifier_forward.1}
  #allocation0 [shape = 'u32[]', space=smem, size = 0x4, offset = 0x4, fixed_abs, tag = 'smem constant byte address 0x4 - core index']
  #allocation1 [shape = 'u32[144,128]{1,0:T(1,128)}', space=vmem, size = 0x12000, scoped, tag = 'internal scratch']
  %s0 = inlined_call_operand.hbm [shape: f32[8,429], index: 0, kind: input, shape index: {}]
  %s1 = inlined_call_operand.hbm [shape: bf16[429,1024], index: 1, kind: input, shape index: {}]
  %s2 = inlined_call_operand.hbm [shape: f32[1,1024], index: 2, kind: input, shape index: {}]
  %s3 = inlined_call_operand.hbm [shape: bf16[1024,512], index: 3, kind: input, shape index: {}]
  %s4 = inlined_call_operand.vmem [shape: f32[1,512], index: 4, kind: input, shape index: {}]
  %s5 = inlined_call_operand.hbm [shape: bf16[512,128], index: 5, kind: input, shape index: {}]
  %s6 = inlined_call_operand.vmem [shape: f32[1,128], index: 6, kind: input, shape index: {}]
  %s7 = inlined_call_operand.hbm [shape: bf16[128,128], index: 7, kind: input, shape index: {}]
  %s8 = inlined_call_operand.vmem [shape: f32[1,128], index: 8, kind: input, shape index: {}]
  %s9 = inlined_call_operand.hbm [shape: f32[8,128], index: 9, kind: output, shape index: {}]
  %s10 = sld [smem:[#allocation0]]
  $region70: #{classifier_forward.1} parent=0
    _
  %s12 = ssub.s32 1, %s10
  %s13 = scalar_select 0, %s12, %s10
  $region1: #{classifier_forward.1} parent=0
    #allocation2 [shape = 'u8[16384]{0}', space=vmem, size = 0x4000, scoped, tag = 'input window, operand 0, single buffered']
    #allocation3 [shape = 's32[1]{0}', space=sflag, size = 0x4, scoped, tag = 'scoped memory for classifier_forward.1']
    #allocation4 [shape = 's32[1]{0}', space=sflag, size = 0x4, scoped, tag = 'scoped memory for classifier_forward.1']
    #allocation5 [shape = 'u8[884736]{0}', space=vmem, size = 0xd8000, scoped, tag = 'input window, operand 1, single buffered']
    #allocation6 [shape = 's32[1]{0}', space=sflag, size = 0x4, scoped, tag = 'scoped memory for classifier_forward.1']
    #allocation7 [shape = 'u8[4096]{0}', space=vmem, size = 0x1000, scoped, tag = 'input window, operand 2, single buffered']
    #allocation8 [shape = 'u8[1048576]{0}', space=vmem, size = 0x100000, scoped, tag = 'input window, operand 3, single buffered']
    #allocation9 [shape = 's32[1]{0}', space=sflag, size = 0x4, scoped, tag = 'scoped memory for classifier_forward.1']
    #allocation10 [shape = 'u8[131072]{0}', space=vmem, size = 0x20000, scoped, tag = 'input window, operand 5, single buffered']
    #allocation11 [shape = 'u8[32768]{0}', space=vmem, size = 0x8000, scoped, tag = 'input window, operand 7, single buffered']
    #allocation12 [shape = 's32[1]{0}', space=sflag, size = 0x4, scoped, tag = 'scoped memory for classifier_forward.1']
    #allocation13 [shape = 'u8[4096]{0}', space=vmem, size = 0x1000, scoped, tag = 'output window, operand 0, single buffered']
    %14 = vsyncpa [#allocation3], 0
    %15 = vsyncpa [#allocation6], 0
    %16 = vsyncpa [#allocation9], 0
    %17 = vsyncpa [#allocation12], 0
    %18 = vsyncpa [#allocation4], 0
    // Predicated region
    $region2: #{classifier_forward.1} parent=1 // pred_check
      _
    $region3: #{classifier_forward.1} parent=1 // pred_check_branch
      %20 = sbr.rel (0) target = $region5
    $region4: #{classifier_forward.1} parent=1 // pred_region
      %s22 = ssub.s32 512, 512
      %23 = vsyncadd [#allocation3], %s22
      %s25 = sshll.u32 [#allocation2], 4
      %s26 = int_to_ptr.vmem [resolvable:$true] %s25
      %28 = dma.hbm_to_vmem [thread:$0]  %s0, 512, %s26, [#allocation3]
    $region5: #{classifier_forward.1} parent=1 // pred_fallthru
      _
    // Predicated region
    $region6: #{classifier_forward.1} parent=1 // pred_check
      _
    $region7: #{classifier_forward.1} parent=1 // pred_check_branch
      %30 = sbr.rel (0) target = $region9
    $region8: #{classifier_forward.1} parent=1 // pred_region
      %s32 = ssub.s32 27648, 27648
      %33 = vsyncadd [#allocation6], %s32
      %s34 = sshll.u32 [#allocation5], 4
      %s35 = int_to_ptr.vmem [resolvable:$true] %s34
      %40 = dma.hbm_to_vmem [thread:$0]  %s1, 27648, %s35, [#allocation6], 512, 512, 32
    $region9: #{classifier_forward.1} parent=1 // pred_fallthru
      _
    // Predicated region
    $region10: #{classifier_forward.1} parent=1 // pred_check
      _
    $region11: #{classifier_forward.1} parent=1 // pred_check_branch
      %42 = sbr.rel (0) target = $region13
    $region12: #{classifier_forward.1} parent=1 // pred_region
      %s44 = ssub.s32 128, 128
      %45 = vsyncadd [#allocation6], %s44
      %s47 = sshll.u32 [#allocation7], 4
      %s48 = int_to_ptr.vmem [resolvable:$true] %s47
      %50 = dma.hbm_to_vmem [thread:$0]  %s2, 128, %s48, [#allocation6]
    $region13: #{classifier_forward.1} parent=1 // pred_fallthru
      _
    // Predicated region
    $region14: #{classifier_forward.1} parent=1 // pred_check
      _
    $region15: #{classifier_forward.1} parent=1 // pred_check_branch
      %52 = sbr.rel (0) target = $region17
    $region16: #{classifier_forward.1} parent=1 // pred_region
      %s54 = ssub.s32 32768, 32768
      %55 = vsyncadd [#allocation9], %s54
      %s56 = sshll.u32 [#allocation8], 4
      %s57 = int_to_ptr.vmem [resolvable:$true] %s56
      %62 = dma.hbm_to_vmem [thread:$0]  %s3, 32768, %s57, [#allocation9], 256, 256, 16
    $region17: #{classifier_forward.1} parent=1 // pred_fallthru
      _
    // Predicated region
    $region18: #{classifier_forward.1} parent=1 // pred_check
      _
    $region19: #{classifier_forward.1} parent=1 // pred_check_branch
      %64 = sbr.rel (0) target = $region21
    $region20: #{classifier_forward.1} parent=1 // pred_region
      _
    $region21: #{classifier_forward.1} parent=1 // pred_fallthru
      _
    // Predicated region
    $region22: #{classifier_forward.1} parent=1 // pred_check
      _
    $region23: #{classifier_forward.1} parent=1 // pred_check_branch
      %66 = sbr.rel (0) target = $region25
    $region24: #{classifier_forward.1} parent=1 // pred_region
      %s68 = ssub.s32 4096, 4096
      %69 = vsyncadd [#allocation9], %s68
      %s70 = sshll.u32 [#allocation10], 4
      %s71 = int_to_ptr.vmem [resolvable:$true] %s70
      %76 = dma.hbm_to_vmem [thread:$0]  %s5, 4096, %s71, [#allocation9], 64, 64, 4
    $region25: #{classifier_forward.1} parent=1 // pred_fallthru
      _
    // Predicated region
    $region26: #{classifier_forward.1} parent=1 // pred_check
      _
    $region27: #{classifier_forward.1} parent=1 // pred_check_branch
      %78 = sbr.rel (0) target = $region29
    $region28: #{classifier_forward.1} parent=1 // pred_region
      _
    $region29: #{classifier_forward.1} parent=1 // pred_fallthru
      _
    // Predicated region
    $region30: #{classifier_forward.1} parent=1 // pred_check
      _
    $region31: #{classifier_forward.1} parent=1 // pred_check_branch
      %80 = sbr.rel (0) target = $region33
    $region32: #{classifier_forward.1} parent=1 // pred_region
      %s82 = ssub.s32 1024, 1024
      %83 = vsyncadd [#allocation12], %s82
      %s84 = sshll.u32 [#allocation11], 4
      %s85 = int_to_ptr.vmem [resolvable:$true] %s84
      %90 = dma.hbm_to_vmem [thread:$0]  %s7, 1024, %s85, [#allocation12], 64, 64, 4
    $region33: #{classifier_forward.1} parent=1 // pred_fallthru
      _
    // Predicated region
    $region34: #{classifier_forward.1} parent=1 // pred_check
      _
    $region35: #{classifier_forward.1} parent=1 // pred_check_branch
      %92 = sbr.rel (0) target = $region37
    $region36: #{classifier_forward.1} parent=1 // pred_region
      _
    $region37: #{classifier_forward.1} parent=1 // pred_fallthru
      _
    // Predicated region
    $region38: #{classifier_forward.1} parent=1 // pred_check
      _
    $region39: #{classifier_forward.1} parent=1 // pred_check_branch
      %94 = sbr.rel (0) target = $region41
    $region40: #{classifier_forward.1} parent=1 // pred_region
      %95 = dma.done [#allocation3], 512
    $region41: #{classifier_forward.1} parent=1 // pred_fallthru
      _
    // Predicated region
    $region42: #{classifier_forward.1} parent=1 // pred_check
      _
    $region43: #{classifier_forward.1} parent=1 // pred_check_branch
      %97 = sbr.rel (0) target = $region45
    $region44: #{classifier_forward.1} parent=1 // pred_region
      %98 = dma.done [#allocation6], 27648
    $region45: #{classifier_forward.1} parent=1 // pred_fallthru
      _
    // Predicated region
    $region46: #{classifier_forward.1} parent=1 // pred_check
      _
    $region47: #{classifier_forward.1} parent=1 // pred_check_branch
      %100 = sbr.rel (0) target = $region49
    $region48: #{classifier_forward.1} parent=1 // pred_region
      %101 = dma.done [#allocation6], 128
    $region49: #{classifier_forward.1} parent=1 // pred_fallthru
      _
    // Predicated region
    $region50: #{classifier_forward.1} parent=1 // pred_check
      _
    $region51: #{classifier_forward.1} parent=1 // pred_check_branch
      %103 = sbr.rel (0) target = $region53
    $region52: #{classifier_forward.1} parent=1 // pred_region
      %104 = dma.done [#allocation9], 32768
    $region53: #{classifier_forward.1} parent=1 // pred_fallthru
      _
    // Predicated region
    $region54: #{classifier_forward.1} parent=1 // pred_check
      _
    $region55: #{classifier_forward.1} parent=1 // pred_check_branch
      %106 = sbr.rel (0) target = $region57
    $region56: #{classifier_forward.1} parent=1 // pred_region
      %107 = dma.done [#allocation9], 4096
    $region57: #{classifier_forward.1} parent=1 // pred_fallthru
      _
    // Predicated region
    $region58: #{classifier_forward.1} parent=1 // pred_check
      _
    $region59: #{classifier_forward.1} parent=1 // pred_check_branch
      %109 = sbr.rel (0) target = $region61
    $region60: #{classifier_forward.1} parent=1 // pred_region
      %110 = dma.done [#allocation12], 1024
    $region61: #{classifier_forward.1} parent=1 // pred_fallthru
      _
    %v112 = vld [vmem:[#allocation2] sm:$0xff]
    %v113 = vld [vmem:[#allocation2 + $0x8] sm:$0xff]
    %v114 = vld [vmem:[#allocation2 + $0x10] sm:$0xff]
    %v115 = vld [vmem:[#allocation2 + $0x18] sm:$0xff]
    %v116 = vpack.c.bf16 %v112, %v112
    %v117 = vpack.c.bf16 %v113, %v113
    %v118 = vpack.c.bf16 %v114, %v114
    %v119 = vpack.c.bf16 %v115, %v115
    %v120 = vld [vmem:[#allocation5] sm:$0xff]
    %v121 = vld [vmem:[#allocation5 + $0x8] sm:$0xff]
    %v122 = vld [vmem:[#allocation5 + $0x10] sm:$0xff]
    %v123 = vld [vmem:[#allocation5 + $0x18] sm:$0xff]
    %v124 = vld [vmem:[#allocation5 + $0x20] sm:$0xff]
    %v125 = vld [vmem:[#allocation5 + $0x28] sm:$0xff]
    %v126 = vld [vmem:[#allocation5 + $0x30] sm:$0xff]
    %v127 = vld [vmem:[#allocation5 + $0x38] sm:$0xff]
    %v128 = vld [vmem:[#allocation5 + $0x40] sm:$0xff]
    %v129 = vld [vmem:[#allocation5 + $0x48] sm:$0xff]
    %v130 = vld [vmem:[#allocation5 + $0x50] sm:$0xff]
    %v131 = vld [vmem:[#allocation5 + $0x58] sm:$0xff]
    %v132 = vld [vmem:[#allocation5 + $0x60] sm:$0xff]
    %v133 = vld [vmem:[#allocation5 + $0x68] sm:$0xff]
    %v134 = vld [vmem:[#allocation5 + $0x70] sm:$0xff]
    %v135 = vld [vmem:[#allocation5 + $0x78] sm:$0xff]
    %v136 = vld [vmem:[#allocation5 + $0x80] sm:$0xff]
    %v137 = vld [vmem:[#allocation5 + $0x88] sm:$0xff]
    %v138 = vld [vmem:[#allocation5 + $0x90] sm:$0xff]
    %v139 = vld [vmem:[#allocation5 + $0x98] sm:$0xff]
    %v140 = vld [vmem:[#allocation5 + $0xa0] sm:$0xff]
    %v141 = vld [vmem:[#allocation5 + $0xa8] sm:$0xff]
    %v142 = vld [vmem:[#allocation5 + $0xb0] sm:$0xff]
    %v143 = vld [vmem:[#allocation5 + $0xb8] sm:$0xff]
    %v144 = vld [vmem:[#allocation5 + $0xc0] sm:$0xff]
    %v145 = vld [vmem:[#allocation5 + $0xc8] sm:$0xff]
    %v146 = vld [vmem:[#allocation5 + $0xd0] sm:$0xff]
    %v147 = vld [vmem:[#allocation5 + $0xd8] sm:$0xff]
    %v148 = vld [vmem:[#allocation5 + $0xe0] sm:$0xff]
    %v149 = vld [vmem:[#allocation5 + $0xe8] sm:$0xff]
    %v150 = vld [vmem:[#allocation5 + $0xf0] sm:$0xff]
    %v151 = vld [vmem:[#allocation5 + $0xf8] sm:$0xff]
    %v152 = vld [vmem:[#allocation5 + $0x100] sm:$0xff]
    %v153 = vld [vmem:[#allocation5 + $0x108] sm:$0xff]
    %v154 = vld [vmem:[#allocation5 + $0x110] sm:$0xff]
    %v155 = vld [vmem:[#allocation5 + $0x118] sm:$0xff]
    %v156 = vld [vmem:[#allocation5 + $0x120] sm:$0xff]
    %v157 = vld [vmem:[#allocation5 + $0x128] sm:$0xff]
    %v158 = vld [vmem:[#allocation5 + $0x130] sm:$0xff]
    %v159 = vld [vmem:[#allocation5 + $0x138] sm:$0xff]
    %v160 = vld [vmem:[#allocation5 + $0x140] sm:$0xff]
    %v161 = vld [vmem:[#allocation5 + $0x148] sm:$0xff]
    %v162 = vld [vmem:[#allocation5 + $0x150] sm:$0xff]
    %v163 = vld [vmem:[#allocation5 + $0x158] sm:$0xff]
    %v164 = vld [vmem:[#allocation5 + $0x160] sm:$0xff]
    %v165 = vld [vmem:[#allocation5 + $0x168] sm:$0xff]
    %v166 = vld [vmem:[#allocation5 + $0x170] sm:$0xff]
    %v167 = vld [vmem:[#allocation5 + $0x178] sm:$0xff]
    %v168 = vld [vmem:[#allocation5 + $0x180] sm:$0xff]
    %v169 = vld [vmem:[#allocation5 + $0x188] sm:$0xff]
    %v170 = vld [vmem:[#allocation5 + $0x190] sm:$0xff]
    %v171 = vld [vmem:[#allocation5 + $0x198] sm:$0xff]
    %v172 = vld [vmem:[#allocation5 + $0x1a0] sm:$0xff]
    %v173 = vld [vmem:[#allocation5 + $0x1a8] sm:$0xff]
    %v174 = vld [vmem:[#allocation5 + $0x1b0] sm:$0xff]
    %v175 = vld [vmem:[#allocation5 + $0x1b8] sm:$0xff]
    %v176 = vld [vmem:[#allocation5 + $0x1c0] sm:$0xff]
    %v177 = vld [vmem:[#allocation5 + $0x1c8] sm:$0xff]
    %v178 = vld [vmem:[#allocation5 + $0x1d0] sm:$0xff]
    %v179 = vld [vmem:[#allocation5 + $0x1d8] sm:$0xff]
    %v180 = vld [vmem:[#allocation5 + $0x1e0] sm:$0xff]
    %v181 = vld [vmem:[#allocation5 + $0x1e8] sm:$0xff]
    %v182 = vld [vmem:[#allocation5 + $0x1f0] sm:$0xff]
    %v183 = vld [vmem:[#allocation5 + $0x1f8] sm:$0xff]
    %v184 = vld [vmem:[#allocation5 + $0x200] sm:$0xff]
    %v185 = vld [vmem:[#allocation5 + $0x208] sm:$0xff]
    %v186 = vld [vmem:[#allocation5 + $0x210] sm:$0xff]
    %v187 = vld [vmem:[#allocation5 + $0x218] sm:$0xff]
    %v188 = vld [vmem:[#allocation5 + $0x220] sm:$0xff]
    %v189 = vld [vmem:[#allocation5 + $0x228] sm:$0xff]
    %v190 = vld [vmem:[#allocation5 + $0x230] sm:$0xff]
    %v191 = vld [vmem:[#allocation5 + $0x238] sm:$0xff]
    %v192 = vld [vmem:[#allocation5 + $0x240] sm:$0xff]
    %v193 = vld [vmem:[#allocation5 + $0x248] sm:$0xff]
    %v194 = vld [vmem:[#allocation5 + $0x250] sm:$0xff]
    %v195 = vld [vmem:[#allocation5 + $0x258] sm:$0xff]
    %v196 = vld [vmem:[#allocation5 + $0x260] sm:$0xff]
    %v197 = vld [vmem:[#allocation5 + $0x268] sm:$0xff]
    %v198 = vld [vmem:[#allocation5 + $0x270] sm:$0xff]
    %v199 = vld [vmem:[#allocation5 + $0x278] sm:$0xff]
    %v200 = vld [vmem:[#allocation5 + $0x280] sm:$0xff]
    %v201 = vld [vmem:[#allocation5 + $0x288] sm:$0xff]
    %v202 = vld [vmem:[#allocation5 + $0x290] sm:$0xff]
    %v203 = vld [vmem:[#allocation5 + $0x298] sm:$0xff]
    %v204 = vld [vmem:[#allocation5 + $0x2a0] sm:$0xff]
    %v205 = vld [vmem:[#allocation5 + $0x2a8] sm:$0xff]
    %v206 = vld [vmem:[#allocation5 + $0x2b0] sm:$0xff]
    %v207 = vld [vmem:[#allocation5 + $0x2b8] sm:$0xff]
    %v208 = vld [vmem:[#allocation5 + $0x2c0] sm:$0xff]
    %v209 = vld [vmem:[#allocation5 + $0x2c8] sm:$0xff]
    %v210 = vld [vmem:[#allocation5 + $0x2d0] sm:$0xff]
    %v211 = vld [vmem:[#allocation5 + $0x2d8] sm:$0xff]
    %v212 = vld [vmem:[#allocation5 + $0x2e0] sm:$0xff]
    %v213 = vld [vmem:[#allocation5 + $0x2e8] sm:$0xff]
    %v214 = vld [vmem:[#allocation5 + $0x2f0] sm:$0xff]
    %v215 = vld [vmem:[#allocation5 + $0x2f8] sm:$0xff]
    %v216 = vld [vmem:[#allocation5 + $0x300] sm:$0xff]
    %v217 = vld [vmem:[#allocation5 + $0x308] sm:$0xff]
    %v218 = vld [vmem:[#allocation5 + $0x310] sm:$0xff]
    %v219 = vld [vmem:[#allocation5 + $0x318] sm:$0xff]
    %v220 = vld [vmem:[#allocation5 + $0x320] sm:$0xff]
    %v221 = vld [vmem:[#allocation5 + $0x328] sm:$0xff]
    %v222 = vld [vmem:[#allocation5 + $0x330] sm:$0xff]
    %v223 = vld [vmem:[#allocation5 + $0x338] sm:$0xff]
    %v224 = vld [vmem:[#allocation5 + $0x340] sm:$0xff]
    %v225 = vld [vmem:[#allocation5 + $0x348] sm:$0xff]
    %v226 = vld [vmem:[#allocation5 + $0x350] sm:$0xff]
    %v227 = vld [vmem:[#allocation5 + $0x358] sm:$0xff]
    %v228 = vld [vmem:[#allocation5 + $0x360] sm:$0xff]
    %v229 = vld [vmem:[#allocation5 + $0x368] sm:$0xff]
    %v230 = vld [vmem:[#allocation5 + $0x370] sm:$0xff]
    %v231 = vld [vmem:[#allocation5 + $0x378] sm:$0xff]
    %v232 = vld [vmem:[#allocation5 + $0x380] sm:$0xff]
    %v233 = vld [vmem:[#allocation5 + $0x388] sm:$0xff]
    %v234 = vld [vmem:[#allocation5 + $0x390] sm:$0xff]
    %v235 = vld [vmem:[#allocation5 + $0x398] sm:$0xff]
    %v236 = vld [vmem:[#allocation5 + $0x3a0] sm:$0xff]
    %v237 = vld [vmem:[#allocation5 + $0x3a8] sm:$0xff]
    %v238 = vld [vmem:[#allocation5 + $0x3b0] sm:$0xff]
    %v239 = vld [vmem:[#allocation5 + $0x3b8] sm:$0xff]
    %v240 = vld [vmem:[#allocation5 + $0x3c0] sm:$0xff]
    %v241 = vld [vmem:[#allocation5 + $0x3c8] sm:$0xff]
    %v242 = vld [vmem:[#allocation5 + $0x3d0] sm:$0xff]
    %v243 = vld [vmem:[#allocation5 + $0x3d8] sm:$0xff]
    %v244 = vld [vmem:[#allocation5 + $0x3e0] sm:$0xff]
    %v245 = vld [vmem:[#allocation5 + $0x3e8] sm:$0xff]
    %v246 = vld [vmem:[#allocation5 + $0x3f0] sm:$0xff]
    %v247 = vld [vmem:[#allocation5 + $0x3f8] sm:$0xff]
    %v248 = vld [vmem:[#allocation5 + $0x400] sm:$0xff]
    %v249 = vld [vmem:[#allocation5 + $0x408] sm:$0xff]
    %v250 = vld [vmem:[#allocation5 + $0x410] sm:$0xff]
    %v251 = vld [vmem:[#allocation5 + $0x418] sm:$0xff]
    %v252 = vld [vmem:[#allocation5 + $0x420] sm:$0xff]
    %v253 = vld [vmem:[#allocation5 + $0x428] sm:$0xff]
    %v254 = vld [vmem:[#allocation5 + $0x430] sm:$0xff]
    %v255 = vld [vmem:[#allocation5 + $0x438] sm:$0xff]
    %v256 = vld [vmem:[#allocation5 + $0x440] sm:$0xff]
    %v257 = vld [vmem:[#allocation5 + $0x448] sm:$0xff]
    %v258 = vld [vmem:[#allocation5 + $0x450] sm:$0xff]
    %v259 = vld [vmem:[#allocation5 + $0x458] sm:$0xff]
    %v260 = vld [vmem:[#allocation5 + $0x460] sm:$0xff]
    %v261 = vld [vmem:[#allocation5 + $0x468] sm:$0xff]
    %v262 = vld [vmem:[#allocation5 + $0x470] sm:$0xff]
    %v263 = vld [vmem:[#allocation5 + $0x478] sm:$0xff]
    %v264 = vld [vmem:[#allocation5 + $0x480] sm:$0xff]
    %v265 = vld [vmem:[#allocation5 + $0x488] sm:$0xff]
    %v266 = vld [vmem:[#allocation5 + $0x490] sm:$0xff]
    %v267 = vld [vmem:[#allocation5 + $0x498] sm:$0xff]
    %v268 = vld [vmem:[#allocation5 + $0x4a0] sm:$0xff]
    %v269 = vld [vmem:[#allocation5 + $0x4a8] sm:$0xff]
    %v270 = vld [vmem:[#allocation5 + $0x4b0] sm:$0xff]
    %v271 = vld [vmem:[#allocation5 + $0x4b8] sm:$0xff]
    %v272 = vld [vmem:[#allocation5 + $0x4c0] sm:$0xff]
    %v273 = vld [vmem:[#allocation5 + $0x4c8] sm:$0xff]
    %v274 = vld [vmem:[#allocation5 + $0x4d0] sm:$0xff]
    %v275 = vld [vmem:[#allocation5 + $0x4d8] sm:$0xff]
    %v276 = vld [vmem:[#allocation5 + $0x4e0] sm:$0xff]
    %v277 = vld [vmem:[#allocation5 + $0x4e8] sm:$0xff]
    %v278 = vld [vmem:[#allocation5 + $0x4f0] sm:$0xff]
    %v279 = vld [vmem:[#allocation5 + $0x4f8] sm:$0xff]
    %v280 = vld [vmem:[#allocation5 + $0x500] sm:$0xff]
    %v281 = vld [vmem:[#allocation5 + $0x508] sm:$0xff]
    %v282 = vld [vmem:[#allocation5 + $0x510] sm:$0xff]
    %v283 = vld [vmem:[#allocation5 + $0x518] sm:$0xff]
    %v284 = vld [vmem:[#allocation5 + $0x520] sm:$0xff]
    %v285 = vld [vmem:[#allocation5 + $0x528] sm:$0xff]
    %v286 = vld [vmem:[#allocation5 + $0x530] sm:$0xff]
    %v287 = vld [vmem:[#allocation5 + $0x538] sm:$0xff]
    %v288 = vld [vmem:[#allocation5 + $0x540] sm:$0xff]
    %v289 = vld [vmem:[#allocation5 + $0x548] sm:$0xff]
    %v290 = vld [vmem:[#allocation5 + $0x550] sm:$0xff]
    %v291 = vld [vmem:[#allocation5 + $0x558] sm:$0xff]
    %v292 = vld [vmem:[#allocation5 + $0x560] sm:$0xff]
    %v293 = vld [vmem:[#allocation5 + $0x568] sm:$0xff]
    %v294 = vld [vmem:[#allocation5 + $0x570] sm:$0xff]
    %v295 = vld [vmem:[#allocation5 + $0x578] sm:$0xff]
    %v296 = vld [vmem:[#allocation5 + $0x580] sm:$0xff]
    %v297 = vld [vmem:[#allocation5 + $0x588] sm:$0xff]
    %v298 = vld [vmem:[#allocation5 + $0x590] sm:$0xff]
    %v299 = vld [vmem:[#allocation5 + $0x598] sm:$0xff]
    %v300 = vld [vmem:[#allocation5 + $0x5a0] sm:$0xff]
    %v301 = vld [vmem:[#allocation5 + $0x5a8] sm:$0xff]
    %v302 = vld [vmem:[#allocation5 + $0x5b0] sm:$0xff]
    %v303 = vld [vmem:[#allocation5 + $0x5b8] sm:$0xff]
    %v304 = vld [vmem:[#allocation5 + $0x5c0] sm:$0xff]
    %v305 = vld [vmem:[#allocation5 + $0x5c8] sm:$0xff]
    %v306 = vld [vmem:[#allocation5 + $0x5d0] sm:$0xff]
    %v307 = vld [vmem:[#allocation5 + $0x5d8] sm:$0xff]
    %v308 = vld [vmem:[#allocation5 + $0x5e0] sm:$0xff]
    %v309 = vld [vmem:[#allocation5 + $0x5e8] sm:$0xff]
    %v310 = vld [vmem:[#allocation5 + $0x5f0] sm:$0xff]
    %v311 = vld [vmem:[#allocation5 + $0x5f8] sm:$0xff]
    %v312 = vld [vmem:[#allocation5 + $0x600] sm:$0xff]
    %v313 = vld [vmem:[#allocation5 + $0x608] sm:$0xff]
    %v314 = vld [vmem:[#allocation5 + $0x610] sm:$0xff]
    %v315 = vld [vmem:[#allocation5 + $0x618] sm:$0xff]
    %v316 = vld [vmem:[#allocation5 + $0x620] sm:$0xff]
    %v317 = vld [vmem:[#allocation5 + $0x628] sm:$0xff]
    %v318 = vld [vmem:[#allocation5 + $0x630] sm:$0xff]
    %v319 = vld [vmem:[#allocation5 + $0x638] sm:$0xff]
    %v320 = vld [vmem:[#allocation5 + $0x640] sm:$0xff]
    %v321 = vld [vmem:[#allocation5 + $0x648] sm:$0xff]
    %v322 = vld [vmem:[#allocation5 + $0x650] sm:$0xff]
    %v323 = vld [vmem:[#allocation5 + $0x658] sm:$0xff]
    %v324 = vld [vmem:[#allocation5 + $0x660] sm:$0xff]
    %v325 = vld [vmem:[#allocation5 + $0x668] sm:$0xff]
    %v326 = vld [vmem:[#allocation5 + $0x670] sm:$0xff]
    %v327 = vld [vmem:[#allocation5 + $0x678] sm:$0xff]
    %v328 = vld [vmem:[#allocation5 + $0x680] sm:$0xff]
    %v329 = vld [vmem:[#allocation5 + $0x688] sm:$0xff]
    %v330 = vld [vmem:[#allocation5 + $0x690] sm:$0xff]
    %v331 = vld [vmem:[#allocation5 + $0x698] sm:$0xff]
    %v332 = vld [vmem:[#allocation5 + $0x6a0] sm:$0x77]
    %v333 = vld [vmem:[#allocation5 + $0x6a8] sm:$0x77]
    %v334 = vld [vmem:[#allocation5 + $0x6b0] sm:$0x77]
    %v335 = vld [vmem:[#allocation5 + $0x6b8] sm:$0x77]
    %v336 = vld [vmem:[#allocation7] sm:$0xff]
    %v338 = vlaneseq
    %v339 = vshrl.u32 %v338, 7
    %v340 = vsub.s32 0, %v339
    %v341 = vrot.slane %v336, %v340
    %v342 = vlaneseq
    %v343 = vshrl.u32 %v342, 7
    %v344 = vsub.s32 1, %v343
    %v345 = vrot.slane %v336, %v344
    %v346 = vlaneseq
    %v347 = vshrl.u32 %v346, 7
    %v348 = vsub.s32 2, %v347
    %v349 = vrot.slane %v336, %v348
    %v350 = vlaneseq
    %v351 = vshrl.u32 %v350, 7
    %v352 = vsub.s32 3, %v351
    %v353 = vrot.slane %v336, %v352
    %v354 = vlaneseq
    %v355 = vshrl.u32 %v354, 7
    %v356 = vsub.s32 4, %v355
    %v357 = vrot.slane %v336, %v356
    %v358 = vlaneseq
    %v359 = vshrl.u32 %v358, 7
    %v360 = vsub.s32 5, %v359
    %v361 = vrot.slane %v336, %v360
    %v362 = vlaneseq
    %v363 = vshrl.u32 %v362, 7
    %v364 = vsub.s32 6, %v363
    %v365 = vrot.slane %v336, %v364
    %v366 = vlaneseq
    %v367 = vshrl.u32 %v366, 7
    %v368 = vsub.s32 7, %v367
    %v369 = vrot.slane %v336, %v368
    %v594 = vunpack.c.l.b16 %v120
    %v595 = vunpack.c.h.b16 %v120
    %v596 = vunpack.c.l.b16 %v121
    %v597 = vunpack.c.h.b16 %v121
    %v598 = vunpack.c.l.b16 %v122
    %v599 = vunpack.c.h.b16 %v122
    %v600 = vunpack.c.l.b16 %v123
    %v601 = vunpack.c.h.b16 %v123
    %v602 = vunpack.c.l.b16 %v124
    %v603 = vunpack.c.h.b16 %v124
    %v604 = vunpack.c.l.b16 %v125
    %v605 = vunpack.c.h.b16 %v125
    %v606 = vunpack.c.l.b16 %v126
    %v607 = vunpack.c.h.b16 %v126
    %v608 = vunpack.c.l.b16 %v127
    %v609 = vunpack.c.h.b16 %v127
    %v610 = vunpack.c.l.b16 %v128
    %v611 = vunpack.c.h.b16 %v128
    %v612 = vunpack.c.l.b16 %v129
    %v613 = vunpack.c.h.b16 %v129
    %v614 = vunpack.c.l.b16 %v130
    %v615 = vunpack.c.h.b16 %v130
    %v616 = vunpack.c.l.b16 %v131
    %v617 = vunpack.c.h.b16 %v131
    %v618 = vunpack.c.l.b16 %v132
    %v619 = vunpack.c.h.b16 %v132
    %v620 = vunpack.c.l.b16 %v133
    %v621 = vunpack.c.h.b16 %v133
    %v622 = vunpack.c.l.b16 %v134
    %v623 = vunpack.c.h.b16 %v134
    %v624 = vunpack.c.l.b16 %v135
    %v625 = vunpack.c.h.b16 %v135
    %v626 = vunpack.c.l.b16 %v136
    %v627 = vunpack.c.h.b16 %v136
    %v628 = vunpack.c.l.b16 %v137
    %v629 = vunpack.c.h.b16 %v137
    %v630 = vunpack.c.l.b16 %v138
    %v631 = vunpack.c.h.b16 %v138
    %v632 = vunpack.c.l.b16 %v139
    %v633 = vunpack.c.h.b16 %v139
    %v634 = vunpack.c.l.b16 %v140
    %v635 = vunpack.c.h.b16 %v140
    %v636 = vunpack.c.l.b16 %v141
    %v637 = vunpack.c.h.b16 %v141
    %v638 = vunpack.c.l.b16 %v142
    %v639 = vunpack.c.h.b16 %v142
    %v640 = vunpack.c.l.b16 %v143
    %v641 = vunpack.c.h.b16 %v143
    %v642 = vunpack.c.l.b16 %v144
    %v643 = vunpack.c.h.b16 %v144
    %v644 = vunpack.c.l.b16 %v145
    %v645 = vunpack.c.h.b16 %v145
    %v646 = vunpack.c.l.b16 %v146
    %v647 = vunpack.c.h.b16 %v146
    %v648 = vunpack.c.l.b16 %v147
    %v649 = vunpack.c.h.b16 %v147
    %v650 = vunpack.c.l.b16 %v148
    %v651 = vunpack.c.h.b16 %v148
    %v652 = vunpack.c.l.b16 %v149
    %v653 = vunpack.c.h.b16 %v149
    %v654 = vunpack.c.l.b16 %v150
    %v655 = vunpack.c.h.b16 %v150
    %v656 = vunpack.c.l.b16 %v151
    %v657 = vunpack.c.h.b16 %v151
    %v658 = vunpack.c.l.b16 %v152
    %v659 = vunpack.c.h.b16 %v152
    %v660 = vunpack.c.l.b16 %v153
    %v661 = vunpack.c.h.b16 %v153
    %v662 = vunpack.c.l.b16 %v154
    %v663 = vunpack.c.h.b16 %v154
    %v664 = vunpack.c.l.b16 %v155
    %v665 = vunpack.c.h.b16 %v155
    %v666 = vunpack.c.l.b16 %v156
    %v667 = vunpack.c.h.b16 %v156
    %v668 = vunpack.c.l.b16 %v157
    %v669 = vunpack.c.h.b16 %v157
    %v670 = vunpack.c.l.b16 %v158
    %v671 = vunpack.c.h.b16 %v158
    %v672 = vunpack.c.l.b16 %v159
    %v673 = vunpack.c.h.b16 %v159
    %v674 = vunpack.c.l.b16 %v160
    %v675 = vunpack.c.h.b16 %v160
    %v676 = vunpack.c.l.b16 %v161
    %v677 = vunpack.c.h.b16 %v161
    %v678 = vunpack.c.l.b16 %v162
    %v679 = vunpack.c.h.b16 %v162
    %v680 = vunpack.c.l.b16 %v163
    %v681 = vunpack.c.h.b16 %v163
    %v682 = vunpack.c.l.b16 %v164
    %v683 = vunpack.c.h.b16 %v164
    %v684 = vunpack.c.l.b16 %v165
    %v685 = vunpack.c.h.b16 %v165
    %v686 = vunpack.c.l.b16 %v166
    %v687 = vunpack.c.h.b16 %v166
    %v688 = vunpack.c.l.b16 %v167
    %v689 = vunpack.c.h.b16 %v167
    %v690 = vunpack.c.l.b16 %v168
    %v691 = vunpack.c.h.b16 %v168
    %v692 = vunpack.c.l.b16 %v169
    %v693 = vunpack.c.h.b16 %v169
    %v694 = vunpack.c.l.b16 %v170
    %v695 = vunpack.c.h.b16 %v170
    %v696 = vunpack.c.l.b16 %v171
    %v697 = vunpack.c.h.b16 %v171
    %v698 = vunpack.c.l.b16 %v172
    %v699 = vunpack.c.h.b16 %v172
    %v700 = vunpack.c.l.b16 %v173
    %v701 = vunpack.c.h.b16 %v173
    %v702 = vunpack.c.l.b16 %v174
    %v703 = vunpack.c.h.b16 %v174
    %v704 = vunpack.c.l.b16 %v175
    %v705 = vunpack.c.h.b16 %v175
    %v706 = vunpack.c.l.b16 %v176
    %v707 = vunpack.c.h.b16 %v176
    %v708 = vunpack.c.l.b16 %v177
    %v709 = vunpack.c.h.b16 %v177
    %v710 = vunpack.c.l.b16 %v178
    %v711 = vunpack.c.h.b16 %v178
    %v712 = vunpack.c.l.b16 %v179
    %v713 = vunpack.c.h.b16 %v179
    %v714 = vunpack.c.l.b16 %v180
    %v715 = vunpack.c.h.b16 %v180
    %v716 = vunpack.c.l.b16 %v181
    %v717 = vunpack.c.h.b16 %v181
    %v718 = vunpack.c.l.b16 %v182
    %v719 = vunpack.c.h.b16 %v182
    %v720 = vunpack.c.l.b16 %v183
    %v721 = vunpack.c.h.b16 %v183
    %v722 = vunpack.c.l.b16 %v184
    %v723 = vunpack.c.h.b16 %v184
    %v724 = vunpack.c.l.b16 %v185
    %v725 = vunpack.c.h.b16 %v185
    %v726 = vunpack.c.l.b16 %v186
    %v727 = vunpack.c.h.b16 %v186
    %v728 = vunpack.c.l.b16 %v187
    %v729 = vunpack.c.h.b16 %v187
    %v730 = vunpack.c.l.b16 %v188
    %v731 = vunpack.c.h.b16 %v188
    %v732 = vunpack.c.l.b16 %v189
    %v733 = vunpack.c.h.b16 %v189
    %v734 = vunpack.c.l.b16 %v190
    %v735 = vunpack.c.h.b16 %v190
    %v736 = vunpack.c.l.b16 %v191
    %v737 = vunpack.c.h.b16 %v191
    %v738 = vunpack.c.l.b16 %v192
    %v739 = vunpack.c.h.b16 %v192
    %v740 = vunpack.c.l.b16 %v193
    %v741 = vunpack.c.h.b16 %v193
    %v742 = vunpack.c.l.b16 %v194
    %v743 = vunpack.c.h.b16 %v194
    %v744 = vunpack.c.l.b16 %v195
    %v745 = vunpack.c.h.b16 %v195
    %v746 = vunpack.c.l.b16 %v196
    %v747 = vunpack.c.h.b16 %v196
    %v748 = vunpack.c.l.b16 %v197
    %v749 = vunpack.c.h.b16 %v197
    %v750 = vunpack.c.l.b16 %v198
    %v751 = vunpack.c.h.b16 %v198
    %v752 = vunpack.c.l.b16 %v199
    %v753 = vunpack.c.h.b16 %v199
    %v754 = vunpack.c.l.b16 %v200
    %v755 = vunpack.c.h.b16 %v200
    %v756 = vunpack.c.l.b16 %v201
    %v757 = vunpack.c.h.b16 %v201
    %v758 = vunpack.c.l.b16 %v202
    %v759 = vunpack.c.h.b16 %v202
    %v760 = vunpack.c.l.b16 %v203
    %v761 = vunpack.c.h.b16 %v203
    %v762 = vunpack.c.l.b16 %v204
    %v763 = vunpack.c.h.b16 %v204
    %v764 = vunpack.c.l.b16 %v205
    %v765 = vunpack.c.h.b16 %v205
    %v766 = vunpack.c.l.b16 %v206
    %v767 = vunpack.c.h.b16 %v206
    %v768 = vunpack.c.l.b16 %v207
    %v769 = vunpack.c.h.b16 %v207
    %v770 = vunpack.c.l.b16 %v208
    %v771 = vunpack.c.h.b16 %v208
    %v772 = vunpack.c.l.b16 %v209
    %v773 = vunpack.c.h.b16 %v209
    %v774 = vunpack.c.l.b16 %v210
    %v775 = vunpack.c.h.b16 %v210
    %v776 = vunpack.c.l.b16 %v211
    %v777 = vunpack.c.h.b16 %v211
    %v778 = vunpack.c.l.b16 %v212
    %v779 = vunpack.c.h.b16 %v212
    %v780 = vunpack.c.l.b16 %v213
    %v781 = vunpack.c.h.b16 %v213
    %v782 = vunpack.c.l.b16 %v214
    %v783 = vunpack.c.h.b16 %v214
    %v784 = vunpack.c.l.b16 %v215
    %v785 = vunpack.c.h.b16 %v215
    %v786 = vunpack.c.l.b16 %v216
    %v787 = vunpack.c.h.b16 %v216
    %v788 = vunpack.c.l.b16 %v217
    %v789 = vunpack.c.h.b16 %v217
    %v790 = vunpack.c.l.b16 %v218
    %v791 = vunpack.c.h.b16 %v218
    %v792 = vunpack.c.l.b16 %v219
    %v793 = vunpack.c.h.b16 %v219
    %v794 = vunpack.c.l.b16 %v220
    %v795 = vunpack.c.h.b16 %v220
    %v796 = vunpack.c.l.b16 %v221
    %v797 = vunpack.c.h.b16 %v221
    %v798 = vunpack.c.l.b16 %v222
    %v799 = vunpack.c.h.b16 %v222
    %v800 = vunpack.c.l.b16 %v223
    %v801 = vunpack.c.h.b16 %v223
    %v802 = vunpack.c.l.b16 %v224
    %v803 = vunpack.c.h.b16 %v224
    %v804 = vunpack.c.l.b16 %v225
    %v805 = vunpack.c.h.b16 %v225
    %v806 = vunpack.c.l.b16 %v226
    %v807 = vunpack.c.h.b16 %v226
    %v808 = vunpack.c.l.b16 %v227
    %v809 = vunpack.c.h.b16 %v227
    %v810 = vunpack.c.l.b16 %v228
    %v811 = vunpack.c.h.b16 %v228
    %v812 = vunpack.c.l.b16 %v229
    %v813 = vunpack.c.h.b16 %v229
    %v814 = vunpack.c.l.b16 %v230
    %v815 = vunpack.c.h.b16 %v230
    %v816 = vunpack.c.l.b16 %v231
    %v817 = vunpack.c.h.b16 %v231
    %v818 = vunpack.c.l.b16 %v232
    %v819 = vunpack.c.h.b16 %v232
    %v820 = vunpack.c.l.b16 %v233
    %v821 = vunpack.c.h.b16 %v233
    %v822 = vunpack.c.l.b16 %v234
    %v823 = vunpack.c.h.b16 %v234
    %v824 = vunpack.c.l.b16 %v235
    %v825 = vunpack.c.h.b16 %v235
    %v826 = vunpack.c.l.b16 %v236
    %v827 = vunpack.c.h.b16 %v236
    %v828 = vunpack.c.l.b16 %v237
    %v829 = vunpack.c.h.b16 %v237
    %v830 = vunpack.c.l.b16 %v238
    %v831 = vunpack.c.h.b16 %v238
    %v832 = vunpack.c.l.b16 %v239
    %v833 = vunpack.c.h.b16 %v239
    %v834 = vunpack.c.l.b16 %v240
    %v835 = vunpack.c.h.b16 %v240
    %v836 = vunpack.c.l.b16 %v241
    %v837 = vunpack.c.h.b16 %v241
    %v838 = vunpack.c.l.b16 %v242
    %v839 = vunpack.c.h.b16 %v242
    %v840 = vunpack.c.l.b16 %v243
    %v841 = vunpack.c.h.b16 %v243
    %v842 = vunpack.c.l.b16 %v244
    %v843 = vunpack.c.h.b16 %v244
    %v844 = vunpack.c.l.b16 %v245
    %v845 = vunpack.c.h.b16 %v245
    %v846 = vunpack.c.l.b16 %v246
    %v847 = vunpack.c.h.b16 %v246
    %v848 = vunpack.c.l.b16 %v247
    %v849 = vunpack.c.h.b16 %v247
    %v850 = vunpack.c.l.b16 %v248
    %v851 = vunpack.c.h.b16 %v248
    %v852 = vunpack.c.l.b16 %v249
    %v853 = vunpack.c.h.b16 %v249
    %v854 = vunpack.c.l.b16 %v250
    %v855 = vunpack.c.h.b16 %v250
    %v856 = vunpack.c.l.b16 %v251
    %v857 = vunpack.c.h.b16 %v251
    %v858 = vunpack.c.l.b16 %v252
    %v859 = vunpack.c.h.b16 %v252
    %v860 = vunpack.c.l.b16 %v253
    %v861 = vunpack.c.h.b16 %v253
    %v862 = vunpack.c.l.b16 %v254
    %v863 = vunpack.c.h.b16 %v254
    %v864 = vunpack.c.l.b16 %v255
    %v865 = vunpack.c.h.b16 %v255
    %v866 = vunpack.c.l.b16 %v256
    %v867 = vunpack.c.h.b16 %v256
    %v868 = vunpack.c.l.b16 %v257
    %v869 = vunpack.c.h.b16 %v257
    %v870 = vunpack.c.l.b16 %v258
    %v871 = vunpack.c.h.b16 %v258
    %v872 = vunpack.c.l.b16 %v259
    %v873 = vunpack.c.h.b16 %v259
    %v874 = vunpack.c.l.b16 %v260
    %v875 = vunpack.c.h.b16 %v260
    %v876 = vunpack.c.l.b16 %v261
    %v877 = vunpack.c.h.b16 %v261
    %v878 = vunpack.c.l.b16 %v262
    %v879 = vunpack.c.h.b16 %v262
    %v880 = vunpack.c.l.b16 %v263
    %v881 = vunpack.c.h.b16 %v263
    %v882 = vunpack.c.l.b16 %v264
    %v883 = vunpack.c.h.b16 %v264
    %v884 = vunpack.c.l.b16 %v265
    %v885 = vunpack.c.h.b16 %v265
    %v886 = vunpack.c.l.b16 %v266
    %v887 = vunpack.c.h.b16 %v266
    %v888 = vunpack.c.l.b16 %v267
    %v889 = vunpack.c.h.b16 %v267
    %v890 = vunpack.c.l.b16 %v268
    %v891 = vunpack.c.h.b16 %v268
    %v892 = vunpack.c.l.b16 %v269
    %v893 = vunpack.c.h.b16 %v269
    %v894 = vunpack.c.l.b16 %v270
    %v895 = vunpack.c.h.b16 %v270
    %v896 = vunpack.c.l.b16 %v271
    %v897 = vunpack.c.h.b16 %v271
    %v898 = vunpack.c.l.b16 %v272
    %v899 = vunpack.c.h.b16 %v272
    %v900 = vunpack.c.l.b16 %v273
    %v901 = vunpack.c.h.b16 %v273
    %v902 = vunpack.c.l.b16 %v274
    %v903 = vunpack.c.h.b16 %v274
    %v904 = vunpack.c.l.b16 %v275
    %v905 = vunpack.c.h.b16 %v275
    %v906 = vunpack.c.l.b16 %v276
    %v907 = vunpack.c.h.b16 %v276
    %v908 = vunpack.c.l.b16 %v277
    %v909 = vunpack.c.h.b16 %v277
    %v910 = vunpack.c.l.b16 %v278
    %v911 = vunpack.c.h.b16 %v278
    %v912 = vunpack.c.l.b16 %v279
    %v913 = vunpack.c.h.b16 %v279
    %v914 = vunpack.c.l.b16 %v280
    %v915 = vunpack.c.h.b16 %v280
    %v916 = vunpack.c.l.b16 %v281
    %v917 = vunpack.c.h.b16 %v281
    %v918 = vunpack.c.l.b16 %v282
    %v919 = vunpack.c.h.b16 %v282
    %v920 = vunpack.c.l.b16 %v283
    %v921 = vunpack.c.h.b16 %v283
    %v922 = vunpack.c.l.b16 %v284
    %v923 = vunpack.c.h.b16 %v284
    %v924 = vunpack.c.l.b16 %v285
    %v925 = vunpack.c.h.b16 %v285
    %v926 = vunpack.c.l.b16 %v286
    %v927 = vunpack.c.h.b16 %v286
    %v928 = vunpack.c.l.b16 %v287
    %v929 = vunpack.c.h.b16 %v287
    %v930 = vunpack.c.l.b16 %v288
    %v931 = vunpack.c.h.b16 %v288
    %v932 = vunpack.c.l.b16 %v289
    %v933 = vunpack.c.h.b16 %v289
    %v934 = vunpack.c.l.b16 %v290
    %v935 = vunpack.c.h.b16 %v290
    %v936 = vunpack.c.l.b16 %v291
    %v937 = vunpack.c.h.b16 %v291
    %v938 = vunpack.c.l.b16 %v292
    %v939 = vunpack.c.h.b16 %v292
    %v940 = vunpack.c.l.b16 %v293
    %v941 = vunpack.c.h.b16 %v293
    %v942 = vunpack.c.l.b16 %v294
    %v943 = vunpack.c.h.b16 %v294
    %v944 = vunpack.c.l.b16 %v295
    %v945 = vunpack.c.h.b16 %v295
    %v946 = vunpack.c.l.b16 %v296
    %v947 = vunpack.c.h.b16 %v296
    %v948 = vunpack.c.l.b16 %v297
    %v949 = vunpack.c.h.b16 %v297
    %v950 = vunpack.c.l.b16 %v298
    %v951 = vunpack.c.h.b16 %v298
    %v952 = vunpack.c.l.b16 %v299
    %v953 = vunpack.c.h.b16 %v299
    %v954 = vunpack.c.l.b16 %v300
    %v955 = vunpack.c.h.b16 %v300
    %v956 = vunpack.c.l.b16 %v301
    %v957 = vunpack.c.h.b16 %v301
    %v958 = vunpack.c.l.b16 %v302
    %v959 = vunpack.c.h.b16 %v302
    %v960 = vunpack.c.l.b16 %v303
    %v961 = vunpack.c.h.b16 %v303
    %v962 = vunpack.c.l.b16 %v304
    %v963 = vunpack.c.h.b16 %v304
    %v964 = vunpack.c.l.b16 %v305
    %v965 = vunpack.c.h.b16 %v305
    %v966 = vunpack.c.l.b16 %v306
    %v967 = vunpack.c.h.b16 %v306
    %v968 = vunpack.c.l.b16 %v307
    %v969 = vunpack.c.h.b16 %v307
    %v970 = vunpack.c.l.b16 %v308
    %v971 = vunpack.c.h.b16 %v308
    %v972 = vunpack.c.l.b16 %v309
    %v973 = vunpack.c.h.b16 %v309
    %v974 = vunpack.c.l.b16 %v310
    %v975 = vunpack.c.h.b16 %v310
    %v976 = vunpack.c.l.b16 %v311
    %v977 = vunpack.c.h.b16 %v311
    %v978 = vunpack.c.l.b16 %v312
    %v979 = vunpack.c.h.b16 %v312
    %v980 = vunpack.c.l.b16 %v313
    %v981 = vunpack.c.h.b16 %v313
    %v982 = vunpack.c.l.b16 %v314
    %v983 = vunpack.c.h.b16 %v314
    %v984 = vunpack.c.l.b16 %v315
    %v985 = vunpack.c.h.b16 %v315
    %v986 = vunpack.c.l.b16 %v316
    %v987 = vunpack.c.h.b16 %v316
    %v988 = vunpack.c.l.b16 %v317
    %v989 = vunpack.c.h.b16 %v317
    %v990 = vunpack.c.l.b16 %v318
    %v991 = vunpack.c.h.b16 %v318
    %v992 = vunpack.c.l.b16 %v319
    %v993 = vunpack.c.h.b16 %v319
    %v994 = vunpack.c.l.b16 %v320
    %v995 = vunpack.c.h.b16 %v320
    %v996 = vunpack.c.l.b16 %v321
    %v997 = vunpack.c.h.b16 %v321
    %v998 = vunpack.c.l.b16 %v322
    %v999 = vunpack.c.h.b16 %v322
    %v1000 = vunpack.c.l.b16 %v323
    %v1001 = vunpack.c.h.b16 %v323
    %v1002 = vunpack.c.l.b16 %v324
    %v1003 = vunpack.c.h.b16 %v324
    %v1004 = vunpack.c.l.b16 %v325
    %v1005 = vunpack.c.h.b16 %v325
    %v1006 = vunpack.c.l.b16 %v326
    %v1007 = vunpack.c.h.b16 %v326
    %v1008 = vunpack.c.l.b16 %v327
    %v1009 = vunpack.c.h.b16 %v327
    %v1010 = vunpack.c.l.b16 %v328
    %v1011 = vunpack.c.h.b16 %v328
    %v1012 = vunpack.c.l.b16 %v329
    %v1013 = vunpack.c.h.b16 %v329
    %v1014 = vunpack.c.l.b16 %v330
    %v1015 = vunpack.c.h.b16 %v330
    %v1016 = vunpack.c.l.b16 %v331
    %v1017 = vunpack.c.h.b16 %v331
    %v1018 = vunpack.c.l.b16 %v332
    %v1019 = vunpack.c.h.b16 %v332
    %v1020 = vunpack.c.l.b16 %v333
    %v1021 = vunpack.c.h.b16 %v333
    %v1022 = vunpack.c.l.b16 %v334
    %v1023 = vunpack.c.h.b16 %v334
    %v1024 = vunpack.c.l.b16 %v335
    %v1025 = vunpack.c.h.b16 %v335
    %v1026 = vpack.c.b16 %v602, %v594
    %v1027 = vpack.c.b16 %v603, %v595
    %v1028 = vpack.c.b16 %v604, %v596
    %v1029 = vpack.c.b16 %v605, %v597
    %v1030 = vpack.c.b16 %v606, %v598
    %v1031 = vpack.c.b16 %v607, %v599
    %v1032 = vpack.c.b16 %v608, %v600
    %v1033 = vpack.c.b16 %v609, %v601
    %v1034 = vpack.c.b16 %v618, %v610
    %v1035 = vpack.c.b16 %v619, %v611
    %v1036 = vpack.c.b16 %v620, %v612
    %v1037 = vpack.c.b16 %v621, %v613
    %v1038 = vpack.c.b16 %v622, %v614
    %v1039 = vpack.c.b16 %v623, %v615
    %v1040 = vpack.c.b16 %v624, %v616
    %v1041 = vpack.c.b16 %v625, %v617
    %v1042 = vpack.c.b16 %v634, %v626
    %v1043 = vpack.c.b16 %v635, %v627
    %v1044 = vpack.c.b16 %v636, %v628
    %v1045 = vpack.c.b16 %v637, %v629
    %v1046 = vpack.c.b16 %v638, %v630
    %v1047 = vpack.c.b16 %v639, %v631
    %v1048 = vpack.c.b16 %v640, %v632
    %v1049 = vpack.c.b16 %v641, %v633
    %v1050 = vpack.c.b16 %v650, %v642
    %v1051 = vpack.c.b16 %v651, %v643
    %v1052 = vpack.c.b16 %v652, %v644
    %v1053 = vpack.c.b16 %v653, %v645
    %v1054 = vpack.c.b16 %v654, %v646
    %v1055 = vpack.c.b16 %v655, %v647
    %v1056 = vpack.c.b16 %v656, %v648
    %v1057 = vpack.c.b16 %v657, %v649
    %v1058 = vpack.c.b16 %v666, %v658
    %v1059 = vpack.c.b16 %v667, %v659
    %v1060 = vpack.c.b16 %v668, %v660
    %v1061 = vpack.c.b16 %v669, %v661
    %v1062 = vpack.c.b16 %v670, %v662
    %v1063 = vpack.c.b16 %v671, %v663
    %v1064 = vpack.c.b16 %v672, %v664
    %v1065 = vpack.c.b16 %v673, %v665
    %v1066 = vpack.c.b16 %v682, %v674
    %v1067 = vpack.c.b16 %v683, %v675
    %v1068 = vpack.c.b16 %v684, %v676
    %v1069 = vpack.c.b16 %v685, %v677
    %v1070 = vpack.c.b16 %v686, %v678
    %v1071 = vpack.c.b16 %v687, %v679
    %v1072 = vpack.c.b16 %v688, %v680
    %v1073 = vpack.c.b16 %v689, %v681
    %v1074 = vpack.c.b16 %v698, %v690
    %v1075 = vpack.c.b16 %v699, %v691
    %v1076 = vpack.c.b16 %v700, %v692
    %v1077 = vpack.c.b16 %v701, %v693
    %v1078 = vpack.c.b16 %v702, %v694
    %v1079 = vpack.c.b16 %v703, %v695
    %v1080 = vpack.c.b16 %v704, %v696
    %v1081 = vpack.c.b16 %v705, %v697
    %v1082 = vpack.c.b16 %v714, %v706
    %v1083 = vpack.c.b16 %v715, %v707
    %v1084 = vpack.c.b16 %v716, %v708
    %v1085 = vpack.c.b16 %v717, %v709
    %v1086 = vpack.c.b16 %v718, %v710
    %v1087 = vpack.c.b16 %v719, %v711
    %v1088 = vpack.c.b16 %v720, %v712
    %v1089 = vpack.c.b16 %v721, %v713
    %v1090 = vpack.c.b16 %v730, %v722
    %v1091 = vpack.c.b16 %v731, %v723
    %v1092 = vpack.c.b16 %v732, %v724
    %v1093 = vpack.c.b16 %v733, %v725
    %v1094 = vpack.c.b16 %v734, %v726
    %v1095 = vpack.c.b16 %v735, %v727
    %v1096 = vpack.c.b16 %v736, %v728
    %v1097 = vpack.c.b16 %v737, %v729
    %v1098 = vpack.c.b16 %v746, %v738
    %v1099 = vpack.c.b16 %v747, %v739
    %v1100 = vpack.c.b16 %v748, %v740
    %v1101 = vpack.c.b16 %v749, %v741
    %v1102 = vpack.c.b16 %v750, %v742
    %v1103 = vpack.c.b16 %v751, %v743
    %v1104 = vpack.c.b16 %v752, %v744
    %v1105 = vpack.c.b16 %v753, %v745
    %v1106 = vpack.c.b16 %v762, %v754
    %v1107 = vpack.c.b16 %v763, %v755
    %v1108 = vpack.c.b16 %v764, %v756
    %v1109 = vpack.c.b16 %v765, %v757
    %v1110 = vpack.c.b16 %v766, %v758
    %v1111 = vpack.c.b16 %v767, %v759
    %v1112 = vpack.c.b16 %v768, %v760
    %v1113 = vpack.c.b16 %v769, %v761
    %v1114 = vpack.c.b16 %v778, %v770
    %v1115 = vpack.c.b16 %v779, %v771
    %v1116 = vpack.c.b16 %v780, %v772
    %v1117 = vpack.c.b16 %v781, %v773
    %v1118 = vpack.c.b16 %v782, %v774
    %v1119 = vpack.c.b16 %v783, %v775
    %v1120 = vpack.c.b16 %v784, %v776
    %v1121 = vpack.c.b16 %v785, %v777
    %v1122 = vpack.c.b16 %v794, %v786
    %v1123 = vpack.c.b16 %v795, %v787
    %v1124 = vpack.c.b16 %v796, %v788
    %v1125 = vpack.c.b16 %v797, %v789
    %v1126 = vpack.c.b16 %v798, %v790
    %v1127 = vpack.c.b16 %v799, %v791
    %v1128 = vpack.c.b16 %v800, %v792
    %v1129 = vpack.c.b16 %v801, %v793
    %v1130 = vpack.c.b16 %v810, %v802
    %v1131 = vpack.c.b16 %v811, %v803
    %v1132 = vpack.c.b16 %v812, %v804
    %v1133 = vpack.c.b16 %v813, %v805
    %v1134 = vpack.c.b16 %v814, %v806
    %v1135 = vpack.c.b16 %v815, %v807
    %v1136 = vpack.c.b16 %v816, %v808
    %v1137 = vpack.c.b16 %v817, %v809
    %v1138 = vpack.c.b16 %v826, %v818
    %v1139 = vpack.c.b16 %v827, %v819
    %v1140 = vpack.c.b16 %v828, %v820
    %v1141 = vpack.c.b16 %v829, %v821
    %v1142 = vpack.c.b16 %v830, %v822
    %v1143 = vpack.c.b16 %v831, %v823
    %v1144 = vpack.c.b16 %v832, %v824
    %v1145 = vpack.c.b16 %v833, %v825
    %v1146 = vpack.c.b16 %v842, %v834
    %v1147 = vpack.c.b16 %v843, %v835
    %v1148 = vpack.c.b16 %v844, %v836
    %v1149 = vpack.c.b16 %v845, %v837
    %v1150 = vpack.c.b16 %v846, %v838
    %v1151 = vpack.c.b16 %v847, %v839
    %v1152 = vpack.c.b16 %v848, %v840
    %v1153 = vpack.c.b16 %v849, %v841
    %v1154 = vpack.c.b16 %v858, %v850
    %v1155 = vpack.c.b16 %v859, %v851
    %v1156 = vpack.c.b16 %v860, %v852
    %v1157 = vpack.c.b16 %v861, %v853
    %v1158 = vpack.c.b16 %v862, %v854
    %v1159 = vpack.c.b16 %v863, %v855
    %v1160 = vpack.c.b16 %v864, %v856
    %v1161 = vpack.c.b16 %v865, %v857
    %v1162 = vpack.c.b16 %v874, %v866
    %v1163 = vpack.c.b16 %v875, %v867
    %v1164 = vpack.c.b16 %v876, %v868
    %v1165 = vpack.c.b16 %v877, %v869
    %v1166 = vpack.c.b16 %v878, %v870
    %v1167 = vpack.c.b16 %v879, %v871
    %v1168 = vpack.c.b16 %v880, %v872
    %v1169 = vpack.c.b16 %v881, %v873
    %v1170 = vpack.c.b16 %v890, %v882
    %v1171 = vpack.c.b16 %v891, %v883
    %v1172 = vpack.c.b16 %v892, %v884
    %v1173 = vpack.c.b16 %v893, %v885
    %v1174 = vpack.c.b16 %v894, %v886
    %v1175 = vpack.c.b16 %v895, %v887
    %v1176 = vpack.c.b16 %v896, %v888
    %v1177 = vpack.c.b16 %v897, %v889
    %v1178 = vpack.c.b16 %v906, %v898
    %v1179 = vpack.c.b16 %v907, %v899
    %v1180 = vpack.c.b16 %v908, %v900
    %v1181 = vpack.c.b16 %v909, %v901
    %v1182 = vpack.c.b16 %v910, %v902
    %v1183 = vpack.c.b16 %v911, %v903
    %v1184 = vpack.c.b16 %v912, %v904
    %v1185 = vpack.c.b16 %v913, %v905
    %v1186 = vpack.c.b16 %v922, %v914
    %v1187 = vpack.c.b16 %v923, %v915
    %v1188 = vpack.c.b16 %v924, %v916
    %v1189 = vpack.c.b16 %v925, %v917
    %v1190 = vpack.c.b16 %v926, %v918
    %v1191 = vpack.c.b16 %v927, %v919
    %v1192 = vpack.c.b16 %v928, %v920
    %v1193 = vpack.c.b16 %v929, %v921
    %v1194 = vpack.c.b16 %v938, %v930
    %v1195 = vpack.c.b16 %v939, %v931
    %v1196 = vpack.c.b16 %v940, %v932
    %v1197 = vpack.c.b16 %v941, %v933
    %v1198 = vpack.c.b16 %v942, %v934
    %v1199 = vpack.c.b16 %v943, %v935
    %v1200 = vpack.c.b16 %v944, %v936
    %v1201 = vpack.c.b16 %v945, %v937
    %v1202 = vpack.c.b16 %v954, %v946
    %v1203 = vpack.c.b16 %v955, %v947
    %v1204 = vpack.c.b16 %v956, %v948
    %v1205 = vpack.c.b16 %v957, %v949
    %v1206 = vpack.c.b16 %v958, %v950
    %v1207 = vpack.c.b16 %v959, %v951
    %v1208 = vpack.c.b16 %v960, %v952
    %v1209 = vpack.c.b16 %v961, %v953
    %v1210 = vpack.c.b16 %v970, %v962
    %v1211 = vpack.c.b16 %v971, %v963
    %v1212 = vpack.c.b16 %v972, %v964
    %v1213 = vpack.c.b16 %v973, %v965
    %v1214 = vpack.c.b16 %v974, %v966
    %v1215 = vpack.c.b16 %v975, %v967
    %v1216 = vpack.c.b16 %v976, %v968
    %v1217 = vpack.c.b16 %v977, %v969
    %v1218 = vpack.c.b16 %v986, %v978
    %v1219 = vpack.c.b16 %v987, %v979
    %v1220 = vpack.c.b16 %v988, %v980
    %v1221 = vpack.c.b16 %v989, %v981
    %v1222 = vpack.c.b16 %v990, %v982
    %v1223 = vpack.c.b16 %v991, %v983
    %v1224 = vpack.c.b16 %v992, %v984
    %v1225 = vpack.c.b16 %v993, %v985
    %v1226 = vpack.c.b16 %v1002, %v994
    %v1227 = vpack.c.b16 %v1003, %v995
    %v1228 = vpack.c.b16 %v1004, %v996
    %v1229 = vpack.c.b16 %v1005, %v997
    %v1230 = vpack.c.b16 %v1006, %v998
    %v1231 = vpack.c.b16 %v1007, %v999
    %v1232 = vpack.c.b16 %v1008, %v1000
    %v1233 = vpack.c.b16 %v1009, %v1001
    %v1234 = vpack.c.b16 %v1018, %v1010
    %v1235 = vpack.c.b16 %v1019, %v1011
    %v1236 = vpack.c.b16 %v1020, %v1012
    %v1237 = vpack.c.b16 %v1021, %v1013
    %v1238 = vpack.c.b16 %v1022, %v1014
    %v1239 = vpack.c.b16 %v1023, %v1015
    %v1240 = vpack.c.b16 %v1024, %v1016
    %v1241 = vpack.c.b16 %v1025, %v1017
    %vm1450 = vcmask 367616
    %v1452 = vsel %vm1450, %v119, 0
    %vm1454 = vcmask 1045504
    %vm1455 = vcmask 1046528
    %v1456 = vsel %vm1454, 4294967295, 65535
    %v1457 = vsel %vm1455, %v1456, 0
    %v1459 = vand.u32 %v1234, %v1457
    %v1462 = vand.u32 %v1235, %v1457
    %v1465 = vand.u32 %v1236, %v1457
    %v1468 = vand.u32 %v1237, %v1457
    %v1471 = vand.u32 %v1238, %v1457
    %v1474 = vand.u32 %v1239, %v1457
    %v1477 = vand.u32 %v1240, %v1457
    %v1480 = vand.u32 %v1241, %v1457
    %1482 = vmatprep.subr.bf16.mxu0 %v1027
    %1483 = vmatpush1.bf16.msra.mxu0 %v1026
    %1484 = vmatprep.subr.bf16.mxu0 %v1035
    %1485 = vmatpush1.bf16.msra.mxu0 %v1034
    %1486 = vmatprep.subr.bf16.mxu0 %v1043
    %1487 = vmatpush1.bf16.msra.mxu0 %v1042
    %1488 = vmatprep.subr.bf16.mxu0 %v1051
    %1489 = vmatpush1.bf16.msra.mxu0 %v1050
    %1490 = vmatprep.subr.bf16.mxu0 %v1059
    %1491 = vmatpush1.bf16.msra.mxu0 %v1058
    %1492 = vmatprep.subr.bf16.mxu0 %v1067
    %1493 = vmatpush1.bf16.msra.mxu0 %v1066
    %1494 = vmatprep.subr.bf16.mxu0 %v1075
    %1495 = vmatpush1.bf16.msra.mxu0 %v1074
    %1496 = vmatprep.subr.bf16.mxu0 %v1083
    %1497 = vmatpush1.bf16.msra.mxu0 %v1082
    %1498 = vmatprep.subr.bf16.mxu0 %v1091
    %1499 = vmatpush1.bf16.msra.mxu0 %v1090
    %1500 = vmatprep.subr.bf16.mxu0 %v1099
    %1501 = vmatpush1.bf16.msra.mxu0 %v1098
    %1502 = vmatprep.subr.bf16.mxu0 %v1107
    %1503 = vmatpush1.bf16.msra.mxu0 %v1106
    %1504 = vmatprep.subr.bf16.mxu0 %v1115
    %1505 = vmatpush1.bf16.msra.mxu0 %v1114
    %1506 = vmatprep.subr.bf16.mxu0 %v1123
    %1507 = vmatpush1.bf16.msra.mxu0 %v1122
    %1508 = vmatprep.subr.bf16.mxu0 %v1131
    %1509 = vmatpush1.bf16.msra.mxu0 %v1130
    %1510 = vmatprep.subr.bf16.mxu0 %v1139
    %1511 = vmatpush1.bf16.msra.mxu0 %v1138
    %1512 = vmatprep.subr.bf16.mxu0 %v1147
    %1513 = vmatpush1.bf16.msra.mxu0 %v1146
    %1514 = vmatprep.mubr.bf16.mxu0 %v117
    %1515 = vmatmul.mubr.bf16.gmra.mrb[0].mxu0 %v116
    %v1516 = vpop.f32.mrb[0].mxu0
    %v1517 = vadd.f32 %v341, %v1516
    %v1518 = vpop.f32.mrb[0].mxu0
    %v1519 = vadd.f32 %v345, %v1518
    %v1520 = vpop.f32.mrb[0].mxu0
    %v1521 = vpop.f32.mrb[0].mxu0
    %1522 = vdwg.mxu0
    %1523 = vmatprep.subr.bf16.mxu0 %v1155
    %1524 = vmatpush1.bf16.msra.mxu0 %v1154
    %1525 = vmatprep.subr.bf16.mxu0 %v1163
    %1526 = vmatpush1.bf16.msra.mxu0 %v1162
    %1527 = vmatprep.subr.bf16.mxu0 %v1171
    %1528 = vmatpush1.bf16.msra.mxu0 %v1170
    %1529 = vmatprep.subr.bf16.mxu0 %v1179
    %1530 = vmatpush1.bf16.msra.mxu0 %v1178
    %1531 = vmatprep.subr.bf16.mxu0 %v1187
    %1532 = vmatpush1.bf16.msra.mxu0 %v1186
    %1533 = vmatprep.subr.bf16.mxu0 %v1195
    %1534 = vmatpush1.bf16.msra.mxu0 %v1194
    %1535 = vmatprep.subr.bf16.mxu0 %v1203
    %1536 = vmatpush1.bf16.msra.mxu0 %v1202
    %1537 = vmatprep.subr.bf16.mxu0 %v1211
    %1538 = vmatpush1.bf16.msra.mxu0 %v1210
    %1539 = vmatprep.subr.bf16.mxu0 %v1219
    %1540 = vmatpush1.bf16.msra.mxu0 %v1218
    %1541 = vmatprep.subr.bf16.mxu0 %v1227
    %1542 = vmatpush1.bf16.msra.mxu0 %v1226
    %1543 = vmatprep.subr.bf16.mxu0 %v1462
    %1544 = vmatpush1.bf16.msra.mxu0 %v1459
    %1545 = vmatprep.subr.bf16.mxu0 0
    %1546 = vmatpush1.bf16.msra.mxu0 0
    %1547 = vmatprep.subr.bf16.mxu0 0
    %1548 = vmatpush1.bf16.msra.mxu0 0
    %1549 = vmatprep.subr.bf16.mxu0 0
    %1550 = vmatpush1.bf16.msra.mxu0 0
    %1551 = vmatprep.subr.bf16.mxu0 0
    %1552 = vmatpush1.bf16.msra.mxu0 0
    %1553 = vmatprep.subr.bf16.mxu0 0
    %1554 = vmatpush1.bf16.msra.mxu0 0
    %1555 = vmatprep.mubr.bf16.mxu0 %v1452
    %1556 = vmatmul.mubr.bf16.gmra.mrb[0].mxu0 %v118
    %v1557 = vpop.f32.mrb[0].mxu0
    %v1558 = vadd.f32 %v1517, %v1557
    %v1559 = vpop.f32.mrb[0].mxu0
    %v1560 = vadd.f32 %v1519, %v1559
    %v1561 = vpop.f32.mrb[0].mxu0
    %v1562 = vpop.f32.mrb[0].mxu0
    %1563 = vdwg.mxu0
    %1564 = vmatprep.subr.bf16.mxu0 %v1029
    %1565 = vmatpush1.bf16.msra.mxu0 %v1028
    %1566 = vmatprep.subr.bf16.mxu0 %v1037
    %1567 = vmatpush1.bf16.msra.mxu0 %v1036
    %1568 = vmatprep.subr.bf16.mxu0 %v1045
    %1569 = vmatpush1.bf16.msra.mxu0 %v1044
    %1570 = vmatprep.subr.bf16.mxu0 %v1053
    %1571 = vmatpush1.bf16.msra.mxu0 %v1052
    %1572 = vmatprep.subr.bf16.mxu0 %v1061
    %1573 = vmatpush1.bf16.msra.mxu0 %v1060
    %1574 = vmatprep.subr.bf16.mxu0 %v1069
    %1575 = vmatpush1.bf16.msra.mxu0 %v1068
    %1576 = vmatprep.subr.bf16.mxu0 %v1077
    %1577 = vmatpush1.bf16.msra.mxu0 %v1076
    %1578 = vmatprep.subr.bf16.mxu0 %v1085
    %1579 = vmatpush1.bf16.msra.mxu0 %v1084
    %1580 = vmatprep.subr.bf16.mxu0 %v1093
    %1581 = vmatpush1.bf16.msra.mxu0 %v1092
    %1582 = vmatprep.subr.bf16.mxu0 %v1101
    %1583 = vmatpush1.bf16.msra.mxu0 %v1100
    %1584 = vmatprep.subr.bf16.mxu0 %v1109
    %1585 = vmatpush1.bf16.msra.mxu0 %v1108
    %1586 = vmatprep.subr.bf16.mxu0 %v1117
    %1587 = vmatpush1.bf16.msra.mxu0 %v1116
    %1588 = vmatprep.subr.bf16.mxu0 %v1125
    %1589 = vmatpush1.bf16.msra.mxu0 %v1124
    %1590 = vmatprep.subr.bf16.mxu0 %v1133
    %1591 = vmatpush1.bf16.msra.mxu0 %v1132
    %1592 = vmatprep.subr.bf16.mxu0 %v1141
    %1593 = vmatpush1.bf16.msra.mxu0 %v1140
    %1594 = vmatprep.subr.bf16.mxu0 %v1149
    %1595 = vmatpush1.bf16.msra.mxu0 %v1148
    %1596 = vmatprep.mubr.bf16.mxu0 %v117
    %1597 = vmatmul.mubr.bf16.gmra.mrb[0].mxu0 %v116
    %v1598 = vpop.f32.mrb[0].mxu0
    %v1599 = vadd.f32 %v349, %v1598
    %v1600 = vpop.f32.mrb[0].mxu0
    %v1601 = vadd.f32 %v353, %v1600
    %v1602 = vpop.f32.mrb[0].mxu0
    %v1603 = vpop.f32.mrb[0].mxu0
    %1604 = vdwg.mxu0
    %1605 = vmatprep.subr.bf16.mxu0 %v1157
    %1606 = vmatpush1.bf16.msra.mxu0 %v1156
    %1607 = vmatprep.subr.bf16.mxu0 %v1165
    %1608 = vmatpush1.bf16.msra.mxu0 %v1164
    %1609 = vmatprep.subr.bf16.mxu0 %v1173
    %1610 = vmatpush1.bf16.msra.mxu0 %v1172
    %1611 = vmatprep.subr.bf16.mxu0 %v1181
    %1612 = vmatpush1.bf16.msra.mxu0 %v1180
    %1613 = vmatprep.subr.bf16.mxu0 %v1189
    %1614 = vmatpush1.bf16.msra.mxu0 %v1188
    %1615 = vmatprep.subr.bf16.mxu0 %v1197
    %1616 = vmatpush1.bf16.msra.mxu0 %v1196
    %1617 = vmatprep.subr.bf16.mxu0 %v1205
    %1618 = vmatpush1.bf16.msra.mxu0 %v1204
    %1619 = vmatprep.subr.bf16.mxu0 %v1213
    %1620 = vmatpush1.bf16.msra.mxu0 %v1212
    %1621 = vmatprep.subr.bf16.mxu0 %v1221
    %1622 = vmatpush1.bf16.msra.mxu0 %v1220
    %1623 = vmatprep.subr.bf16.mxu0 %v1229
    %1624 = vmatpush1.bf16.msra.mxu0 %v1228
    %1625 = vmatprep.subr.bf16.mxu0 %v1468
    %1626 = vmatpush1.bf16.msra.mxu0 %v1465
    %1627 = vmatprep.subr.bf16.mxu0 0
    %1628 = vmatpush1.bf16.msra.mxu0 0
    %1629 = vmatprep.subr.bf16.mxu0 0
    %1630 = vmatpush1.bf16.msra.mxu0 0
    %1631 = vmatprep.subr.bf16.mxu0 0
    %1632 = vmatpush1.bf16.msra.mxu0 0
    %1633 = vmatprep.subr.bf16.mxu0 0
    %1634 = vmatpush1.bf16.msra.mxu0 0
    %1635 = vmatprep.subr.bf16.mxu0 0
    %1636 = vmatpush1.bf16.msra.mxu0 0
    %1637 = vmatprep.mubr.bf16.mxu0 %v1452
    %1638 = vmatmul.mubr.bf16.gmra.mrb[0].mxu0 %v118
    %v1639 = vpop.f32.mrb[0].mxu0
    %v1640 = vadd.f32 %v1599, %v1639
    %v1641 = vpop.f32.mrb[0].mxu0
    %v1642 = vadd.f32 %v1601, %v1641
    %v1643 = vpop.f32.mrb[0].mxu0
    %v1644 = vpop.f32.mrb[0].mxu0
    %1645 = vdwg.mxu0
    %1646 = vmatprep.subr.bf16.mxu0 %v1031
    %1647 = vmatpush1.bf16.msra.mxu0 %v1030
    %1648 = vmatprep.subr.bf16.mxu0 %v1039
    %1649 = vmatpush1.bf16.msra.mxu0 %v1038
    %1650 = vmatprep.subr.bf16.mxu0 %v1047
    %1651 = vmatpush1.bf16.msra.mxu0 %v1046
    %1652 = vmatprep.subr.bf16.mxu0 %v1055
    %1653 = vmatpush1.bf16.msra.mxu0 %v1054
    %1654 = vmatprep.subr.bf16.mxu0 %v1063
    %1655 = vmatpush1.bf16.msra.mxu0 %v1062
    %1656 = vmatprep.subr.bf16.mxu0 %v1071
    %1657 = vmatpush1.bf16.msra.mxu0 %v1070
    %1658 = vmatprep.subr.bf16.mxu0 %v1079
    %1659 = vmatpush1.bf16.msra.mxu0 %v1078
    %1660 = vmatprep.subr.bf16.mxu0 %v1087
    %1661 = vmatpush1.bf16.msra.mxu0 %v1086
    %1662 = vmatprep.subr.bf16.mxu0 %v1095
    %1663 = vmatpush1.bf16.msra.mxu0 %v1094
    %1664 = vmatprep.subr.bf16.mxu0 %v1103
    %1665 = vmatpush1.bf16.msra.mxu0 %v1102
    %1666 = vmatprep.subr.bf16.mxu0 %v1111
    %1667 = vmatpush1.bf16.msra.mxu0 %v1110
    %1668 = vmatprep.subr.bf16.mxu0 %v1119
    %1669 = vmatpush1.bf16.msra.mxu0 %v1118
    %1670 = vmatprep.subr.bf16.mxu0 %v1127
    %1671 = vmatpush1.bf16.msra.mxu0 %v1126
    %1672 = vmatprep.subr.bf16.mxu0 %v1135
    %1673 = vmatpush1.bf16.msra.mxu0 %v1134
    %1674 = vmatprep.subr.bf16.mxu0 %v1143
    %1675 = vmatpush1.bf16.msra.mxu0 %v1142
    %1676 = vmatprep.subr.bf16.mxu0 %v1151
    %1677 = vmatpush1.bf16.msra.mxu0 %v1150
    %1678 = vmatprep.mubr.bf16.mxu0 %v117
    %1679 = vmatmul.mubr.bf16.gmra.mrb[0].mxu0 %v116
    %v1680 = vpop.f32.mrb[0].mxu0
    %v1681 = vadd.f32 %v357, %v1680
    %v1682 = vpop.f32.mrb[0].mxu0
    %v1683 = vadd.f32 %v361, %v1682
    %v1684 = vpop.f32.mrb[0].mxu0
    %v1685 = vpop.f32.mrb[0].mxu0
    %1686 = vdwg.mxu0
    %1687 = vmatprep.subr.bf16.mxu0 %v1159
    %1688 = vmatpush1.bf16.msra.mxu0 %v1158
    %1689 = vmatprep.subr.bf16.mxu0 %v1167
    %1690 = vmatpush1.bf16.msra.mxu0 %v1166
    %1691 = vmatprep.subr.bf16.mxu0 %v1175
    %1692 = vmatpush1.bf16.msra.mxu0 %v1174
    %1693 = vmatprep.subr.bf16.mxu0 %v1183
    %1694 = vmatpush1.bf16.msra.mxu0 %v1182
    %1695 = vmatprep.subr.bf16.mxu0 %v1191
    %1696 = vmatpush1.bf16.msra.mxu0 %v1190
    %1697 = vmatprep.subr.bf16.mxu0 %v1199
    %1698 = vmatpush1.bf16.msra.mxu0 %v1198
    %1699 = vmatprep.subr.bf16.mxu0 %v1207
    %1700 = vmatpush1.bf16.msra.mxu0 %v1206
    %1701 = vmatprep.subr.bf16.mxu0 %v1215
    %1702 = vmatpush1.bf16.msra.mxu0 %v1214
    %1703 = vmatprep.subr.bf16.mxu0 %v1223
    %1704 = vmatpush1.bf16.msra.mxu0 %v1222
    %1705 = vmatprep.subr.bf16.mxu0 %v1231
    %1706 = vmatpush1.bf16.msra.mxu0 %v1230
    %1707 = vmatprep.subr.bf16.mxu0 %v1474
    %1708 = vmatpush1.bf16.msra.mxu0 %v1471
    %1709 = vmatprep.subr.bf16.mxu0 0
    %1710 = vmatpush1.bf16.msra.mxu0 0
    %1711 = vmatprep.subr.bf16.mxu0 0
    %1712 = vmatpush1.bf16.msra.mxu0 0
    %1713 = vmatprep.subr.bf16.mxu0 0
    %1714 = vmatpush1.bf16.msra.mxu0 0
    %1715 = vmatprep.subr.bf16.mxu0 0
    %1716 = vmatpush1.bf16.msra.mxu0 0
    %1717 = vmatprep.subr.bf16.mxu0 0
    %1718 = vmatpush1.bf16.msra.mxu0 0
    %1719 = vmatprep.mubr.bf16.mxu0 %v1452
    %1720 = vmatmul.mubr.bf16.gmra.mrb[0].mxu0 %v118
    %v1721 = vpop.f32.mrb[0].mxu0
    %v1722 = vadd.f32 %v1681, %v1721
    %v1723 = vpop.f32.mrb[0].mxu0
    %v1724 = vadd.f32 %v1683, %v1723
    %v1725 = vpop.f32.mrb[0].mxu0
    %v1726 = vpop.f32.mrb[0].mxu0
    %1727 = vdwg.mxu0
    %1728 = vmatprep.subr.bf16.mxu0 %v1033
    %1729 = vmatpush1.bf16.msra.mxu0 %v1032
    %1730 = vmatprep.subr.bf16.mxu0 %v1041
    %1731 = vmatpush1.bf16.msra.mxu0 %v1040
    %1732 = vmatprep.subr.bf16.mxu0 %v1049
    %1733 = vmatpush1.bf16.msra.mxu0 %v1048
    %1734 = vmatprep.subr.bf16.mxu0 %v1057
    %1735 = vmatpush1.bf16.msra.mxu0 %v1056
    %1736 = vmatprep.subr.bf16.mxu0 %v1065
    %1737 = vmatpush1.bf16.msra.mxu0 %v1064
    %1738 = vmatprep.subr.bf16.mxu0 %v1073
    %1739 = vmatpush1.bf16.msra.mxu0 %v1072
    %1740 = vmatprep.subr.bf16.mxu0 %v1081
    %1741 = vmatpush1.bf16.msra.mxu0 %v1080
    %1742 = vmatprep.subr.bf16.mxu0 %v1089
    %1743 = vmatpush1.bf16.msra.mxu0 %v1088
    %1744 = vmatprep.subr.bf16.mxu0 %v1097
    %1745 = vmatpush1.bf16.msra.mxu0 %v1096
    %1746 = vmatprep.subr.bf16.mxu0 %v1105
    %1747 = vmatpush1.bf16.msra.mxu0 %v1104
    %1748 = vmatprep.subr.bf16.mxu0 %v1113
    %1749 = vmatpush1.bf16.msra.mxu0 %v1112
    %1750 = vmatprep.subr.bf16.mxu0 %v1121
    %1751 = vmatpush1.bf16.msra.mxu0 %v1120
    %1752 = vmatprep.subr.bf16.mxu0 %v1129
    %1753 = vmatpush1.bf16.msra.mxu0 %v1128
    %1754 = vmatprep.subr.bf16.mxu0 %v1137
    %1755 = vmatpush1.bf16.msra.mxu0 %v1136
    %1756 = vmatprep.subr.bf16.mxu0 %v1145
    %1757 = vmatpush1.bf16.msra.mxu0 %v1144
    %1758 = vmatprep.subr.bf16.mxu0 %v1153
    %1759 = vmatpush1.bf16.msra.mxu0 %v1152
    %1760 = vmatprep.mubr.bf16.mxu0 %v117
    %1761 = vmatmul.mubr.bf16.gmra.mrb[0].mxu0 %v116
    %v1762 = vpop.f32.mrb[0].mxu0
    %v1763 = vadd.f32 %v365, %v1762
    %v1764 = vpop.f32.mrb[0].mxu0
    %v1765 = vadd.f32 %v369, %v1764
    %v1766 = vpop.f32.mrb[0].mxu0
    %v1767 = vpop.f32.mrb[0].mxu0
    %1768 = vdwg.mxu0
    %1769 = vmatprep.subr.bf16.mxu0 %v1161
    %1770 = vmatpush1.bf16.msra.mxu0 %v1160
    %1771 = vmatprep.subr.bf16.mxu0 %v1169
    %1772 = vmatpush1.bf16.msra.mxu0 %v1168
    %1773 = vmatprep.subr.bf16.mxu0 %v1177
    %1774 = vmatpush1.bf16.msra.mxu0 %v1176
    %1775 = vmatprep.subr.bf16.mxu0 %v1185
    %1776 = vmatpush1.bf16.msra.mxu0 %v1184
    %1777 = vmatprep.subr.bf16.mxu0 %v1193
    %1778 = vmatpush1.bf16.msra.mxu0 %v1192
    %1779 = vmatprep.subr.bf16.mxu0 %v1201
    %1780 = vmatpush1.bf16.msra.mxu0 %v1200
    %1781 = vmatprep.subr.bf16.mxu0 %v1209
    %1782 = vmatpush1.bf16.msra.mxu0 %v1208
    %1783 = vmatprep.subr.bf16.mxu0 %v1217
    %1784 = vmatpush1.bf16.msra.mxu0 %v1216
    %1785 = vmatprep.subr.bf16.mxu0 %v1225
    %1786 = vmatpush1.bf16.msra.mxu0 %v1224
    %1787 = vmatprep.subr.bf16.mxu0 %v1233
    %1788 = vmatpush1.bf16.msra.mxu0 %v1232
    %1789 = vmatprep.subr.bf16.mxu0 %v1480
    %1790 = vmatpush1.bf16.msra.mxu0 %v1477
    %1791 = vmatprep.subr.bf16.mxu0 0
    %1792 = vmatpush1.bf16.msra.mxu0 0
    %1793 = vmatprep.subr.bf16.mxu0 0
    %1794 = vmatpush1.bf16.msra.mxu0 0
    %1795 = vmatprep.subr.bf16.mxu0 0
    %1796 = vmatpush1.bf16.msra.mxu0 0
    %1797 = vmatprep.subr.bf16.mxu0 0
    %1798 = vmatpush1.bf16.msra.mxu0 0
    %1799 = vmatprep.subr.bf16.mxu0 0
    %1800 = vmatpush1.bf16.msra.mxu0 0
    %1801 = vmatprep.mubr.bf16.mxu0 %v1452
    %1802 = vmatmul.mubr.bf16.gmra.mrb[0].mxu0 %v118
    %v1803 = vpop.f32.mrb[0].mxu0
    %v1804 = vadd.f32 %v1763, %v1803
    %v1805 = vpop.f32.mrb[0].mxu0
    %v1806 = vadd.f32 %v1765, %v1805
    %v1807 = vpop.f32.mrb[0].mxu0
    %v1808 = vpop.f32.mrb[0].mxu0
    %1809 = vdwg.mxu0
    %v1810 = vxor.u32 %v1558, 2147483648
    %v1811 = vxor.u32 %v1560, 2147483648
    %v1812 = vxor.u32 %v1640, 2147483648
    %v1813 = vxor.u32 %v1642, 2147483648
    %v1814 = vxor.u32 %v1722, 2147483648
    %v1815 = vxor.u32 %v1724, 2147483648
    %v1816 = vxor.u32 %v1804, 2147483648
    %v1817 = vxor.u32 %v1806, 2147483648
    %v1818 = vmul.f32 %v1810, 1.442695
    %v1819 = vpow.pop %v1818
    %v1820 = vmul.f32 %v1811, 1.442695
    %v1821 = vpow.pop %v1820
    %v1822 = vmul.f32 %v1812, 1.442695
    %v1823 = vpow.pop %v1822
    %v1824 = vmul.f32 %v1813, 1.442695
    %v1825 = vpow.pop %v1824
    %v1826 = vmul.f32 %v1814, 1.442695
    %v1827 = vpow.pop %v1826
    %v1828 = vmul.f32 %v1815, 1.442695
    %v1829 = vpow.pop %v1828
    %v1830 = vmul.f32 %v1816, 1.442695
    %v1831 = vpow.pop %v1830
    %v1832 = vmul.f32 %v1817, 1.442695
    %v1833 = vpow.pop %v1832
    %v1834 = vadd.f32 %v1819, 1.0
    %v1835 = vadd.f32 %v1821, 1.0
    %v1836 = vadd.f32 %v1823, 1.0
    %v1837 = vadd.f32 %v1825, 1.0
    %v1838 = vadd.f32 %v1827, 1.0
    %v1839 = vadd.f32 %v1829, 1.0
    %v1840 = vadd.f32 %v1831, 1.0
    %v1841 = vadd.f32 %v1833, 1.0
    %v1842 = vrcp.pop %v1834
    %v1843 = vmul.f32 1.0, %v1842
    %v1844 = vrcp.pop %v1835
    %v1845 = vmul.f32 1.0, %v1844
    %v1846 = vrcp.pop %v1836
    %v1847 = vmul.f32 1.0, %v1846
    %v1848 = vrcp.pop %v1837
    %v1849 = vmul.f32 1.0, %v1848
    %v1850 = vrcp.pop %v1838
    %v1851 = vmul.f32 1.0, %v1850
    %v1852 = vrcp.pop %v1839
    %v1853 = vmul.f32 1.0, %v1852
    %v1854 = vrcp.pop %v1840
    %v1855 = vmul.f32 1.0, %v1854
    %v1856 = vrcp.pop %v1841
    %v1857 = vmul.f32 1.0, %v1856
    %v1858 = vpack.c.bf16 %v1843, %v1843
    %v1859 = vpack.c.bf16 %v1845, %v1845
    %v1860 = vpack.c.bf16 %v1847, %v1847
    %v1861 = vpack.c.bf16 %v1849, %v1849
    %v1862 = vpack.c.bf16 %v1851, %v1851
    %v1863 = vpack.c.bf16 %v1853, %v1853
    %v1864 = vpack.c.bf16 %v1855, %v1855
    %v1865 = vpack.c.bf16 %v1857, %v1857
    %v1866 = vld [vmem:[#allocation8] sm:$0xff]
    %v1867 = vld [vmem:[#allocation8 + $0x8] sm:$0xff]
    %v1868 = vld [vmem:[#allocation8 + $0x10] sm:$0xff]
    %v1869 = vld [vmem:[#allocation8 + $0x18] sm:$0xff]
    %v1870 = vld [vmem:[#allocation8 + $0x20] sm:$0xff]
    %v1871 = vld [vmem:[#allocation8 + $0x28] sm:$0xff]
    %v1872 = vld [vmem:[#allocation8 + $0x30] sm:$0xff]
    %v1873 = vld [vmem:[#allocation8 + $0x38] sm:$0xff]
    %v1874 = vld [vmem:[#allocation8 + $0x40] sm:$0xff]
    %v1875 = vld [vmem:[#allocation8 + $0x48] sm:$0xff]
    %v1876 = vld [vmem:[#allocation8 + $0x50] sm:$0xff]
    %v1877 = vld [vmem:[#allocation8 + $0x58] sm:$0xff]
    %v1878 = vld [vmem:[#allocation8 + $0x60] sm:$0xff]
    %v1879 = vld [vmem:[#allocation8 + $0x68] sm:$0xff]
    %v1880 = vld [vmem:[#allocation8 + $0x70] sm:$0xff]
    %v1881 = vld [vmem:[#allocation8 + $0x78] sm:$0xff]
    %v1882 = vld [vmem:[#allocation8 + $0x80] sm:$0xff]
    %v1883 = vld [vmem:[#allocation8 + $0x88] sm:$0xff]
    %v1884 = vld [vmem:[#allocation8 + $0x90] sm:$0xff]
    %v1885 = vld [vmem:[#allocation8 + $0x98] sm:$0xff]
    %v1886 = vld [vmem:[#allocation8 + $0xa0] sm:$0xff]
    %v1887 = vld [vmem:[#allocation8 + $0xa8] sm:$0xff]
    %v1888 = vld [vmem:[#allocation8 + $0xb0] sm:$0xff]
    %v1889 = vld [vmem:[#allocation8 + $0xb8] sm:$0xff]
    %v1890 = vld [vmem:[#allocation8 + $0xc0] sm:$0xff]
    %v1891 = vld [vmem:[#allocation8 + $0xc8] sm:$0xff]
    %v1892 = vld [vmem:[#allocation8 + $0xd0] sm:$0xff]
    %v1893 = vld [vmem:[#allocation8 + $0xd8] sm:$0xff]
    %v1894 = vld [vmem:[#allocation8 + $0xe0] sm:$0xff]
    %v1895 = vld [vmem:[#allocation8 + $0xe8] sm:$0xff]
    %v1896 = vld [vmem:[#allocation8 + $0xf0] sm:$0xff]
    %v1897 = vld [vmem:[#allocation8 + $0xf8] sm:$0xff]
    %v1898 = vld [vmem:[#allocation8 + $0x100] sm:$0xff]
    %v1899 = vld [vmem:[#allocation8 + $0x108] sm:$0xff]
    %v1900 = vld [vmem:[#allocation8 + $0x110] sm:$0xff]
    %v1901 = vld [vmem:[#allocation8 + $0x118] sm:$0xff]
    %v1902 = vld [vmem:[#allocation8 + $0x120] sm:$0xff]
    %v1903 = vld [vmem:[#allocation8 + $0x128] sm:$0xff]
    %v1904 = vld [vmem:[#allocation8 + $0x130] sm:$0xff]
    %v1905 = vld [vmem:[#allocation8 + $0x138] sm:$0xff]
    %v1906 = vld [vmem:[#allocation8 + $0x140] sm:$0xff]
    %v1907 = vld [vmem:[#allocation8 + $0x148] sm:$0xff]
    %v1908 = vld [vmem:[#allocation8 + $0x150] sm:$0xff]
    %v1909 = vld [vmem:[#allocation8 + $0x158] sm:$0xff]
    %v1910 = vld [vmem:[#allocation8 + $0x160] sm:$0xff]
    %v1911 = vld [vmem:[#allocation8 + $0x168] sm:$0xff]
    %v1912 = vld [vmem:[#allocation8 + $0x170] sm:$0xff]
    %v1913 = vld [vmem:[#allocation8 + $0x178] sm:$0xff]
    %v1914 = vld [vmem:[#allocation8 + $0x180] sm:$0xff]
    %v1915 = vld [vmem:[#allocation8 + $0x188] sm:$0xff]
    %v1916 = vld [vmem:[#allocation8 + $0x190] sm:$0xff]
    %v1917 = vld [vmem:[#allocation8 + $0x198] sm:$0xff]
    %v1918 = vld [vmem:[#allocation8 + $0x1a0] sm:$0xff]
    %v1919 = vld [vmem:[#allocation8 + $0x1a8] sm:$0xff]
    %v1920 = vld [vmem:[#allocation8 + $0x1b0] sm:$0xff]
    %v1921 = vld [vmem:[#allocation8 + $0x1b8] sm:$0xff]
    %v1922 = vld [vmem:[#allocation8 + $0x1c0] sm:$0xff]
    %v1923 = vld [vmem:[#allocation8 + $0x1c8] sm:$0xff]
    %v1924 = vld [vmem:[#allocation8 + $0x1d0] sm:$0xff]
    %v1925 = vld [vmem:[#allocation8 + $0x1d8] sm:$0xff]
    %v1926 = vld [vmem:[#allocation8 + $0x1e0] sm:$0xff]
    %v1927 = vld [vmem:[#allocation8 + $0x1e8] sm:$0xff]
    %v1928 = vld [vmem:[#allocation8 + $0x1f0] sm:$0xff]
    %v1929 = vld [vmem:[#allocation8 + $0x1f8] sm:$0xff]
    %v1930 = vld [vmem:[#allocation8 + $0x200] sm:$0xff]
    %v1931 = vld [vmem:[#allocation8 + $0x208] sm:$0xff]
    %v1932 = vld [vmem:[#allocation8 + $0x210] sm:$0xff]
    %v1933 = vld [vmem:[#allocation8 + $0x218] sm:$0xff]
    %v1934 = vld [vmem:[#allocation8 + $0x220] sm:$0xff]
    %v1935 = vld [vmem:[#allocation8 + $0x228] sm:$0xff]
    %v1936 = vld [vmem:[#allocation8 + $0x230] sm:$0xff]
    %v1937 = vld [vmem:[#allocation8 + $0x238] sm:$0xff]
    %v1938 = vld [vmem:[#allocation8 + $0x240] sm:$0xff]
    %v1939 = vld [vmem:[#allocation8 + $0x248] sm:$0xff]
    %v1940 = vld [vmem:[#allocation8 + $0x250] sm:$0xff]
    %v1941 = vld [vmem:[#allocation8 + $0x258] sm:$0xff]
    %v1942 = vld [vmem:[#allocation8 + $0x260] sm:$0xff]
    %v1943 = vld [vmem:[#allocation8 + $0x268] sm:$0xff]
    %v1944 = vld [vmem:[#allocation8 + $0x270] sm:$0xff]
    %v1945 = vld [vmem:[#allocation8 + $0x278] sm:$0xff]
    %v1946 = vld [vmem:[#allocation8 + $0x280] sm:$0xff]
    %v1947 = vld [vmem:[#allocation8 + $0x288] sm:$0xff]
    %v1948 = vld [vmem:[#allocation8 + $0x290] sm:$0xff]
    %v1949 = vld [vmem:[#allocation8 + $0x298] sm:$0xff]
    %v1950 = vld [vmem:[#allocation8 + $0x2a0] sm:$0xff]
    %v1951 = vld [vmem:[#allocation8 + $0x2a8] sm:$0xff]
    %v1952 = vld [vmem:[#allocation8 + $0x2b0] sm:$0xff]
    %v1953 = vld [vmem:[#allocation8 + $0x2b8] sm:$0xff]
    %v1954 = vld [vmem:[#allocation8 + $0x2c0] sm:$0xff]
    %v1955 = vld [vmem:[#allocation8 + $0x2c8] sm:$0xff]
    %v1956 = vld [vmem:[#allocation8 + $0x2d0] sm:$0xff]
    %v1957 = vld [vmem:[#allocation8 + $0x2d8] sm:$0xff]
    %v1958 = vld [vmem:[#allocation8 + $0x2e0] sm:$0xff]
    %v1959 = vld [vmem:[#allocation8 + $0x2e8] sm:$0xff]
    %v1960 = vld [vmem:[#allocation8 + $0x2f0] sm:$0xff]
    %v1961 = vld [vmem:[#allocation8 + $0x2f8] sm:$0xff]
    %v1962 = vld [vmem:[#allocation8 + $0x300] sm:$0xff]
    %v1963 = vld [vmem:[#allocation8 + $0x308] sm:$0xff]
    %v1964 = vld [vmem:[#allocation8 + $0x310] sm:$0xff]
    %v1965 = vld [vmem:[#allocation8 + $0x318] sm:$0xff]
    %v1966 = vld [vmem:[#allocation8 + $0x320] sm:$0xff]
    %v1967 = vld [vmem:[#allocation8 + $0x328] sm:$0xff]
    %v1968 = vld [vmem:[#allocation8 + $0x330] sm:$0xff]
    %v1969 = vld [vmem:[#allocation8 + $0x338] sm:$0xff]
    %v1970 = vld [vmem:[#allocation8 + $0x340] sm:$0xff]
    %v1971 = vld [vmem:[#allocation8 + $0x348] sm:$0xff]
    %v1972 = vld [vmem:[#allocation8 + $0x350] sm:$0xff]
    %v1973 = vld [vmem:[#allocation8 + $0x358] sm:$0xff]
    %v1974 = vld [vmem:[#allocation8 + $0x360] sm:$0xff]
    %v1975 = vld [vmem:[#allocation8 + $0x368] sm:$0xff]
    %v1976 = vld [vmem:[#allocation8 + $0x370] sm:$0xff]
    %v1977 = vld [vmem:[#allocation8 + $0x378] sm:$0xff]
    %v1978 = vld [vmem:[#allocation8 + $0x380] sm:$0xff]
    %v1979 = vld [vmem:[#allocation8 + $0x388] sm:$0xff]
    %v1980 = vld [vmem:[#allocation8 + $0x390] sm:$0xff]
    %v1981 = vld [vmem:[#allocation8 + $0x398] sm:$0xff]
    %v1982 = vld [vmem:[#allocation8 + $0x3a0] sm:$0xff]
    %v1983 = vld [vmem:[#allocation8 + $0x3a8] sm:$0xff]
    %v1984 = vld [vmem:[#allocation8 + $0x3b0] sm:$0xff]
    %v1985 = vld [vmem:[#allocation8 + $0x3b8] sm:$0xff]
    %v1986 = vld [vmem:[#allocation8 + $0x3c0] sm:$0xff]
    %v1987 = vld [vmem:[#allocation8 + $0x3c8] sm:$0xff]
    %v1988 = vld [vmem:[#allocation8 + $0x3d0] sm:$0xff]
    %v1989 = vld [vmem:[#allocation8 + $0x3d8] sm:$0xff]
    %v1990 = vld [vmem:[#allocation8 + $0x3e0] sm:$0xff]
    %v1991 = vld [vmem:[#allocation8 + $0x3e8] sm:$0xff]
    %v1992 = vld [vmem:[#allocation8 + $0x3f0] sm:$0xff]
    %v1993 = vld [vmem:[#allocation8 + $0x3f8] sm:$0xff]
    %v1994 = vld [vmem:[#allocation8 + $0x400] sm:$0xff]
    %v1995 = vld [vmem:[#allocation8 + $0x408] sm:$0xff]
    %v1996 = vld [vmem:[#allocation8 + $0x410] sm:$0xff]
    %v1997 = vld [vmem:[#allocation8 + $0x418] sm:$0xff]
    %v1998 = vld [vmem:[#allocation8 + $0x420] sm:$0xff]
    %v1999 = vld [vmem:[#allocation8 + $0x428] sm:$0xff]
    %v2000 = vld [vmem:[#allocation8 + $0x430] sm:$0xff]
    %v2001 = vld [vmem:[#allocation8 + $0x438] sm:$0xff]
    %v2002 = vld [vmem:[#allocation8 + $0x440] sm:$0xff]
    %v2003 = vld [vmem:[#allocation8 + $0x448] sm:$0xff]
    %v2004 = vld [vmem:[#allocation8 + $0x450] sm:$0xff]
    %v2005 = vld [vmem:[#allocation8 + $0x458] sm:$0xff]
    %v2006 = vld [vmem:[#allocation8 + $0x460] sm:$0xff]
    %v2007 = vld [vmem:[#allocation8 + $0x468] sm:$0xff]
    %v2008 = vld [vmem:[#allocation8 + $0x470] sm:$0xff]
    %v2009 = vld [vmem:[#allocation8 + $0x478] sm:$0xff]
    %v2010 = vld [vmem:[#allocation8 + $0x480] sm:$0xff]
    %v2011 = vld [vmem:[#allocation8 + $0x488] sm:$0xff]
    %v2012 = vld [vmem:[#allocation8 + $0x490] sm:$0xff]
    %v2013 = vld [vmem:[#allocation8 + $0x498] sm:$0xff]
    %v2014 = vld [vmem:[#allocation8 + $0x4a0] sm:$0xff]
    %v2015 = vld [vmem:[#allocation8 + $0x4a8] sm:$0xff]
    %v2016 = vld [vmem:[#allocation8 + $0x4b0] sm:$0xff]
    %v2017 = vld [vmem:[#allocation8 + $0x4b8] sm:$0xff]
    %v2018 = vld [vmem:[#allocation8 + $0x4c0] sm:$0xff]
    %v2019 = vld [vmem:[#allocation8 + $0x4c8] sm:$0xff]
    %v2020 = vld [vmem:[#allocation8 + $0x4d0] sm:$0xff]
    %v2021 = vld [vmem:[#allocation8 + $0x4d8] sm:$0xff]
    %v2022 = vld [vmem:[#allocation8 + $0x4e0] sm:$0xff]
    %v2023 = vld [vmem:[#allocation8 + $0x4e8] sm:$0xff]
    %v2024 = vld [vmem:[#allocation8 + $0x4f0] sm:$0xff]
    %v2025 = vld [vmem:[#allocation8 + $0x4f8] sm:$0xff]
    %v2026 = vld [vmem:[#allocation8 + $0x500] sm:$0xff]
    %v2027 = vld [vmem:[#allocation8 + $0x508] sm:$0xff]
    %v2028 = vld [vmem:[#allocation8 + $0x510] sm:$0xff]
    %v2029 = vld [vmem:[#allocation8 + $0x518] sm:$0xff]
    %v2030 = vld [vmem:[#allocation8 + $0x520] sm:$0xff]
    %v2031 = vld [vmem:[#allocation8 + $0x528] sm:$0xff]
    %v2032 = vld [vmem:[#allocation8 + $0x530] sm:$0xff]
    %v2033 = vld [vmem:[#allocation8 + $0x538] sm:$0xff]
    %v2034 = vld [vmem:[#allocation8 + $0x540] sm:$0xff]
    %v2035 = vld [vmem:[#allocation8 + $0x548] sm:$0xff]
    %v2036 = vld [vmem:[#allocation8 + $0x550] sm:$0xff]
    %v2037 = vld [vmem:[#allocation8 + $0x558] sm:$0xff]
    %v2038 = vld [vmem:[#allocation8 + $0x560] sm:$0xff]
    %v2039 = vld [vmem:[#allocation8 + $0x568] sm:$0xff]
    %v2040 = vld [vmem:[#allocation8 + $0x570] sm:$0xff]
    %v2041 = vld [vmem:[#allocation8 + $0x578] sm:$0xff]
    %v2042 = vld [vmem:[#allocation8 + $0x580] sm:$0xff]
    %v2043 = vld [vmem:[#allocation8 + $0x588] sm:$0xff]
    %v2044 = vld [vmem:[#allocation8 + $0x590] sm:$0xff]
    %v2045 = vld [vmem:[#allocation8 + $0x598] sm:$0xff]
    %v2046 = vld [vmem:[#allocation8 + $0x5a0] sm:$0xff]
    %v2047 = vld [vmem:[#allocation8 + $0x5a8] sm:$0xff]
    %v2048 = vld [vmem:[#allocation8 + $0x5b0] sm:$0xff]
    %v2049 = vld [vmem:[#allocation8 + $0x5b8] sm:$0xff]
    %v2050 = vld [vmem:[#allocation8 + $0x5c0] sm:$0xff]
    %v2051 = vld [vmem:[#allocation8 + $0x5c8] sm:$0xff]
    %v2052 = vld [vmem:[#allocation8 + $0x5d0] sm:$0xff]
    %v2053 = vld [vmem:[#allocation8 + $0x5d8] sm:$0xff]
    %v2054 = vld [vmem:[#allocation8 + $0x5e0] sm:$0xff]
    %v2055 = vld [vmem:[#allocation8 + $0x5e8] sm:$0xff]
    %v2056 = vld [vmem:[#allocation8 + $0x5f0] sm:$0xff]
    %v2057 = vld [vmem:[#allocation8 + $0x5f8] sm:$0xff]
    %v2058 = vld [vmem:[#allocation8 + $0x600] sm:$0xff]
    %v2059 = vld [vmem:[#allocation8 + $0x608] sm:$0xff]
    %v2060 = vld [vmem:[#allocation8 + $0x610] sm:$0xff]
    %v2061 = vld [vmem:[#allocation8 + $0x618] sm:$0xff]
    %v2062 = vld [vmem:[#allocation8 + $0x620] sm:$0xff]
    %v2063 = vld [vmem:[#allocation8 + $0x628] sm:$0xff]
    %v2064 = vld [vmem:[#allocation8 + $0x630] sm:$0xff]
    %v2065 = vld [vmem:[#allocation8 + $0x638] sm:$0xff]
    %v2066 = vld [vmem:[#allocation8 + $0x640] sm:$0xff]
    %v2067 = vld [vmem:[#allocation8 + $0x648] sm:$0xff]
    %v2068 = vld [vmem:[#allocation8 + $0x650] sm:$0xff]
    %v2069 = vld [vmem:[#allocation8 + $0x658] sm:$0xff]
    %v2070 = vld [vmem:[#allocation8 + $0x660] sm:$0xff]
    %v2071 = vld [vmem:[#allocation8 + $0x668] sm:$0xff]
    %v2072 = vld [vmem:[#allocation8 + $0x670] sm:$0xff]
    %v2073 = vld [vmem:[#allocation8 + $0x678] sm:$0xff]
    %v2074 = vld [vmem:[#allocation8 + $0x680] sm:$0xff]
    %v2075 = vld [vmem:[#allocation8 + $0x688] sm:$0xff]
    %v2076 = vld [vmem:[#allocation8 + $0x690] sm:$0xff]
    %v2077 = vld [vmem:[#allocation8 + $0x698] sm:$0xff]
    %v2078 = vld [vmem:[#allocation8 + $0x6a0] sm:$0xff]
    %v2079 = vld [vmem:[#allocation8 + $0x6a8] sm:$0xff]
    %v2080 = vld [vmem:[#allocation8 + $0x6b0] sm:$0xff]
    %v2081 = vld [vmem:[#allocation8 + $0x6b8] sm:$0xff]
    %v2082 = vld [vmem:[#allocation8 + $0x6c0] sm:$0xff]
    %v2083 = vld [vmem:[#allocation8 + $0x6c8] sm:$0xff]
    %v2084 = vld [vmem:[#allocation8 + $0x6d0] sm:$0xff]
    %v2085 = vld [vmem:[#allocation8 + $0x6d8] sm:$0xff]
    %v2086 = vld [vmem:[#allocation8 + $0x6e0] sm:$0xff]
    %v2087 = vld [vmem:[#allocation8 + $0x6e8] sm:$0xff]
    %v2088 = vld [vmem:[#allocation8 + $0x6f0] sm:$0xff]
    %v2089 = vld [vmem:[#allocation8 + $0x6f8] sm:$0xff]
    %v2090 = vld [vmem:[#allocation8 + $0x700] sm:$0xff]
    %v2091 = vld [vmem:[#allocation8 + $0x708] sm:$0xff]
    %v2092 = vld [vmem:[#allocation8 + $0x710] sm:$0xff]
    %v2093 = vld [vmem:[#allocation8 + $0x718] sm:$0xff]
    %v2094 = vld [vmem:[#allocation8 + $0x720] sm:$0xff]
    %v2095 = vld [vmem:[#allocation8 + $0x728] sm:$0xff]
    %v2096 = vld [vmem:[#allocation8 + $0x730] sm:$0xff]
    %v2097 = vld [vmem:[#allocation8 + $0x738] sm:$0xff]
    %v2098 = vld [vmem:[#allocation8 + $0x740] sm:$0xff]
    %v2099 = vld [vmem:[#allocation8 + $0x748] sm:$0xff]
    %v2100 = vld [vmem:[#allocation8 + $0x750] sm:$0xff]
    %v2101 = vld [vmem:[#allocation8 + $0x758] sm:$0xff]
    %v2102 = vld [vmem:[#allocation8 + $0x760] sm:$0xff]
    %v2103 = vld [vmem:[#allocation8 + $0x768] sm:$0xff]
    %v2104 = vld [vmem:[#allocation8 + $0x770] sm:$0xff]
    %v2105 = vld [vmem:[#allocation8 + $0x778] sm:$0xff]
    %v2106 = vld [vmem:[#allocation8 + $0x780] sm:$0xff]
    %v2107 = vld [vmem:[#allocation8 + $0x788] sm:$0xff]
    %v2108 = vld [vmem:[#allocation8 + $0x790] sm:$0xff]
    %v2109 = vld [vmem:[#allocation8 + $0x798] sm:$0xff]
    %v2110 = vld [vmem:[#allocation8 + $0x7a0] sm:$0xff]
    %v2111 = vld [vmem:[#allocation8 + $0x7a8] sm:$0xff]
    %v2112 = vld [vmem:[#allocation8 + $0x7b0] sm:$0xff]
    %v2113 = vld [vmem:[#allocation8 + $0x7b8] sm:$0xff]
    %v2114 = vld [vmem:[#allocation8 + $0x7c0] sm:$0xff]
    %v2115 = vld [vmem:[#allocation8 + $0x7c8] sm:$0xff]
    %v2116 = vld [vmem:[#allocation8 + $0x7d0] sm:$0xff]
    %v2117 = vld [vmem:[#allocation8 + $0x7d8] sm:$0xff]
    %v2118 = vld [vmem:[#allocation8 + $0x7e0] sm:$0xff]
    %v2119 = vld [vmem:[#allocation8 + $0x7e8] sm:$0xff]
    %v2120 = vld [vmem:[#allocation8 + $0x7f0] sm:$0xff]
    %v2121 = vld [vmem:[#allocation8 + $0x7f8] sm:$0xff]
    %v2122 = vld [vmem:[%s4] sm:$0xf]
    %v2124 = vlaneseq
    %v2125 = vshrl.u32 %v2124, 7
    %v2126 = vsub.s32 0, %v2125
    %v2127 = vrot.slane %v2122, %v2126
    %v2128 = vlaneseq
    %v2129 = vshrl.u32 %v2128, 7
    %v2130 = vsub.s32 1, %v2129
    %v2131 = vrot.slane %v2122, %v2130
    %v2132 = vlaneseq
    %v2133 = vshrl.u32 %v2132, 7
    %v2134 = vsub.s32 2, %v2133
    %v2135 = vrot.slane %v2122, %v2134
    %v2136 = vlaneseq
    %v2137 = vshrl.u32 %v2136, 7
    %v2138 = vsub.s32 3, %v2137
    %v2139 = vrot.slane %v2122, %v2138
    %v2400 = vunpack.c.l.b16 %v1866
    %v2401 = vunpack.c.h.b16 %v1866
    %v2402 = vunpack.c.l.b16 %v1867
    %v2403 = vunpack.c.h.b16 %v1867
    %v2404 = vunpack.c.l.b16 %v1868
    %v2405 = vunpack.c.h.b16 %v1868
    %v2406 = vunpack.c.l.b16 %v1869
    %v2407 = vunpack.c.h.b16 %v1869
    %v2408 = vunpack.c.l.b16 %v1870
    %v2409 = vunpack.c.h.b16 %v1870
    %v2410 = vunpack.c.l.b16 %v1871
    %v2411 = vunpack.c.h.b16 %v1871
    %v2412 = vunpack.c.l.b16 %v1872
    %v2413 = vunpack.c.h.b16 %v1872
    %v2414 = vunpack.c.l.b16 %v1873
    %v2415 = vunpack.c.h.b16 %v1873
    %v2416 = vunpack.c.l.b16 %v1874
    %v2417 = vunpack.c.h.b16 %v1874
    %v2418 = vunpack.c.l.b16 %v1875
    %v2419 = vunpack.c.h.b16 %v1875
    %v2420 = vunpack.c.l.b16 %v1876
    %v2421 = vunpack.c.h.b16 %v1876
    %v2422 = vunpack.c.l.b16 %v1877
    %v2423 = vunpack.c.h.b16 %v1877
    %v2424 = vunpack.c.l.b16 %v1878
    %v2425 = vunpack.c.h.b16 %v1878
    %v2426 = vunpack.c.l.b16 %v1879
    %v2427 = vunpack.c.h.b16 %v1879
    %v2428 = vunpack.c.l.b16 %v1880
    %v2429 = vunpack.c.h.b16 %v1880
    %v2430 = vunpack.c.l.b16 %v1881
    %v2431 = vunpack.c.h.b16 %v1881
    %v2432 = vunpack.c.l.b16 %v1882
    %v2433 = vunpack.c.h.b16 %v1882
    %v2434 = vunpack.c.l.b16 %v1883
    %v2435 = vunpack.c.h.b16 %v1883
    %v2436 = vunpack.c.l.b16 %v1884
    %v2437 = vunpack.c.h.b16 %v1884
    %v2438 = vunpack.c.l.b16 %v1885
    %v2439 = vunpack.c.h.b16 %v1885
    %v2440 = vunpack.c.l.b16 %v1886
    %v2441 = vunpack.c.h.b16 %v1886
    %v2442 = vunpack.c.l.b16 %v1887
    %v2443 = vunpack.c.h.b16 %v1887
    %v2444 = vunpack.c.l.b16 %v1888
    %v2445 = vunpack.c.h.b16 %v1888
    %v2446 = vunpack.c.l.b16 %v1889
    %v2447 = vunpack.c.h.b16 %v1889
    %v2448 = vunpack.c.l.b16 %v1890
    %v2449 = vunpack.c.h.b16 %v1890
    %v2450 = vunpack.c.l.b16 %v1891
    %v2451 = vunpack.c.h.b16 %v1891
    %v2452 = vunpack.c.l.b16 %v1892
    %v2453 = vunpack.c.h.b16 %v1892
    %v2454 = vunpack.c.l.b16 %v1893
    %v2455 = vunpack.c.h.b16 %v1893
    %v2456 = vunpack.c.l.b16 %v1894
    %v2457 = vunpack.c.h.b16 %v1894
    %v2458 = vunpack.c.l.b16 %v1895
    %v2459 = vunpack.c.h.b16 %v1895
    %v2460 = vunpack.c.l.b16 %v1896
    %v2461 = vunpack.c.h.b16 %v1896
    %v2462 = vunpack.c.l.b16 %v1897
    %v2463 = vunpack.c.h.b16 %v1897
    %v2464 = vunpack.c.l.b16 %v1898
    %v2465 = vunpack.c.h.b16 %v1898
    %v2466 = vunpack.c.l.b16 %v1899
    %v2467 = vunpack.c.h.b16 %v1899
    %v2468 = vunpack.c.l.b16 %v1900
    %v2469 = vunpack.c.h.b16 %v1900
    %v2470 = vunpack.c.l.b16 %v1901
    %v2471 = vunpack.c.h.b16 %v1901
    %v2472 = vunpack.c.l.b16 %v1902
    %v2473 = vunpack.c.h.b16 %v1902
    %v2474 = vunpack.c.l.b16 %v1903
    %v2475 = vunpack.c.h.b16 %v1903
    %v2476 = vunpack.c.l.b16 %v1904
    %v2477 = vunpack.c.h.b16 %v1904
    %v2478 = vunpack.c.l.b16 %v1905
    %v2479 = vunpack.c.h.b16 %v1905
    %v2480 = vunpack.c.l.b16 %v1906
    %v2481 = vunpack.c.h.b16 %v1906
    %v2482 = vunpack.c.l.b16 %v1907
    %v2483 = vunpack.c.h.b16 %v1907
    %v2484 = vunpack.c.l.b16 %v1908
    %v2485 = vunpack.c.h.b16 %v1908
    %v2486 = vunpack.c.l.b16 %v1909
    %v2487 = vunpack.c.h.b16 %v1909
    %v2488 = vunpack.c.l.b16 %v1910
    %v2489 = vunpack.c.h.b16 %v1910
    %v2490 = vunpack.c.l.b16 %v1911
    %v2491 = vunpack.c.h.b16 %v1911
    %v2492 = vunpack.c.l.b16 %v1912
    %v2493 = vunpack.c.h.b16 %v1912
    %v2494 = vunpack.c.l.b16 %v1913
    %v2495 = vunpack.c.h.b16 %v1913
    %v2496 = vunpack.c.l.b16 %v1914
    %v2497 = vunpack.c.h.b16 %v1914
    %v2498 = vunpack.c.l.b16 %v1915
    %v2499 = vunpack.c.h.b16 %v1915
    %v2500 = vunpack.c.l.b16 %v1916
    %v2501 = vunpack.c.h.b16 %v1916
    %v2502 = vunpack.c.l.b16 %v1917
    %v2503 = vunpack.c.h.b16 %v1917
    %v2504 = vunpack.c.l.b16 %v1918
    %v2505 = vunpack.c.h.b16 %v1918
    %v2506 = vunpack.c.l.b16 %v1919
    %v2507 = vunpack.c.h.b16 %v1919
    %v2508 = vunpack.c.l.b16 %v1920
    %v2509 = vunpack.c.h.b16 %v1920
    %v2510 = vunpack.c.l.b16 %v1921
    %v2511 = vunpack.c.h.b16 %v1921
    %v2512 = vunpack.c.l.b16 %v1922
    %v2513 = vunpack.c.h.b16 %v1922
    %v2514 = vunpack.c.l.b16 %v1923
    %v2515 = vunpack.c.h.b16 %v1923
    %v2516 = vunpack.c.l.b16 %v1924
    %v2517 = vunpack.c.h.b16 %v1924
    %v2518 = vunpack.c.l.b16 %v1925
    %v2519 = vunpack.c.h.b16 %v1925
    %v2520 = vunpack.c.l.b16 %v1926
    %v2521 = vunpack.c.h.b16 %v1926
    %v2522 = vunpack.c.l.b16 %v1927
    %v2523 = vunpack.c.h.b16 %v1927
    %v2524 = vunpack.c.l.b16 %v1928
    %v2525 = vunpack.c.h.b16 %v1928
    %v2526 = vunpack.c.l.b16 %v1929
    %v2527 = vunpack.c.h.b16 %v1929
    %v2528 = vunpack.c.l.b16 %v1930
    %v2529 = vunpack.c.h.b16 %v1930
    %v2530 = vunpack.c.l.b16 %v1931
    %v2531 = vunpack.c.h.b16 %v1931
    %v2532 = vunpack.c.l.b16 %v1932
    %v2533 = vunpack.c.h.b16 %v1932
    %v2534 = vunpack.c.l.b16 %v1933
    %v2535 = vunpack.c.h.b16 %v1933
    %v2536 = vunpack.c.l.b16 %v1934
    %v2537 = vunpack.c.h.b16 %v1934
    %v2538 = vunpack.c.l.b16 %v1935
    %v2539 = vunpack.c.h.b16 %v1935
    %v2540 = vunpack.c.l.b16 %v1936
    %v2541 = vunpack.c.h.b16 %v1936
    %v2542 = vunpack.c.l.b16 %v1937
    %v2543 = vunpack.c.h.b16 %v1937
    %v2544 = vunpack.c.l.b16 %v1938
    %v2545 = vunpack.c.h.b16 %v1938
    %v2546 = vunpack.c.l.b16 %v1939
    %v2547 = vunpack.c.h.b16 %v1939
    %v2548 = vunpack.c.l.b16 %v1940
    %v2549 = vunpack.c.h.b16 %v1940
    %v2550 = vunpack.c.l.b16 %v1941
    %v2551 = vunpack.c.h.b16 %v1941
    %v2552 = vunpack.c.l.b16 %v1942
    %v2553 = vunpack.c.h.b16 %v1942
    %v2554 = vunpack.c.l.b16 %v1943
    %v2555 = vunpack.c.h.b16 %v1943
    %v2556 = vunpack.c.l.b16 %v1944
    %v2557 = vunpack.c.h.b16 %v1944
    %v2558 = vunpack.c.l.b16 %v1945
    %v2559 = vunpack.c.h.b16 %v1945
    %v2560 = vunpack.c.l.b16 %v1946
    %v2561 = vunpack.c.h.b16 %v1946
    %v2562 = vunpack.c.l.b16 %v1947
    %v2563 = vunpack.c.h.b16 %v1947
    %v2564 = vunpack.c.l.b16 %v1948
    %v2565 = vunpack.c.h.b16 %v1948
    %v2566 = vunpack.c.l.b16 %v1949
    %v2567 = vunpack.c.h.b16 %v1949
    %v2568 = vunpack.c.l.b16 %v1950
    %v2569 = vunpack.c.h.b16 %v1950
    %v2570 = vunpack.c.l.b16 %v1951
    %v2571 = vunpack.c.h.b16 %v1951
    %v2572 = vunpack.c.l.b16 %v1952
    %v2573 = vunpack.c.h.b16 %v1952
    %v2574 = vunpack.c.l.b16 %v1953
    %v2575 = vunpack.c.h.b16 %v1953
    %v2576 = vunpack.c.l.b16 %v1954
    %v2577 = vunpack.c.h.b16 %v1954
    %v2578 = vunpack.c.l.b16 %v1955
    %v2579 = vunpack.c.h.b16 %v1955
    %v2580 = vunpack.c.l.b16 %v1956
    %v2581 = vunpack.c.h.b16 %v1956
    %v2582 = vunpack.c.l.b16 %v1957
    %v2583 = vunpack.c.h.b16 %v1957
    %v2584 = vunpack.c.l.b16 %v1958
    %v2585 = vunpack.c.h.b16 %v1958
    %v2586 = vunpack.c.l.b16 %v1959
    %v2587 = vunpack.c.h.b16 %v1959
    %v2588 = vunpack.c.l.b16 %v1960
    %v2589 = vunpack.c.h.b16 %v1960
    %v2590 = vunpack.c.l.b16 %v1961
    %v2591 = vunpack.c.h.b16 %v1961
    %v2592 = vunpack.c.l.b16 %v1962
    %v2593 = vunpack.c.h.b16 %v1962
    %v2594 = vunpack.c.l.b16 %v1963
    %v2595 = vunpack.c.h.b16 %v1963
    %v2596 = vunpack.c.l.b16 %v1964
    %v2597 = vunpack.c.h.b16 %v1964
    %v2598 = vunpack.c.l.b16 %v1965
    %v2599 = vunpack.c.h.b16 %v1965
    %v2600 = vunpack.c.l.b16 %v1966
    %v2601 = vunpack.c.h.b16 %v1966
    %v2602 = vunpack.c.l.b16 %v1967
    %v2603 = vunpack.c.h.b16 %v1967
    %v2604 = vunpack.c.l.b16 %v1968
    %v2605 = vunpack.c.h.b16 %v1968
    %v2606 = vunpack.c.l.b16 %v1969
    %v2607 = vunpack.c.h.b16 %v1969
    %v2608 = vunpack.c.l.b16 %v1970
    %v2609 = vunpack.c.h.b16 %v1970
    %v2610 = vunpack.c.l.b16 %v1971
    %v2611 = vunpack.c.h.b16 %v1971
    %v2612 = vunpack.c.l.b16 %v1972
    %v2613 = vunpack.c.h.b16 %v1972
    %v2614 = vunpack.c.l.b16 %v1973
    %v2615 = vunpack.c.h.b16 %v1973
    %v2616 = vunpack.c.l.b16 %v1974
    %v2617 = vunpack.c.h.b16 %v1974
    %v2618 = vunpack.c.l.b16 %v1975
    %v2619 = vunpack.c.h.b16 %v1975
    %v2620 = vunpack.c.l.b16 %v1976
    %v2621 = vunpack.c.h.b16 %v1976
    %v2622 = vunpack.c.l.b16 %v1977
    %v2623 = vunpack.c.h.b16 %v1977
    %v2624 = vunpack.c.l.b16 %v1978
    %v2625 = vunpack.c.h.b16 %v1978
    %v2626 = vunpack.c.l.b16 %v1979
    %v2627 = vunpack.c.h.b16 %v1979
    %v2628 = vunpack.c.l.b16 %v1980
    %v2629 = vunpack.c.h.b16 %v1980
    %v2630 = vunpack.c.l.b16 %v1981
    %v2631 = vunpack.c.h.b16 %v1981
    %v2632 = vunpack.c.l.b16 %v1982
    %v2633 = vunpack.c.h.b16 %v1982
    %v2634 = vunpack.c.l.b16 %v1983
    %v2635 = vunpack.c.h.b16 %v1983
    %v2636 = vunpack.c.l.b16 %v1984
    %v2637 = vunpack.c.h.b16 %v1984
    %v2638 = vunpack.c.l.b16 %v1985
    %v2639 = vunpack.c.h.b16 %v1985
    %v2640 = vunpack.c.l.b16 %v1986
    %v2641 = vunpack.c.h.b16 %v1986
    %v2642 = vunpack.c.l.b16 %v1987
    %v2643 = vunpack.c.h.b16 %v1987
    %v2644 = vunpack.c.l.b16 %v1988
    %v2645 = vunpack.c.h.b16 %v1988
    %v2646 = vunpack.c.l.b16 %v1989
    %v2647 = vunpack.c.h.b16 %v1989
    %v2648 = vunpack.c.l.b16 %v1990
    %v2649 = vunpack.c.h.b16 %v1990
    %v2650 = vunpack.c.l.b16 %v1991
    %v2651 = vunpack.c.h.b16 %v1991
    %v2652 = vunpack.c.l.b16 %v1992
    %v2653 = vunpack.c.h.b16 %v1992
    %v2654 = vunpack.c.l.b16 %v1993
    %v2655 = vunpack.c.h.b16 %v1993
    %v2656 = vunpack.c.l.b16 %v1994
    %v2657 = vunpack.c.h.b16 %v1994
    %v2658 = vunpack.c.l.b16 %v1995
    %v2659 = vunpack.c.h.b16 %v1995
    %v2660 = vunpack.c.l.b16 %v1996
    %v2661 = vunpack.c.h.b16 %v1996
    %v2662 = vunpack.c.l.b16 %v1997
    %v2663 = vunpack.c.h.b16 %v1997
    %v2664 = vunpack.c.l.b16 %v1998
    %v2665 = vunpack.c.h.b16 %v1998
    %v2666 = vunpack.c.l.b16 %v1999
    %v2667 = vunpack.c.h.b16 %v1999
    %v2668 = vunpack.c.l.b16 %v2000
    %v2669 = vunpack.c.h.b16 %v2000
    %v2670 = vunpack.c.l.b16 %v2001
    %v2671 = vunpack.c.h.b16 %v2001
    %v2672 = vunpack.c.l.b16 %v2002
    %v2673 = vunpack.c.h.b16 %v2002
    %v2674 = vunpack.c.l.b16 %v2003
    %v2675 = vunpack.c.h.b16 %v2003
    %v2676 = vunpack.c.l.b16 %v2004
    %v2677 = vunpack.c.h.b16 %v2004
    %v2678 = vunpack.c.l.b16 %v2005
    %v2679 = vunpack.c.h.b16 %v2005
    %v2680 = vunpack.c.l.b16 %v2006
    %v2681 = vunpack.c.h.b16 %v2006
    %v2682 = vunpack.c.l.b16 %v2007
    %v2683 = vunpack.c.h.b16 %v2007
    %v2684 = vunpack.c.l.b16 %v2008
    %v2685 = vunpack.c.h.b16 %v2008
    %v2686 = vunpack.c.l.b16 %v2009
    %v2687 = vunpack.c.h.b16 %v2009
    %v2688 = vunpack.c.l.b16 %v2010
    %v2689 = vunpack.c.h.b16 %v2010
    %v2690 = vunpack.c.l.b16 %v2011
    %v2691 = vunpack.c.h.b16 %v2011
    %v2692 = vunpack.c.l.b16 %v2012
    %v2693 = vunpack.c.h.b16 %v2012
    %v2694 = vunpack.c.l.b16 %v2013
    %v2695 = vunpack.c.h.b16 %v2013
    %v2696 = vunpack.c.l.b16 %v2014
    %v2697 = vunpack.c.h.b16 %v2014
    %v2698 = vunpack.c.l.b16 %v2015
    %v2699 = vunpack.c.h.b16 %v2015
    %v2700 = vunpack.c.l.b16 %v2016
    %v2701 = vunpack.c.h.b16 %v2016
    %v2702 = vunpack.c.l.b16 %v2017
    %v2703 = vunpack.c.h.b16 %v2017
    %v2704 = vunpack.c.l.b16 %v2018
    %v2705 = vunpack.c.h.b16 %v2018
    %v2706 = vunpack.c.l.b16 %v2019
    %v2707 = vunpack.c.h.b16 %v2019
    %v2708 = vunpack.c.l.b16 %v2020
    %v2709 = vunpack.c.h.b16 %v2020
    %v2710 = vunpack.c.l.b16 %v2021
    %v2711 = vunpack.c.h.b16 %v2021
    %v2712 = vunpack.c.l.b16 %v2022
    %v2713 = vunpack.c.h.b16 %v2022
    %v2714 = vunpack.c.l.b16 %v2023
    %v2715 = vunpack.c.h.b16 %v2023
    %v2716 = vunpack.c.l.b16 %v2024
    %v2717 = vunpack.c.h.b16 %v2024
    %v2718 = vunpack.c.l.b16 %v2025
    %v2719 = vunpack.c.h.b16 %v2025
    %v2720 = vunpack.c.l.b16 %v2026
    %v2721 = vunpack.c.h.b16 %v2026
    %v2722 = vunpack.c.l.b16 %v2027
    %v2723 = vunpack.c.h.b16 %v2027
    %v2724 = vunpack.c.l.b16 %v2028
    %v2725 = vunpack.c.h.b16 %v2028
    %v2726 = vunpack.c.l.b16 %v2029
    %v2727 = vunpack.c.h.b16 %v2029
    %v2728 = vunpack.c.l.b16 %v2030
    %v2729 = vunpack.c.h.b16 %v2030
    %v2730 = vunpack.c.l.b16 %v2031
    %v2731 = vunpack.c.h.b16 %v2031
    %v2732 = vunpack.c.l.b16 %v2032
    %v2733 = vunpack.c.h.b16 %v2032
    %v2734 = vunpack.c.l.b16 %v2033
    %v2735 = vunpack.c.h.b16 %v2033
    %v2736 = vunpack.c.l.b16 %v2034
    %v2737 = vunpack.c.h.b16 %v2034
    %v2738 = vunpack.c.l.b16 %v2035
    %v2739 = vunpack.c.h.b16 %v2035
    %v2740 = vunpack.c.l.b16 %v2036
    %v2741 = vunpack.c.h.b16 %v2036
    %v2742 = vunpack.c.l.b16 %v2037
    %v2743 = vunpack.c.h.b16 %v2037
    %v2744 = vunpack.c.l.b16 %v2038
    %v2745 = vunpack.c.h.b16 %v2038
    %v2746 = vunpack.c.l.b16 %v2039
    %v2747 = vunpack.c.h.b16 %v2039
    %v2748 = vunpack.c.l.b16 %v2040
    %v2749 = vunpack.c.h.b16 %v2040
    %v2750 = vunpack.c.l.b16 %v2041
    %v2751 = vunpack.c.h.b16 %v2041
    %v2752 = vunpack.c.l.b16 %v2042
    %v2753 = vunpack.c.h.b16 %v2042
    %v2754 = vunpack.c.l.b16 %v2043
    %v2755 = vunpack.c.h.b16 %v2043
    %v2756 = vunpack.c.l.b16 %v2044
    %v2757 = vunpack.c.h.b16 %v2044
    %v2758 = vunpack.c.l.b16 %v2045
    %v2759 = vunpack.c.h.b16 %v2045
    %v2760 = vunpack.c.l.b16 %v2046
    %v2761 = vunpack.c.h.b16 %v2046
    %v2762 = vunpack.c.l.b16 %v2047
    %v2763 = vunpack.c.h.b16 %v2047
    %v2764 = vunpack.c.l.b16 %v2048
    %v2765 = vunpack.c.h.b16 %v2048
    %v2766 = vunpack.c.l.b16 %v2049
    %v2767 = vunpack.c.h.b16 %v2049
    %v2768 = vunpack.c.l.b16 %v2050
    %v2769 = vunpack.c.h.b16 %v2050
    %v2770 = vunpack.c.l.b16 %v2051
    %v2771 = vunpack.c.h.b16 %v2051
    %v2772 = vunpack.c.l.b16 %v2052
    %v2773 = vunpack.c.h.b16 %v2052
    %v2774 = vunpack.c.l.b16 %v2053
    %v2775 = vunpack.c.h.b16 %v2053
    %v2776 = vunpack.c.l.b16 %v2054
    %v2777 = vunpack.c.h.b16 %v2054
    %v2778 = vunpack.c.l.b16 %v2055
    %v2779 = vunpack.c.h.b16 %v2055
    %v2780 = vunpack.c.l.b16 %v2056
    %v2781 = vunpack.c.h.b16 %v2056
    %v2782 = vunpack.c.l.b16 %v2057
    %v2783 = vunpack.c.h.b16 %v2057
    %v2784 = vunpack.c.l.b16 %v2058
    %v2785 = vunpack.c.h.b16 %v2058
    %v2786 = vunpack.c.l.b16 %v2059
    %v2787 = vunpack.c.h.b16 %v2059
    %v2788 = vunpack.c.l.b16 %v2060
    %v2789 = vunpack.c.h.b16 %v2060
    %v2790 = vunpack.c.l.b16 %v2061
    %v2791 = vunpack.c.h.b16 %v2061
    %v2792 = vunpack.c.l.b16 %v2062
    %v2793 = vunpack.c.h.b16 %v2062
    %v2794 = vunpack.c.l.b16 %v2063
    %v2795 = vunpack.c.h.b16 %v2063
    %v2796 = vunpack.c.l.b16 %v2064
    %v2797 = vunpack.c.h.b16 %v2064
    %v2798 = vunpack.c.l.b16 %v2065
    %v2799 = vunpack.c.h.b16 %v2065
    %v2800 = vunpack.c.l.b16 %v2066
    %v2801 = vunpack.c.h.b16 %v2066
    %v2802 = vunpack.c.l.b16 %v2067
    %v2803 = vunpack.c.h.b16 %v2067
    %v2804 = vunpack.c.l.b16 %v2068
    %v2805 = vunpack.c.h.b16 %v2068
    %v2806 = vunpack.c.l.b16 %v2069
    %v2807 = vunpack.c.h.b16 %v2069
    %v2808 = vunpack.c.l.b16 %v2070
    %v2809 = vunpack.c.h.b16 %v2070
    %v2810 = vunpack.c.l.b16 %v2071
    %v2811 = vunpack.c.h.b16 %v2071
    %v2812 = vunpack.c.l.b16 %v2072
    %v2813 = vunpack.c.h.b16 %v2072
    %v2814 = vunpack.c.l.b16 %v2073
    %v2815 = vunpack.c.h.b16 %v2073
    %v2816 = vunpack.c.l.b16 %v2074
    %v2817 = vunpack.c.h.b16 %v2074
    %v2818 = vunpack.c.l.b16 %v2075
    %v2819 = vunpack.c.h.b16 %v2075
    %v2820 = vunpack.c.l.b16 %v2076
    %v2821 = vunpack.c.h.b16 %v2076
    %v2822 = vunpack.c.l.b16 %v2077
    %v2823 = vunpack.c.h.b16 %v2077
    %v2824 = vunpack.c.l.b16 %v2078
    %v2825 = vunpack.c.h.b16 %v2078
    %v2826 = vunpack.c.l.b16 %v2079
    %v2827 = vunpack.c.h.b16 %v2079
    %v2828 = vunpack.c.l.b16 %v2080
    %v2829 = vunpack.c.h.b16 %v2080
    %v2830 = vunpack.c.l.b16 %v2081
    %v2831 = vunpack.c.h.b16 %v2081
    %v2832 = vunpack.c.l.b16 %v2082
    %v2833 = vunpack.c.h.b16 %v2082
    %v2834 = vunpack.c.l.b16 %v2083
    %v2835 = vunpack.c.h.b16 %v2083
    %v2836 = vunpack.c.l.b16 %v2084
    %v2837 = vunpack.c.h.b16 %v2084
    %v2838 = vunpack.c.l.b16 %v2085
    %v2839 = vunpack.c.h.b16 %v2085
    %v2840 = vunpack.c.l.b16 %v2086
    %v2841 = vunpack.c.h.b16 %v2086
    %v2842 = vunpack.c.l.b16 %v2087
    %v2843 = vunpack.c.h.b16 %v2087
    %v2844 = vunpack.c.l.b16 %v2088
    %v2845 = vunpack.c.h.b16 %v2088
    %v2846 = vunpack.c.l.b16 %v2089
    %v2847 = vunpack.c.h.b16 %v2089
    %v2848 = vunpack.c.l.b16 %v2090
    %v2849 = vunpack.c.h.b16 %v2090
    %v2850 = vunpack.c.l.b16 %v2091
    %v2851 = vunpack.c.h.b16 %v2091
    %v2852 = vunpack.c.l.b16 %v2092
    %v2853 = vunpack.c.h.b16 %v2092
    %v2854 = vunpack.c.l.b16 %v2093
    %v2855 = vunpack.c.h.b16 %v2093
    %v2856 = vunpack.c.l.b16 %v2094
    %v2857 = vunpack.c.h.b16 %v2094
    %v2858 = vunpack.c.l.b16 %v2095
    %v2859 = vunpack.c.h.b16 %v2095
    %v2860 = vunpack.c.l.b16 %v2096
    %v2861 = vunpack.c.h.b16 %v2096
    %v2862 = vunpack.c.l.b16 %v2097
    %v2863 = vunpack.c.h.b16 %v2097
    %v2864 = vunpack.c.l.b16 %v2098
    %v2865 = vunpack.c.h.b16 %v2098
    %v2866 = vunpack.c.l.b16 %v2099
    %v2867 = vunpack.c.h.b16 %v2099
    %v2868 = vunpack.c.l.b16 %v2100
    %v2869 = vunpack.c.h.b16 %v2100
    %v2870 = vunpack.c.l.b16 %v2101
    %v2871 = vunpack.c.h.b16 %v2101
    %v2872 = vunpack.c.l.b16 %v2102
    %v2873 = vunpack.c.h.b16 %v2102
    %v2874 = vunpack.c.l.b16 %v2103
    %v2875 = vunpack.c.h.b16 %v2103
    %v2876 = vunpack.c.l.b16 %v2104
    %v2877 = vunpack.c.h.b16 %v2104
    %v2878 = vunpack.c.l.b16 %v2105
    %v2879 = vunpack.c.h.b16 %v2105
    %v2880 = vunpack.c.l.b16 %v2106
    %v2881 = vunpack.c.h.b16 %v2106
    %v2882 = vunpack.c.l.b16 %v2107
    %v2883 = vunpack.c.h.b16 %v2107
    %v2884 = vunpack.c.l.b16 %v2108
    %v2885 = vunpack.c.h.b16 %v2108
    %v2886 = vunpack.c.l.b16 %v2109
    %v2887 = vunpack.c.h.b16 %v2109
    %v2888 = vunpack.c.l.b16 %v2110
    %v2889 = vunpack.c.h.b16 %v2110
    %v2890 = vunpack.c.l.b16 %v2111
    %v2891 = vunpack.c.h.b16 %v2111
    %v2892 = vunpack.c.l.b16 %v2112
    %v2893 = vunpack.c.h.b16 %v2112
    %v2894 = vunpack.c.l.b16 %v2113
    %v2895 = vunpack.c.h.b16 %v2113
    %v2896 = vunpack.c.l.b16 %v2114
    %v2897 = vunpack.c.h.b16 %v2114
    %v2898 = vunpack.c.l.b16 %v2115
    %v2899 = vunpack.c.h.b16 %v2115
    %v2900 = vunpack.c.l.b16 %v2116
    %v2901 = vunpack.c.h.b16 %v2116
    %v2902 = vunpack.c.l.b16 %v2117
    %v2903 = vunpack.c.h.b16 %v2117
    %v2904 = vunpack.c.l.b16 %v2118
    %v2905 = vunpack.c.h.b16 %v2118
    %v2906 = vunpack.c.l.b16 %v2119
    %v2907 = vunpack.c.h.b16 %v2119
    %v2908 = vunpack.c.l.b16 %v2120
    %v2909 = vunpack.c.h.b16 %v2120
    %v2910 = vunpack.c.l.b16 %v2121
    %v2911 = vunpack.c.h.b16 %v2121
    %v2912 = vpack.c.b16 %v2404, %v2400
    %v2913 = vpack.c.b16 %v2405, %v2401
    %v2914 = vpack.c.b16 %v2406, %v2402
    %v2915 = vpack.c.b16 %v2407, %v2403
    %v2916 = vpack.c.b16 %v2412, %v2408
    %v2917 = vpack.c.b16 %v2413, %v2409
    %v2918 = vpack.c.b16 %v2414, %v2410
    %v2919 = vpack.c.b16 %v2415, %v2411
    %v2920 = vpack.c.b16 %v2420, %v2416
    %v2921 = vpack.c.b16 %v2421, %v2417
    %v2922 = vpack.c.b16 %v2422, %v2418
    %v2923 = vpack.c.b16 %v2423, %v2419
    %v2924 = vpack.c.b16 %v2428, %v2424
    %v2925 = vpack.c.b16 %v2429, %v2425
    %v2926 = vpack.c.b16 %v2430, %v2426
    %v2927 = vpack.c.b16 %v2431, %v2427
    %v2928 = vpack.c.b16 %v2436, %v2432
    %v2929 = vpack.c.b16 %v2437, %v2433
    %v2930 = vpack.c.b16 %v2438, %v2434
    %v2931 = vpack.c.b16 %v2439, %v2435
    %v2932 = vpack.c.b16 %v2444, %v2440
    %v2933 = vpack.c.b16 %v2445, %v2441
    %v2934 = vpack.c.b16 %v2446, %v2442
    %v2935 = vpack.c.b16 %v2447, %v2443
    %v2936 = vpack.c.b16 %v2452, %v2448
    %v2937 = vpack.c.b16 %v2453, %v2449
    %v2938 = vpack.c.b16 %v2454, %v2450
    %v2939 = vpack.c.b16 %v2455, %v2451
    %v2940 = vpack.c.b16 %v2460, %v2456
    %v2941 = vpack.c.b16 %v2461, %v2457
    %v2942 = vpack.c.b16 %v2462, %v2458
    %v2943 = vpack.c.b16 %v2463, %v2459
    %v2944 = vpack.c.b16 %v2468, %v2464
    %v2945 = vpack.c.b16 %v2469, %v2465
    %v2946 = vpack.c.b16 %v2470, %v2466
    %v2947 = vpack.c.b16 %v2471, %v2467
    %v2948 = vpack.c.b16 %v2476, %v2472
    %v2949 = vpack.c.b16 %v2477, %v2473
    %v2950 = vpack.c.b16 %v2478, %v2474
    %v2951 = vpack.c.b16 %v2479, %v2475
    %v2952 = vpack.c.b16 %v2484, %v2480
    %v2953 = vpack.c.b16 %v2485, %v2481
    %v2954 = vpack.c.b16 %v2486, %v2482
    %v2955 = vpack.c.b16 %v2487, %v2483
    %v2956 = vpack.c.b16 %v2492, %v2488
    %v2957 = vpack.c.b16 %v2493, %v2489
    %v2958 = vpack.c.b16 %v2494, %v2490
    %v2959 = vpack.c.b16 %v2495, %v2491
    %v2960 = vpack.c.b16 %v2500, %v2496
    %v2961 = vpack.c.b16 %v2501, %v2497
    %v2962 = vpack.c.b16 %v2502, %v2498
    %v2963 = vpack.c.b16 %v2503, %v2499
    %v2964 = vpack.c.b16 %v2508, %v2504
    %v2965 = vpack.c.b16 %v2509, %v2505
    %v2966 = vpack.c.b16 %v2510, %v2506
    %v2967 = vpack.c.b16 %v2511, %v2507
    %v2968 = vpack.c.b16 %v2516, %v2512
    %v2969 = vpack.c.b16 %v2517, %v2513
    %v2970 = vpack.c.b16 %v2518, %v2514
    %v2971 = vpack.c.b16 %v2519, %v2515
    %v2972 = vpack.c.b16 %v2524, %v2520
    %v2973 = vpack.c.b16 %v2525, %v2521
    %v2974 = vpack.c.b16 %v2526, %v2522
    %v2975 = vpack.c.b16 %v2527, %v2523
    %v2976 = vpack.c.b16 %v2532, %v2528
    %v2977 = vpack.c.b16 %v2533, %v2529
    %v2978 = vpack.c.b16 %v2534, %v2530
    %v2979 = vpack.c.b16 %v2535, %v2531
    %v2980 = vpack.c.b16 %v2540, %v2536
    %v2981 = vpack.c.b16 %v2541, %v2537
    %v2982 = vpack.c.b16 %v2542, %v2538
    %v2983 = vpack.c.b16 %v2543, %v2539
    %v2984 = vpack.c.b16 %v2548, %v2544
    %v2985 = vpack.c.b16 %v2549, %v2545
    %v2986 = vpack.c.b16 %v2550, %v2546
    %v2987 = vpack.c.b16 %v2551, %v2547
    %v2988 = vpack.c.b16 %v2556, %v2552
    %v2989 = vpack.c.b16 %v2557, %v2553
    %v2990 = vpack.c.b16 %v2558, %v2554
    %v2991 = vpack.c.b16 %v2559, %v2555
    %v2992 = vpack.c.b16 %v2564, %v2560
    %v2993 = vpack.c.b16 %v2565, %v2561
    %v2994 = vpack.c.b16 %v2566, %v2562
    %v2995 = vpack.c.b16 %v2567, %v2563
    %v2996 = vpack.c.b16 %v2572, %v2568
    %v2997 = vpack.c.b16 %v2573, %v2569
    %v2998 = vpack.c.b16 %v2574, %v2570
    %v2999 = vpack.c.b16 %v2575, %v2571
    %v3000 = vpack.c.b16 %v2580, %v2576
    %v3001 = vpack.c.b16 %v2581, %v2577
    %v3002 = vpack.c.b16 %v2582, %v2578
    %v3003 = vpack.c.b16 %v2583, %v2579
    %v3004 = vpack.c.b16 %v2588, %v2584
    %v3005 = vpack.c.b16 %v2589, %v2585
    %v3006 = vpack.c.b16 %v2590, %v2586
    %v3007 = vpack.c.b16 %v2591, %v2587
    %v3008 = vpack.c.b16 %v2596, %v2592
    %v3009 = vpack.c.b16 %v2597, %v2593
    %v3010 = vpack.c.b16 %v2598, %v2594
    %v3011 = vpack.c.b16 %v2599, %v2595
    %v3012 = vpack.c.b16 %v2604, %v2600
    %v3013 = vpack.c.b16 %v2605, %v2601
    %v3014 = vpack.c.b16 %v2606, %v2602
    %v3015 = vpack.c.b16 %v2607, %v2603
    %v3016 = vpack.c.b16 %v2612, %v2608
    %v3017 = vpack.c.b16 %v2613, %v2609
    %v3018 = vpack.c.b16 %v2614, %v2610
    %v3019 = vpack.c.b16 %v2615, %v2611
    %v3020 = vpack.c.b16 %v2620, %v2616
    %v3021 = vpack.c.b16 %v2621, %v2617
    %v3022 = vpack.c.b16 %v2622, %v2618
    %v3023 = vpack.c.b16 %v2623, %v2619
    %v3024 = vpack.c.b16 %v2628, %v2624
    %v3025 = vpack.c.b16 %v2629, %v2625
    %v3026 = vpack.c.b16 %v2630, %v2626
    %v3027 = vpack.c.b16 %v2631, %v2627
    %v3028 = vpack.c.b16 %v2636, %v2632
    %v3029 = vpack.c.b16 %v2637, %v2633
    %v3030 = vpack.c.b16 %v2638, %v2634
    %v3031 = vpack.c.b16 %v2639, %v2635
    %v3032 = vpack.c.b16 %v2644, %v2640
    %v3033 = vpack.c.b16 %v2645, %v2641
    %v3034 = vpack.c.b16 %v2646, %v2642
    %v3035 = vpack.c.b16 %v2647, %v2643
    %v3036 = vpack.c.b16 %v2652, %v2648
    %v3037 = vpack.c.b16 %v2653, %v2649
    %v3038 = vpack.c.b16 %v2654, %v2650
    %v3039 = vpack.c.b16 %v2655, %v2651
    %v3040 = vpack.c.b16 %v2660, %v2656
    %v3041 = vpack.c.b16 %v2661, %v2657
    %v3042 = vpack.c.b16 %v2662, %v2658
    %v3043 = vpack.c.b16 %v2663, %v2659
    %v3044 = vpack.c.b16 %v2668, %v2664
    %v3045 = vpack.c.b16 %v2669, %v2665
    %v3046 = vpack.c.b16 %v2670, %v2666
    %v3047 = vpack.c.b16 %v2671, %v2667
    %v3048 = vpack.c.b16 %v2676, %v2672
    %v3049 = vpack.c.b16 %v2677, %v2673
    %v3050 = vpack.c.b16 %v2678, %v2674
    %v3051 = vpack.c.b16 %v2679, %v2675
    %v3052 = vpack.c.b16 %v2684, %v2680
    %v3053 = vpack.c.b16 %v2685, %v2681
    %v3054 = vpack.c.b16 %v2686, %v2682
    %v3055 = vpack.c.b16 %v2687, %v2683
    %v3056 = vpack.c.b16 %v2692, %v2688
    %v3057 = vpack.c.b16 %v2693, %v2689
    %v3058 = vpack.c.b16 %v2694, %v2690
    %v3059 = vpack.c.b16 %v2695, %v2691
    %v3060 = vpack.c.b16 %v2700, %v2696
    %v3061 = vpack.c.b16 %v2701, %v2697
    %v3062 = vpack.c.b16 %v2702, %v2698
    %v3063 = vpack.c.b16 %v2703, %v2699
    %v3064 = vpack.c.b16 %v2708, %v2704
    %v3065 = vpack.c.b16 %v2709, %v2705
    %v3066 = vpack.c.b16 %v2710, %v2706
    %v3067 = vpack.c.b16 %v2711, %v2707
    %v3068 = vpack.c.b16 %v2716, %v2712
    %v3069 = vpack.c.b16 %v2717, %v2713
    %v3070 = vpack.c.b16 %v2718, %v2714
    %v3071 = vpack.c.b16 %v2719, %v2715
    %v3072 = vpack.c.b16 %v2724, %v2720
    %v3073 = vpack.c.b16 %v2725, %v2721
    %v3074 = vpack.c.b16 %v2726, %v2722
    %v3075 = vpack.c.b16 %v2727, %v2723
    %v3076 = vpack.c.b16 %v2732, %v2728
    %v3077 = vpack.c.b16 %v2733, %v2729
    %v3078 = vpack.c.b16 %v2734, %v2730
    %v3079 = vpack.c.b16 %v2735, %v2731
    %v3080 = vpack.c.b16 %v2740, %v2736
    %v3081 = vpack.c.b16 %v2741, %v2737
    %v3082 = vpack.c.b16 %v2742, %v2738
    %v3083 = vpack.c.b16 %v2743, %v2739
    %v3084 = vpack.c.b16 %v2748, %v2744
    %v3085 = vpack.c.b16 %v2749, %v2745
    %v3086 = vpack.c.b16 %v2750, %v2746
    %v3087 = vpack.c.b16 %v2751, %v2747
    %v3088 = vpack.c.b16 %v2756, %v2752
    %v3089 = vpack.c.b16 %v2757, %v2753
    %v3090 = vpack.c.b16 %v2758, %v2754
    %v3091 = vpack.c.b16 %v2759, %v2755
    %v3092 = vpack.c.b16 %v2764, %v2760
    %v3093 = vpack.c.b16 %v2765, %v2761
    %v3094 = vpack.c.b16 %v2766, %v2762
    %v3095 = vpack.c.b16 %v2767, %v2763
    %v3096 = vpack.c.b16 %v2772, %v2768
    %v3097 = vpack.c.b16 %v2773, %v2769
    %v3098 = vpack.c.b16 %v2774, %v2770
    %v3099 = vpack.c.b16 %v2775, %v2771
    %v3100 = vpack.c.b16 %v2780, %v2776
    %v3101 = vpack.c.b16 %v2781, %v2777
    %v3102 = vpack.c.b16 %v2782, %v2778
    %v3103 = vpack.c.b16 %v2783, %v2779
    %v3104 = vpack.c.b16 %v2788, %v2784
    %v3105 = vpack.c.b16 %v2789, %v2785
    %v3106 = vpack.c.b16 %v2790, %v2786
    %v3107 = vpack.c.b16 %v2791, %v2787
    %v3108 = vpack.c.b16 %v2796, %v2792
    %v3109 = vpack.c.b16 %v2797, %v2793
    %v3110 = vpack.c.b16 %v2798, %v2794
    %v3111 = vpack.c.b16 %v2799, %v2795
    %v3112 = vpack.c.b16 %v2804, %v2800
    %v3113 = vpack.c.b16 %v2805, %v2801
    %v3114 = vpack.c.b16 %v2806, %v2802
    %v3115 = vpack.c.b16 %v2807, %v2803
    %v3116 = vpack.c.b16 %v2812, %v2808
    %v3117 = vpack.c.b16 %v2813, %v2809
    %v3118 = vpack.c.b16 %v2814, %v2810
    %v3119 = vpack.c.b16 %v2815, %v2811
    %v3120 = vpack.c.b16 %v2820, %v2816
    %v3121 = vpack.c.b16 %v2821, %v2817
    %v3122 = vpack.c.b16 %v2822, %v2818
    %v3123 = vpack.c.b16 %v2823, %v2819
    %v3124 = vpack.c.b16 %v2828, %v2824
    %v3125 = vpack.c.b16 %v2829, %v2825
    %v3126 = vpack.c.b16 %v2830, %v2826
    %v3127 = vpack.c.b16 %v2831, %v2827
    %v3128 = vpack.c.b16 %v2836, %v2832
    %v3129 = vpack.c.b16 %v2837, %v2833
    %v3130 = vpack.c.b16 %v2838, %v2834
    %v3131 = vpack.c.b16 %v2839, %v2835
    %v3132 = vpack.c.b16 %v2844, %v2840
    %v3133 = vpack.c.b16 %v2845, %v2841
    %v3134 = vpack.c.b16 %v2846, %v2842
    %v3135 = vpack.c.b16 %v2847, %v2843
    %v3136 = vpack.c.b16 %v2852, %v2848
    %v3137 = vpack.c.b16 %v2853, %v2849
    %v3138 = vpack.c.b16 %v2854, %v2850
    %v3139 = vpack.c.b16 %v2855, %v2851
    %v3140 = vpack.c.b16 %v2860, %v2856
    %v3141 = vpack.c.b16 %v2861, %v2857
    %v3142 = vpack.c.b16 %v2862, %v2858
    %v3143 = vpack.c.b16 %v2863, %v2859
    %v3144 = vpack.c.b16 %v2868, %v2864
    %v3145 = vpack.c.b16 %v2869, %v2865
    %v3146 = vpack.c.b16 %v2870, %v2866
    %v3147 = vpack.c.b16 %v2871, %v2867
    %v3148 = vpack.c.b16 %v2876, %v2872
    %v3149 = vpack.c.b16 %v2877, %v2873
    %v3150 = vpack.c.b16 %v2878, %v2874
    %v3151 = vpack.c.b16 %v2879, %v2875
    %v3152 = vpack.c.b16 %v2884, %v2880
    %v3153 = vpack.c.b16 %v2885, %v2881
    %v3154 = vpack.c.b16 %v2886, %v2882
    %v3155 = vpack.c.b16 %v2887, %v2883
    %v3156 = vpack.c.b16 %v2892, %v2888
    %v3157 = vpack.c.b16 %v2893, %v2889
    %v3158 = vpack.c.b16 %v2894, %v2890
    %v3159 = vpack.c.b16 %v2895, %v2891
    %v3160 = vpack.c.b16 %v2900, %v2896
    %v3161 = vpack.c.b16 %v2901, %v2897
    %v3162 = vpack.c.b16 %v2902, %v2898
    %v3163 = vpack.c.b16 %v2903, %v2899
    %v3164 = vpack.c.b16 %v2908, %v2904
    %v3165 = vpack.c.b16 %v2909, %v2905
    %v3166 = vpack.c.b16 %v2910, %v2906
    %v3167 = vpack.c.b16 %v2911, %v2907
    %3424 = vmatprep.subr.bf16.mxu0 %v2913
    %3425 = vmatpush1.bf16.msra.mxu0 %v2912
    %3426 = vmatprep.subr.bf16.mxu0 %v2917
    %3427 = vmatpush1.bf16.msra.mxu0 %v2916
    %3428 = vmatprep.subr.bf16.mxu0 %v2921
    %3429 = vmatpush1.bf16.msra.mxu0 %v2920
    %3430 = vmatprep.subr.bf16.mxu0 %v2925
    %3431 = vmatpush1.bf16.msra.mxu0 %v2924
    %3432 = vmatprep.subr.bf16.mxu0 %v2929
    %3433 = vmatpush1.bf16.msra.mxu0 %v2928
    %3434 = vmatprep.subr.bf16.mxu0 %v2933
    %3435 = vmatpush1.bf16.msra.mxu0 %v2932
    %3436 = vmatprep.subr.bf16.mxu0 %v2937
    %3437 = vmatpush1.bf16.msra.mxu0 %v2936
    %3438 = vmatprep.subr.bf16.mxu0 %v2941
    %3439 = vmatpush1.bf16.msra.mxu0 %v2940
    %3440 = vmatprep.subr.bf16.mxu0 %v2945
    %3441 = vmatpush1.bf16.msra.mxu0 %v2944
    %3442 = vmatprep.subr.bf16.mxu0 %v2949
    %3443 = vmatpush1.bf16.msra.mxu0 %v2948
    %3444 = vmatprep.subr.bf16.mxu0 %v2953
    %3445 = vmatpush1.bf16.msra.mxu0 %v2952
    %3446 = vmatprep.subr.bf16.mxu0 %v2957
    %3447 = vmatpush1.bf16.msra.mxu0 %v2956
    %3448 = vmatprep.subr.bf16.mxu0 %v2961
    %3449 = vmatpush1.bf16.msra.mxu0 %v2960
    %3450 = vmatprep.subr.bf16.mxu0 %v2965
    %3451 = vmatpush1.bf16.msra.mxu0 %v2964
    %3452 = vmatprep.subr.bf16.mxu0 %v2969
    %3453 = vmatpush1.bf16.msra.mxu0 %v2968
    %3454 = vmatprep.subr.bf16.mxu0 %v2973
    %3455 = vmatpush1.bf16.msra.mxu0 %v2972
    %3456 = vmatprep.mubr.bf16.mxu0 %v1859
    %3457 = vmatmul.mubr.bf16.gmra.mrb[0].mxu0 %v1858
    %v3458 = vpop.f32.mrb[0].mxu0
    %v3459 = vadd.f32 %v2127, %v3458
    %v3460 = vpop.f32.mrb[0].mxu0
    %v3461 = vadd.f32 %v2131, %v3460
    %v3462 = vpop.f32.mrb[0].mxu0
    %v3463 = vpop.f32.mrb[0].mxu0
    %3464 = vdwg.mxu0
    %3465 = vmatprep.subr.bf16.mxu0 %v2977
    %3466 = vmatpush1.bf16.msra.mxu0 %v2976
    %3467 = vmatprep.subr.bf16.mxu0 %v2981
    %3468 = vmatpush1.bf16.msra.mxu0 %v2980
    %3469 = vmatprep.subr.bf16.mxu0 %v2985
    %3470 = vmatpush1.bf16.msra.mxu0 %v2984
    %3471 = vmatprep.subr.bf16.mxu0 %v2989
    %3472 = vmatpush1.bf16.msra.mxu0 %v2988
    %3473 = vmatprep.subr.bf16.mxu0 %v2993
    %3474 = vmatpush1.bf16.msra.mxu0 %v2992
    %3475 = vmatprep.subr.bf16.mxu0 %v2997
    %3476 = vmatpush1.bf16.msra.mxu0 %v2996
    %3477 = vmatprep.subr.bf16.mxu0 %v3001
    %3478 = vmatpush1.bf16.msra.mxu0 %v3000
    %3479 = vmatprep.subr.bf16.mxu0 %v3005
    %3480 = vmatpush1.bf16.msra.mxu0 %v3004
    %3481 = vmatprep.subr.bf16.mxu0 %v3009
    %3482 = vmatpush1.bf16.msra.mxu0 %v3008
    %3483 = vmatprep.subr.bf16.mxu0 %v3013
    %3484 = vmatpush1.bf16.msra.mxu0 %v3012
    %3485 = vmatprep.subr.bf16.mxu0 %v3017
    %3486 = vmatpush1.bf16.msra.mxu0 %v3016
    %3487 = vmatprep.subr.bf16.mxu0 %v3021
    %3488 = vmatpush1.bf16.msra.mxu0 %v3020
    %3489 = vmatprep.subr.bf16.mxu0 %v3025
    %3490 = vmatpush1.bf16.msra.mxu0 %v3024
    %3491 = vmatprep.subr.bf16.mxu0 %v3029
    %3492 = vmatpush1.bf16.msra.mxu0 %v3028
    %3493 = vmatprep.subr.bf16.mxu0 %v3033
    %3494 = vmatpush1.bf16.msra.mxu0 %v3032
    %3495 = vmatprep.subr.bf16.mxu0 %v3037
    %3496 = vmatpush1.bf16.msra.mxu0 %v3036
    %3497 = vmatprep.mubr.bf16.mxu0 %v1861
    %3498 = vmatmul.mubr.bf16.gmra.mrb[0].mxu0 %v1860
    %v3499 = vpop.f32.mrb[0].mxu0
    %v3500 = vadd.f32 %v3459, %v3499
    %v3501 = vpop.f32.mrb[0].mxu0
    %v3502 = vadd.f32 %v3461, %v3501
    %v3503 = vpop.f32.mrb[0].mxu0
    %v3504 = vpop.f32.mrb[0].mxu0
    %3505 = vdwg.mxu0
    %3506 = vmatprep.subr.bf16.mxu0 %v3041
    %3507 = vmatpush1.bf16.msra.mxu0 %v3040
    %3508 = vmatprep.subr.bf16.mxu0 %v3045
    %3509 = vmatpush1.bf16.msra.mxu0 %v3044
    %3510 = vmatprep.subr.bf16.mxu0 %v3049
    %3511 = vmatpush1.bf16.msra.mxu0 %v3048
    %3512 = vmatprep.subr.bf16.mxu0 %v3053
    %3513 = vmatpush1.bf16.msra.mxu0 %v3052
    %3514 = vmatprep.subr.bf16.mxu0 %v3057
    %3515 = vmatpush1.bf16.msra.mxu0 %v3056
    %3516 = vmatprep.subr.bf16.mxu0 %v3061
    %3517 = vmatpush1.bf16.msra.mxu0 %v3060
    %3518 = vmatprep.subr.bf16.mxu0 %v3065
    %3519 = vmatpush1.bf16.msra.mxu0 %v3064
    %3520 = vmatprep.subr.bf16.mxu0 %v3069
    %3521 = vmatpush1.bf16.msra.mxu0 %v3068
    %3522 = vmatprep.subr.bf16.mxu0 %v3073
    %3523 = vmatpush1.bf16.msra.mxu0 %v3072
    %3524 = vmatprep.subr.bf16.mxu0 %v3077
    %3525 = vmatpush1.bf16.msra.mxu0 %v3076
    %3526 = vmatprep.subr.bf16.mxu0 %v3081
    %3527 = vmatpush1.bf16.msra.mxu0 %v3080
    %3528 = vmatprep.subr.bf16.mxu0 %v3085
    %3529 = vmatpush1.bf16.msra.mxu0 %v3084
    %3530 = vmatprep.subr.bf16.mxu0 %v3089
    %3531 = vmatpush1.bf16.msra.mxu0 %v3088
    %3532 = vmatprep.subr.bf16.mxu0 %v3093
    %3533 = vmatpush1.bf16.msra.mxu0 %v3092
    %3534 = vmatprep.subr.bf16.mxu0 %v3097
    %3535 = vmatpush1.bf16.msra.mxu0 %v3096
    %3536 = vmatprep.subr.bf16.mxu0 %v3101
    %3537 = vmatpush1.bf16.msra.mxu0 %v3100
    %3538 = vmatprep.mubr.bf16.mxu0 %v1863
    %3539 = vmatmul.mubr.bf16.gmra.mrb[0].mxu0 %v1862
    %v3540 = vpop.f32.mrb[0].mxu0
    %v3541 = vadd.f32 %v3500, %v3540
    %v3542 = vpop.f32.mrb[0].mxu0
    %v3543 = vadd.f32 %v3502, %v3542
    %v3544 = vpop.f32.mrb[0].mxu0
    %v3545 = vpop.f32.mrb[0].mxu0
    %3546 = vdwg.mxu0
    %3547 = vmatprep.subr.bf16.mxu0 %v3105
    %3548 = vmatpush1.bf16.msra.mxu0 %v3104
    %3549 = vmatprep.subr.bf16.mxu0 %v3109
    %3550 = vmatpush1.bf16.msra.mxu0 %v3108
    %3551 = vmatprep.subr.bf16.mxu0 %v3113
    %3552 = vmatpush1.bf16.msra.mxu0 %v3112
    %3553 = vmatprep.subr.bf16.mxu0 %v3117
    %3554 = vmatpush1.bf16.msra.mxu0 %v3116
    %3555 = vmatprep.subr.bf16.mxu0 %v3121
    %3556 = vmatpush1.bf16.msra.mxu0 %v3120
    %3557 = vmatprep.subr.bf16.mxu0 %v3125
    %3558 = vmatpush1.bf16.msra.mxu0 %v3124
    %3559 = vmatprep.subr.bf16.mxu0 %v3129
    %3560 = vmatpush1.bf16.msra.mxu0 %v3128
    %3561 = vmatprep.subr.bf16.mxu0 %v3133
    %3562 = vmatpush1.bf16.msra.mxu0 %v3132
    %3563 = vmatprep.subr.bf16.mxu0 %v3137
    %3564 = vmatpush1.bf16.msra.mxu0 %v3136
    %3565 = vmatprep.subr.bf16.mxu0 %v3141
    %3566 = vmatpush1.bf16.msra.mxu0 %v3140
    %3567 = vmatprep.subr.bf16.mxu0 %v3145
    %3568 = vmatpush1.bf16.msra.mxu0 %v3144
    %3569 = vmatprep.subr.bf16.mxu0 %v3149
    %3570 = vmatpush1.bf16.msra.mxu0 %v3148
    %3571 = vmatprep.subr.bf16.mxu0 %v3153
    %3572 = vmatpush1.bf16.msra.mxu0 %v3152
    %3573 = vmatprep.subr.bf16.mxu0 %v3157
    %3574 = vmatpush1.bf16.msra.mxu0 %v3156
    %3575 = vmatprep.subr.bf16.mxu0 %v3161
    %3576 = vmatpush1.bf16.msra.mxu0 %v3160
    %3577 = vmatprep.subr.bf16.mxu0 %v3165
    %3578 = vmatpush1.bf16.msra.mxu0 %v3164
    %3579 = vmatprep.mubr.bf16.mxu0 %v1865
    %3580 = vmatmul.mubr.bf16.gmra.mrb[0].mxu0 %v1864
    %v3581 = vpop.f32.mrb[0].mxu0
    %v3582 = vadd.f32 %v3541, %v3581
    %v3583 = vpop.f32.mrb[0].mxu0
    %v3584 = vadd.f32 %v3543, %v3583
    %v3585 = vpop.f32.mrb[0].mxu0
    %v3586 = vpop.f32.mrb[0].mxu0
    %3587 = vdwg.mxu0
    %3588 = vmatprep.subr.bf16.mxu0 %v2915
    %3589 = vmatpush1.bf16.msra.mxu0 %v2914
    %3590 = vmatprep.subr.bf16.mxu0 %v2919
    %3591 = vmatpush1.bf16.msra.mxu0 %v2918
    %3592 = vmatprep.subr.bf16.mxu0 %v2923
    %3593 = vmatpush1.bf16.msra.mxu0 %v2922
    %3594 = vmatprep.subr.bf16.mxu0 %v2927
    %3595 = vmatpush1.bf16.msra.mxu0 %v2926
    %3596 = vmatprep.subr.bf16.mxu0 %v2931
    %3597 = vmatpush1.bf16.msra.mxu0 %v2930
    %3598 = vmatprep.subr.bf16.mxu0 %v2935
    %3599 = vmatpush1.bf16.msra.mxu0 %v2934
    %3600 = vmatprep.subr.bf16.mxu0 %v2939
    %3601 = vmatpush1.bf16.msra.mxu0 %v2938
    %3602 = vmatprep.subr.bf16.mxu0 %v2943
    %3603 = vmatpush1.bf16.msra.mxu0 %v2942
    %3604 = vmatprep.subr.bf16.mxu0 %v2947
    %3605 = vmatpush1.bf16.msra.mxu0 %v2946
    %3606 = vmatprep.subr.bf16.mxu0 %v2951
    %3607 = vmatpush1.bf16.msra.mxu0 %v2950
    %3608 = vmatprep.subr.bf16.mxu0 %v2955
    %3609 = vmatpush1.bf16.msra.mxu0 %v2954
    %3610 = vmatprep.subr.bf16.mxu0 %v2959
    %3611 = vmatpush1.bf16.msra.mxu0 %v2958
    %3612 = vmatprep.subr.bf16.mxu0 %v2963
    %3613 = vmatpush1.bf16.msra.mxu0 %v2962
    %3614 = vmatprep.subr.bf16.mxu0 %v2967
    %3615 = vmatpush1.bf16.msra.mxu0 %v2966
    %3616 = vmatprep.subr.bf16.mxu0 %v2971
    %3617 = vmatpush1.bf16.msra.mxu0 %v2970
    %3618 = vmatprep.subr.bf16.mxu0 %v2975
    %3619 = vmatpush1.bf16.msra.mxu0 %v2974
    %3620 = vmatprep.mubr.bf16.mxu0 %v1859
    %3621 = vmatmul.mubr.bf16.gmra.mrb[0].mxu0 %v1858
    %v3622 = vpop.f32.mrb[0].mxu0
    %v3623 = vadd.f32 %v2135, %v3622
    %v3624 = vpop.f32.mrb[0].mxu0
    %v3625 = vadd.f32 %v2139, %v3624
    %v3626 = vpop.f32.mrb[0].mxu0
    %v3627 = vpop.f32.mrb[0].mxu0
    %3628 = vdwg.mxu0
    %3629 = vmatprep.subr.bf16.mxu0 %v2979
    %3630 = vmatpush1.bf16.msra.mxu0 %v2978
    %3631 = vmatprep.subr.bf16.mxu0 %v2983
    %3632 = vmatpush1.bf16.msra.mxu0 %v2982
    %3633 = vmatprep.subr.bf16.mxu0 %v2987
    %3634 = vmatpush1.bf16.msra.mxu0 %v2986
    %3635 = vmatprep.subr.bf16.mxu0 %v2991
    %3636 = vmatpush1.bf16.msra.mxu0 %v2990
    %3637 = vmatprep.subr.bf16.mxu0 %v2995
    %3638 = vmatpush1.bf16.msra.mxu0 %v2994
    %3639 = vmatprep.subr.bf16.mxu0 %v2999
    %3640 = vmatpush1.bf16.msra.mxu0 %v2998
    %3641 = vmatprep.subr.bf16.mxu0 %v3003
    %3642 = vmatpush1.bf16.msra.mxu0 %v3002
    %3643 = vmatprep.subr.bf16.mxu0 %v3007
    %3644 = vmatpush1.bf16.msra.mxu0 %v3006
    %3645 = vmatprep.subr.bf16.mxu0 %v3011
    %3646 = vmatpush1.bf16.msra.mxu0 %v3010
    %3647 = vmatprep.subr.bf16.mxu0 %v3015
    %3648 = vmatpush1.bf16.msra.mxu0 %v3014
    %3649 = vmatprep.subr.bf16.mxu0 %v3019
    %3650 = vmatpush1.bf16.msra.mxu0 %v3018
    %3651 = vmatprep.subr.bf16.mxu0 %v3023
    %3652 = vmatpush1.bf16.msra.mxu0 %v3022
    %3653 = vmatprep.subr.bf16.mxu0 %v3027
    %3654 = vmatpush1.bf16.msra.mxu0 %v3026
    %3655 = vmatprep.subr.bf16.mxu0 %v3031
    %3656 = vmatpush1.bf16.msra.mxu0 %v3030
    %3657 = vmatprep.subr.bf16.mxu0 %v3035
    %3658 = vmatpush1.bf16.msra.mxu0 %v3034
    %3659 = vmatprep.subr.bf16.mxu0 %v3039
    %3660 = vmatpush1.bf16.msra.mxu0 %v3038
    %3661 = vmatprep.mubr.bf16.mxu0 %v1861
    %3662 = vmatmul.mubr.bf16.gmra.mrb[0].mxu0 %v1860
    %v3663 = vpop.f32.mrb[0].mxu0
    %v3664 = vadd.f32 %v3623, %v3663
    %v3665 = vpop.f32.mrb[0].mxu0
    %v3666 = vadd.f32 %v3625, %v3665
    %v3667 = vpop.f32.mrb[0].mxu0
    %v3668 = vpop.f32.mrb[0].mxu0
    %3669 = vdwg.mxu0
    %3670 = vmatprep.subr.bf16.mxu0 %v3043
    %3671 = vmatpush1.bf16.msra.mxu0 %v3042
    %3672 = vmatprep.subr.bf16.mxu0 %v3047
    %3673 = vmatpush1.bf16.msra.mxu0 %v3046
    %3674 = vmatprep.subr.bf16.mxu0 %v3051
    %3675 = vmatpush1.bf16.msra.mxu0 %v3050
    %3676 = vmatprep.subr.bf16.mxu0 %v3055
    %3677 = vmatpush1.bf16.msra.mxu0 %v3054
    %3678 = vmatprep.subr.bf16.mxu0 %v3059
    %3679 = vmatpush1.bf16.msra.mxu0 %v3058
    %3680 = vmatprep.subr.bf16.mxu0 %v3063
    %3681 = vmatpush1.bf16.msra.mxu0 %v3062
    %3682 = vmatprep.subr.bf16.mxu0 %v3067
    %3683 = vmatpush1.bf16.msra.mxu0 %v3066
    %3684 = vmatprep.subr.bf16.mxu0 %v3071
    %3685 = vmatpush1.bf16.msra.mxu0 %v3070
    %3686 = vmatprep.subr.bf16.mxu0 %v3075
    %3687 = vmatpush1.bf16.msra.mxu0 %v3074
    %3688 = vmatprep.subr.bf16.mxu0 %v3079
    %3689 = vmatpush1.bf16.msra.mxu0 %v3078
    %3690 = vmatprep.subr.bf16.mxu0 %v3083
    %3691 = vmatpush1.bf16.msra.mxu0 %v3082
    %3692 = vmatprep.subr.bf16.mxu0 %v3087
    %3693 = vmatpush1.bf16.msra.mxu0 %v3086
    %3694 = vmatprep.subr.bf16.mxu0 %v3091
    %3695 = vmatpush1.bf16.msra.mxu0 %v3090
    %3696 = vmatprep.subr.bf16.mxu0 %v3095
    %3697 = vmatpush1.bf16.msra.mxu0 %v3094
    %3698 = vmatprep.subr.bf16.mxu0 %v3099
    %3699 = vmatpush1.bf16.msra.mxu0 %v3098
    %3700 = vmatprep.subr.bf16.mxu0 %v3103
    %3701 = vmatpush1.bf16.msra.mxu0 %v3102
    %3702 = vmatprep.mubr.bf16.mxu0 %v1863
    %3703 = vmatmul.mubr.bf16.gmra.mrb[0].mxu0 %v1862
    %v3704 = vpop.f32.mrb[0].mxu0
    %v3705 = vadd.f32 %v3664, %v3704
    %v3706 = vpop.f32.mrb[0].mxu0
    %v3707 = vadd.f32 %v3666, %v3706
    %v3708 = vpop.f32.mrb[0].mxu0
    %v3709 = vpop.f32.mrb[0].mxu0
    %3710 = vdwg.mxu0
    %3711 = vmatprep.subr.bf16.mxu0 %v3107
    %3712 = vmatpush1.bf16.msra.mxu0 %v3106
    %3713 = vmatprep.subr.bf16.mxu0 %v3111
    %3714 = vmatpush1.bf16.msra.mxu0 %v3110
    %3715 = vmatprep.subr.bf16.mxu0 %v3115
    %3716 = vmatpush1.bf16.msra.mxu0 %v3114
    %3717 = vmatprep.subr.bf16.mxu0 %v3119
    %3718 = vmatpush1.bf16.msra.mxu0 %v3118
    %3719 = vmatprep.subr.bf16.mxu0 %v3123
    %3720 = vmatpush1.bf16.msra.mxu0 %v3122
    %3721 = vmatprep.subr.bf16.mxu0 %v3127
    %3722 = vmatpush1.bf16.msra.mxu0 %v3126
    %3723 = vmatprep.subr.bf16.mxu0 %v3131
    %3724 = vmatpush1.bf16.msra.mxu0 %v3130
    %3725 = vmatprep.subr.bf16.mxu0 %v3135
    %3726 = vmatpush1.bf16.msra.mxu0 %v3134
    %3727 = vmatprep.subr.bf16.mxu0 %v3139
    %3728 = vmatpush1.bf16.msra.mxu0 %v3138
    %3729 = vmatprep.subr.bf16.mxu0 %v3143
    %3730 = vmatpush1.bf16.msra.mxu0 %v3142
    %3731 = vmatprep.subr.bf16.mxu0 %v3147
    %3732 = vmatpush1.bf16.msra.mxu0 %v3146
    %3733 = vmatprep.subr.bf16.mxu0 %v3151
    %3734 = vmatpush1.bf16.msra.mxu0 %v3150
    %3735 = vmatprep.subr.bf16.mxu0 %v3155
    %3736 = vmatpush1.bf16.msra.mxu0 %v3154
    %3737 = vmatprep.subr.bf16.mxu0 %v3159
    %3738 = vmatpush1.bf16.msra.mxu0 %v3158
    %3739 = vmatprep.subr.bf16.mxu0 %v3163
    %3740 = vmatpush1.bf16.msra.mxu0 %v3162
    %3741 = vmatprep.subr.bf16.mxu0 %v3167
    %3742 = vmatpush1.bf16.msra.mxu0 %v3166
    %3743 = vmatprep.mubr.bf16.mxu0 %v1865
    %3744 = vmatmul.mubr.bf16.gmra.mrb[0].mxu0 %v1864
    %v3745 = vpop.f32.mrb[0].mxu0
    %v3746 = vadd.f32 %v3705, %v3745
    %v3747 = vpop.f32.mrb[0].mxu0
    %v3748 = vadd.f32 %v3707, %v3747
    %v3749 = vpop.f32.mrb[0].mxu0
    %v3750 = vpop.f32.mrb[0].mxu0
    %3751 = vdwg.mxu0
    %v3752 = vxor.u32 %v3582, 2147483648
    %v3753 = vxor.u32 %v3584, 2147483648
    %v3754 = vxor.u32 %v3746, 2147483648
    %v3755 = vxor.u32 %v3748, 2147483648
    %v3756 = vmul.f32 %v3752, 1.442695
    %v3757 = vpow.pop %v3756
    %v3758 = vmul.f32 %v3753, 1.442695
    %v3759 = vpow.pop %v3758
    %v3760 = vmul.f32 %v3754, 1.442695
    %v3761 = vpow.pop %v3760
    %v3762 = vmul.f32 %v3755, 1.442695
    %v3763 = vpow.pop %v3762
    %v3764 = vadd.f32 %v3757, 1.0
    %v3765 = vadd.f32 %v3759, 1.0
    %v3766 = vadd.f32 %v3761, 1.0
    %v3767 = vadd.f32 %v3763, 1.0
    %v3768 = vrcp.pop %v3764
    %v3769 = vmul.f32 1.0, %v3768
    %v3770 = vrcp.pop %v3765
    %v3771 = vmul.f32 1.0, %v3770
    %v3772 = vrcp.pop %v3766
    %v3773 = vmul.f32 1.0, %v3772
    %v3774 = vrcp.pop %v3767
    %v3775 = vmul.f32 1.0, %v3774
    %v3776 = vpack.c.bf16 %v3769, %v3769
    %v3777 = vpack.c.bf16 %v3771, %v3771
    %v3778 = vpack.c.bf16 %v3773, %v3773
    %v3779 = vpack.c.bf16 %v3775, %v3775
    %v3780 = vld [vmem:[#allocation10] sm:$0xf]
    %v3781 = vld [vmem:[#allocation10 + $0x4] sm:$0xf]
    %v3782 = vld [vmem:[#allocation10 + $0x8] sm:$0xf]
    %v3783 = vld [vmem:[#allocation10 + $0xc] sm:$0xf]
    %v3784 = vld [vmem:[#allocation10 + $0x10] sm:$0xf]
    %v3785 = vld [vmem:[#allocation10 + $0x14] sm:$0xf]
    %v3786 = vld [vmem:[#allocation10 + $0x18] sm:$0xf]
    %v3787 = vld [vmem:[#allocation10 + $0x1c] sm:$0xf]
    %v3788 = vld [vmem:[#allocation10 + $0x20] sm:$0xf]
    %v3789 = vld [vmem:[#allocation10 + $0x24] sm:$0xf]
    %v3790 = vld [vmem:[#allocation10 + $0x28] sm:$0xf]
    %v3791 = vld [vmem:[#allocation10 + $0x2c] sm:$0xf]
    %v3792 = vld [vmem:[#allocation10 + $0x30] sm:$0xf]
    %v3793 = vld [vmem:[#allocation10 + $0x34] sm:$0xf]
    %v3794 = vld [vmem:[#allocation10 + $0x38] sm:$0xf]
    %v3795 = vld [vmem:[#allocation10 + $0x3c] sm:$0xf]
    %v3796 = vld [vmem:[#allocation10 + $0x40] sm:$0xf]
    %v3797 = vld [vmem:[#allocation10 + $0x44] sm:$0xf]
    %v3798 = vld [vmem:[#allocation10 + $0x48] sm:$0xf]
    %v3799 = vld [vmem:[#allocation10 + $0x4c] sm:$0xf]
    %v3800 = vld [vmem:[#allocation10 + $0x50] sm:$0xf]
    %v3801 = vld [vmem:[#allocation10 + $0x54] sm:$0xf]
    %v3802 = vld [vmem:[#allocation10 + $0x58] sm:$0xf]
    %v3803 = vld [vmem:[#allocation10 + $0x5c] sm:$0xf]
    %v3804 = vld [vmem:[#allocation10 + $0x60] sm:$0xf]
    %v3805 = vld [vmem:[#allocation10 + $0x64] sm:$0xf]
    %v3806 = vld [vmem:[#allocation10 + $0x68] sm:$0xf]
    %v3807 = vld [vmem:[#allocation10 + $0x6c] sm:$0xf]
    %v3808 = vld [vmem:[#allocation10 + $0x70] sm:$0xf]
    %v3809 = vld [vmem:[#allocation10 + $0x74] sm:$0xf]
    %v3810 = vld [vmem:[#allocation10 + $0x78] sm:$0xf]
    %v3811 = vld [vmem:[#allocation10 + $0x7c] sm:$0xf]
    %v3812 = vld [vmem:[#allocation10 + $0x80] sm:$0xf]
    %v3813 = vld [vmem:[#allocation10 + $0x84] sm:$0xf]
    %v3814 = vld [vmem:[#allocation10 + $0x88] sm:$0xf]
    %v3815 = vld [vmem:[#allocation10 + $0x8c] sm:$0xf]
    %v3816 = vld [vmem:[#allocation10 + $0x90] sm:$0xf]
    %v3817 = vld [vmem:[#allocation10 + $0x94] sm:$0xf]
    %v3818 = vld [vmem:[#allocation10 + $0x98] sm:$0xf]
    %v3819 = vld [vmem:[#allocation10 + $0x9c] sm:$0xf]
    %v3820 = vld [vmem:[#allocation10 + $0xa0] sm:$0xf]
    %v3821 = vld [vmem:[#allocation10 + $0xa4] sm:$0xf]
    %v3822 = vld [vmem:[#allocation10 + $0xa8] sm:$0xf]
    %v3823 = vld [vmem:[#allocation10 + $0xac] sm:$0xf]
    %v3824 = vld [vmem:[#allocation10 + $0xb0] sm:$0xf]
    %v3825 = vld [vmem:[#allocation10 + $0xb4] sm:$0xf]
    %v3826 = vld [vmem:[#allocation10 + $0xb8] sm:$0xf]
    %v3827 = vld [vmem:[#allocation10 + $0xbc] sm:$0xf]
    %v3828 = vld [vmem:[#allocation10 + $0xc0] sm:$0xf]
    %v3829 = vld [vmem:[#allocation10 + $0xc4] sm:$0xf]
    %v3830 = vld [vmem:[#allocation10 + $0xc8] sm:$0xf]
    %v3831 = vld [vmem:[#allocation10 + $0xcc] sm:$0xf]
    %v3832 = vld [vmem:[#allocation10 + $0xd0] sm:$0xf]
    %v3833 = vld [vmem:[#allocation10 + $0xd4] sm:$0xf]
    %v3834 = vld [vmem:[#allocation10 + $0xd8] sm:$0xf]
    %v3835 = vld [vmem:[#allocation10 + $0xdc] sm:$0xf]
    %v3836 = vld [vmem:[#allocation10 + $0xe0] sm:$0xf]
    %v3837 = vld [vmem:[#allocation10 + $0xe4] sm:$0xf]
    %v3838 = vld [vmem:[#allocation10 + $0xe8] sm:$0xf]
    %v3839 = vld [vmem:[#allocation10 + $0xec] sm:$0xf]
    %v3840 = vld [vmem:[#allocation10 + $0xf0] sm:$0xf]
    %v3841 = vld [vmem:[#allocation10 + $0xf4] sm:$0xf]
    %v3842 = vld [vmem:[#allocation10 + $0xf8] sm:$0xf]
    %v3843 = vld [vmem:[#allocation10 + $0xfc] sm:$0xf]
    %v3844 = vld [vmem:[%s6] sm:$0x1]
    %v3846 = vlaneseq
    %v3847 = vshrl.u32 %v3846, 7
    %v3848 = vsub.s32 0, %v3847
    %v3849 = vrot.slane %v3844, %v3848
    %v3915 = vunpack.c.l.b16 %v3780
    %v3916 = vunpack.c.l.b16 %v3781
    %v3917 = vunpack.c.l.b16 %v3782
    %v3918 = vunpack.c.l.b16 %v3783
    %v3919 = vunpack.c.l.b16 %v3784
    %v3920 = vunpack.c.l.b16 %v3785
    %v3921 = vunpack.c.l.b16 %v3786
    %v3922 = vunpack.c.l.b16 %v3787
    %v3923 = vunpack.c.l.b16 %v3788
    %v3924 = vunpack.c.l.b16 %v3789
    %v3925 = vunpack.c.l.b16 %v3790
    %v3926 = vunpack.c.l.b16 %v3791
    %v3927 = vunpack.c.l.b16 %v3792
    %v3928 = vunpack.c.l.b16 %v3793
    %v3929 = vunpack.c.l.b16 %v3794
    %v3930 = vunpack.c.l.b16 %v3795
    %v3931 = vunpack.c.l.b16 %v3796
    %v3932 = vunpack.c.l.b16 %v3797
    %v3933 = vunpack.c.l.b16 %v3798
    %v3934 = vunpack.c.l.b16 %v3799
    %v3935 = vunpack.c.l.b16 %v3800
    %v3936 = vunpack.c.l.b16 %v3801
    %v3937 = vunpack.c.l.b16 %v3802
    %v3938 = vunpack.c.l.b16 %v3803
    %v3939 = vunpack.c.l.b16 %v3804
    %v3940 = vunpack.c.l.b16 %v3805
    %v3941 = vunpack.c.l.b16 %v3806
    %v3942 = vunpack.c.l.b16 %v3807
    %v3943 = vunpack.c.l.b16 %v3808
    %v3944 = vunpack.c.l.b16 %v3809
    %v3945 = vunpack.c.l.b16 %v3810
    %v3946 = vunpack.c.l.b16 %v3811
    %v3947 = vunpack.c.l.b16 %v3812
    %v3948 = vunpack.c.l.b16 %v3813
    %v3949 = vunpack.c.l.b16 %v3814
    %v3950 = vunpack.c.l.b16 %v3815
    %v3951 = vunpack.c.l.b16 %v3816
    %v3952 = vunpack.c.l.b16 %v3817
    %v3953 = vunpack.c.l.b16 %v3818
    %v3954 = vunpack.c.l.b16 %v3819
    %v3955 = vunpack.c.l.b16 %v3820
    %v3956 = vunpack.c.l.b16 %v3821
    %v3957 = vunpack.c.l.b16 %v3822
    %v3958 = vunpack.c.l.b16 %v3823
    %v3959 = vunpack.c.l.b16 %v3824
    %v3960 = vunpack.c.l.b16 %v3825
    %v3961 = vunpack.c.l.b16 %v3826
    %v3962 = vunpack.c.l.b16 %v3827
    %v3963 = vunpack.c.l.b16 %v3828
    %v3964 = vunpack.c.l.b16 %v3829
    %v3965 = vunpack.c.l.b16 %v3830
    %v3966 = vunpack.c.l.b16 %v3831
    %v3967 = vunpack.c.l.b16 %v3832
    %v3968 = vunpack.c.l.b16 %v3833
    %v3969 = vunpack.c.l.b16 %v3834
    %v3970 = vunpack.c.l.b16 %v3835
    %v3971 = vunpack.c.l.b16 %v3836
    %v3972 = vunpack.c.l.b16 %v3837
    %v3973 = vunpack.c.l.b16 %v3838
    %v3974 = vunpack.c.l.b16 %v3839
    %v3975 = vunpack.c.l.b16 %v3840
    %v3976 = vunpack.c.l.b16 %v3841
    %v3977 = vunpack.c.l.b16 %v3842
    %v3978 = vunpack.c.l.b16 %v3843
    %v3979 = vpack.c.b16 %v3916, %v3915
    %v3980 = vpack.c.b16 %v3918, %v3917
    %v3981 = vpack.c.b16 %v3920, %v3919
    %v3982 = vpack.c.b16 %v3922, %v3921
    %v3983 = vpack.c.b16 %v3924, %v3923
    %v3984 = vpack.c.b16 %v3926, %v3925
    %v3985 = vpack.c.b16 %v3928, %v3927
    %v3986 = vpack.c.b16 %v3930, %v3929
    %v3987 = vpack.c.b16 %v3932, %v3931
    %v3988 = vpack.c.b16 %v3934, %v3933
    %v3989 = vpack.c.b16 %v3936, %v3935
    %v3990 = vpack.c.b16 %v3938, %v3937
    %v3991 = vpack.c.b16 %v3940, %v3939
    %v3992 = vpack.c.b16 %v3942, %v3941
    %v3993 = vpack.c.b16 %v3944, %v3943
    %v3994 = vpack.c.b16 %v3946, %v3945
    %v3995 = vpack.c.b16 %v3948, %v3947
    %v3996 = vpack.c.b16 %v3950, %v3949
    %v3997 = vpack.c.b16 %v3952, %v3951
    %v3998 = vpack.c.b16 %v3954, %v3953
    %v3999 = vpack.c.b16 %v3956, %v3955
    %v4000 = vpack.c.b16 %v3958, %v3957
    %v4001 = vpack.c.b16 %v3960, %v3959
    %v4002 = vpack.c.b16 %v3962, %v3961
    %v4003 = vpack.c.b16 %v3964, %v3963
    %v4004 = vpack.c.b16 %v3966, %v3965
    %v4005 = vpack.c.b16 %v3968, %v3967
    %v4006 = vpack.c.b16 %v3970, %v3969
    %v4007 = vpack.c.b16 %v3972, %v3971
    %v4008 = vpack.c.b16 %v3974, %v3973
    %v4009 = vpack.c.b16 %v3976, %v3975
    %v4010 = vpack.c.b16 %v3978, %v3977
    %4043 = vmatprep.subr.bf16.mxu0 0
    %4044 = vmatpush1.bf16.msra.mxu0 %v3979
    %4045 = vmatprep.subr.bf16.mxu0 0
    %4046 = vmatpush1.bf16.msra.mxu0 %v3980
    %4047 = vmatprep.subr.bf16.mxu0 0
    %4048 = vmatpush1.bf16.msra.mxu0 %v3981
    %4049 = vmatprep.subr.bf16.mxu0 0
    %4050 = vmatpush1.bf16.msra.mxu0 %v3982
    %4051 = vmatprep.subr.bf16.mxu0 0
    %4052 = vmatpush1.bf16.msra.mxu0 %v3983
    %4053 = vmatprep.subr.bf16.mxu0 0
    %4054 = vmatpush1.bf16.msra.mxu0 %v3984
    %4055 = vmatprep.subr.bf16.mxu0 0
    %4056 = vmatpush1.bf16.msra.mxu0 %v3985
    %4057 = vmatprep.subr.bf16.mxu0 0
    %4058 = vmatpush1.bf16.msra.mxu0 %v3986
    %4059 = vmatprep.subr.bf16.mxu0 0
    %4060 = vmatpush1.bf16.msra.mxu0 %v3987
    %4061 = vmatprep.subr.bf16.mxu0 0
    %4062 = vmatpush1.bf16.msra.mxu0 %v3988
    %4063 = vmatprep.subr.bf16.mxu0 0
    %4064 = vmatpush1.bf16.msra.mxu0 %v3989
    %4065 = vmatprep.subr.bf16.mxu0 0
    %4066 = vmatpush1.bf16.msra.mxu0 %v3990
    %4067 = vmatprep.subr.bf16.mxu0 0
    %4068 = vmatpush1.bf16.msra.mxu0 %v3991
    %4069 = vmatprep.subr.bf16.mxu0 0
    %4070 = vmatpush1.bf16.msra.mxu0 %v3992
    %4071 = vmatprep.subr.bf16.mxu0 0
    %4072 = vmatpush1.bf16.msra.mxu0 %v3993
    %4073 = vmatprep.subr.bf16.mxu0 0
    %4074 = vmatpush1.bf16.msra.mxu0 %v3994
    %4075 = vmatprep.mubr.bf16.mxu0 %v3777
    %4076 = vmatmul.mubr.bf16.gmra.mrb[0].mxu0 %v3776
    %v4077 = vpop.f32.mrb[0].mxu0
    %v4078 = vadd.f32 %v3849, %v4077
    %v4079 = vpop.f32.mrb[0].mxu0
    %v4080 = vpop.f32.mrb[0].mxu0
    %v4081 = vpop.f32.mrb[0].mxu0
    %4082 = vdwg.mxu0
    %4083 = vmatprep.subr.bf16.mxu0 0
    %4084 = vmatpush1.bf16.msra.mxu0 %v3995
    %4085 = vmatprep.subr.bf16.mxu0 0
    %4086 = vmatpush1.bf16.msra.mxu0 %v3996
    %4087 = vmatprep.subr.bf16.mxu0 0
    %4088 = vmatpush1.bf16.msra.mxu0 %v3997
    %4089 = vmatprep.subr.bf16.mxu0 0
    %4090 = vmatpush1.bf16.msra.mxu0 %v3998
    %4091 = vmatprep.subr.bf16.mxu0 0
    %4092 = vmatpush1.bf16.msra.mxu0 %v3999
    %4093 = vmatprep.subr.bf16.mxu0 0
    %4094 = vmatpush1.bf16.msra.mxu0 %v4000
    %4095 = vmatprep.subr.bf16.mxu0 0
    %4096 = vmatpush1.bf16.msra.mxu0 %v4001
    %4097 = vmatprep.subr.bf16.mxu0 0
    %4098 = vmatpush1.bf16.msra.mxu0 %v4002
    %4099 = vmatprep.subr.bf16.mxu0 0
    %4100 = vmatpush1.bf16.msra.mxu0 %v4003
    %4101 = vmatprep.subr.bf16.mxu0 0
    %4102 = vmatpush1.bf16.msra.mxu0 %v4004
    %4103 = vmatprep.subr.bf16.mxu0 0
    %4104 = vmatpush1.bf16.msra.mxu0 %v4005
    %4105 = vmatprep.subr.bf16.mxu0 0
    %4106 = vmatpush1.bf16.msra.mxu0 %v4006
    %4107 = vmatprep.subr.bf16.mxu0 0
    %4108 = vmatpush1.bf16.msra.mxu0 %v4007
    %4109 = vmatprep.subr.bf16.mxu0 0
    %4110 = vmatpush1.bf16.msra.mxu0 %v4008
    %4111 = vmatprep.subr.bf16.mxu0 0
    %4112 = vmatpush1.bf16.msra.mxu0 %v4009
    %4113 = vmatprep.subr.bf16.mxu0 0
    %4114 = vmatpush1.bf16.msra.mxu0 %v4010
    %4115 = vmatprep.mubr.bf16.mxu0 %v3779
    %4116 = vmatmul.mubr.bf16.gmra.mrb[0].mxu0 %v3778
    %v4117 = vpop.f32.mrb[0].mxu0
    %v4118 = vadd.f32 %v4078, %v4117
    %v4119 = vpop.f32.mrb[0].mxu0
    %v4120 = vpop.f32.mrb[0].mxu0
    %v4121 = vpop.f32.mrb[0].mxu0
    %4122 = vdwg.mxu0
    %v4123 = vxor.u32 %v4118, 2147483648
    %v4124 = vmul.f32 %v4123, 1.442695
    %v4125 = vpow.pop %v4124
    %v4126 = vadd.f32 %v4125, 1.0
    %v4127 = vrcp.pop %v4126
    %v4128 = vmul.f32 1.0, %v4127
    %v4129 = vpack.c.bf16 %v4128, %v4128
    %v4130 = vld [vmem:[#allocation11] sm:$0xf]
    %v4131 = vld [vmem:[#allocation11 + $0x4] sm:$0xf]
    %v4132 = vld [vmem:[#allocation11 + $0x8] sm:$0xf]
    %v4133 = vld [vmem:[#allocation11 + $0xc] sm:$0xf]
    %v4134 = vld [vmem:[#allocation11 + $0x10] sm:$0xf]
    %v4135 = vld [vmem:[#allocation11 + $0x14] sm:$0xf]
    %v4136 = vld [vmem:[#allocation11 + $0x18] sm:$0xf]
    %v4137 = vld [vmem:[#allocation11 + $0x1c] sm:$0xf]
    %v4138 = vld [vmem:[#allocation11 + $0x20] sm:$0xf]
    %v4139 = vld [vmem:[#allocation11 + $0x24] sm:$0xf]
    %v4140 = vld [vmem:[#allocation11 + $0x28] sm:$0xf]
    %v4141 = vld [vmem:[#allocation11 + $0x2c] sm:$0xf]
    %v4142 = vld [vmem:[#allocation11 + $0x30] sm:$0xf]
    %v4143 = vld [vmem:[#allocation11 + $0x34] sm:$0xf]
    %v4144 = vld [vmem:[#allocation11 + $0x38] sm:$0xf]
    %v4145 = vld [vmem:[#allocation11 + $0x3c] sm:$0xf]
    %v4146 = vld [vmem:[%s8] sm:$0x1]
    %v4148 = vlaneseq
    %v4149 = vshrl.u32 %v4148, 7
    %v4150 = vsub.s32 0, %v4149
    %v4151 = vrot.slane %v4146, %v4150
    %v4169 = vunpack.c.l.b16 %v4130
    %v4170 = vunpack.c.l.b16 %v4131
    %v4171 = vunpack.c.l.b16 %v4132
    %v4172 = vunpack.c.l.b16 %v4133
    %v4173 = vunpack.c.l.b16 %v4134
    %v4174 = vunpack.c.l.b16 %v4135
    %v4175 = vunpack.c.l.b16 %v4136
    %v4176 = vunpack.c.l.b16 %v4137
    %v4177 = vunpack.c.l.b16 %v4138
    %v4178 = vunpack.c.l.b16 %v4139
    %v4179 = vunpack.c.l.b16 %v4140
    %v4180 = vunpack.c.l.b16 %v4141
    %v4181 = vunpack.c.l.b16 %v4142
    %v4182 = vunpack.c.l.b16 %v4143
    %v4183 = vunpack.c.l.b16 %v4144
    %v4184 = vunpack.c.l.b16 %v4145
    %v4185 = vpack.c.b16 %v4170, %v4169
    %v4186 = vpack.c.b16 %v4172, %v4171
    %v4187 = vpack.c.b16 %v4174, %v4173
    %v4188 = vpack.c.b16 %v4176, %v4175
    %v4189 = vpack.c.b16 %v4178, %v4177
    %v4190 = vpack.c.b16 %v4180, %v4179
    %v4191 = vpack.c.b16 %v4182, %v4181
    %v4192 = vpack.c.b16 %v4184, %v4183
    %4201 = vmatprep.subr.bf16.mxu0 0
    %4202 = vmatpush1.bf16.msra.mxu0 %v4185
    %4203 = vmatprep.subr.bf16.mxu0 0
    %4204 = vmatpush1.bf16.msra.mxu0 %v4186
    %4205 = vmatprep.subr.bf16.mxu0 0
    %4206 = vmatpush1.bf16.msra.mxu0 %v4187
    %4207 = vmatprep.subr.bf16.mxu0 0
    %4208 = vmatpush1.bf16.msra.mxu0 %v4188
    %4209 = vmatprep.subr.bf16.mxu0 0
    %4210 = vmatpush1.bf16.msra.mxu0 %v4189
    %4211 = vmatprep.subr.bf16.mxu0 0
    %4212 = vmatpush1.bf16.msra.mxu0 %v4190
    %4213 = vmatprep.subr.bf16.mxu0 0
    %4214 = vmatpush1.bf16.msra.mxu0 %v4191
    %4215 = vmatprep.subr.bf16.mxu0 0
    %4216 = vmatpush1.bf16.msra.mxu0 %v4192
    %4217 = vmatprep.subr.bf16.mxu0 0
    %4218 = vmatpush1.bf16.msra.mxu0 0
    %4219 = vmatprep.subr.bf16.mxu0 0
    %4220 = vmatpush1.bf16.msra.mxu0 0
    %4221 = vmatprep.subr.bf16.mxu0 0
    %4222 = vmatpush1.bf16.msra.mxu0 0
    %4223 = vmatprep.subr.bf16.mxu0 0
    %4224 = vmatpush1.bf16.msra.mxu0 0
    %4225 = vmatprep.subr.bf16.mxu0 0
    %4226 = vmatpush1.bf16.msra.mxu0 0
    %4227 = vmatprep.subr.bf16.mxu0 0
    %4228 = vmatpush1.bf16.msra.mxu0 0
    %4229 = vmatprep.subr.bf16.mxu0 0
    %4230 = vmatpush1.bf16.msra.mxu0 0
    %4231 = vmatprep.subr.bf16.mxu0 0
    %4232 = vmatpush1.bf16.msra.mxu0 0
    %4233 = vmatprep.mubr.bf16.mxu0 0
    %4234 = vmatmul.mubr.bf16.gmra.mrb[0].mxu0 %v4129
    %v4235 = vpop.f32.mrb[0].mxu0
    %v4236 = vadd.f32 %v4151, %v4235
    %v4237 = vpop.f32.mrb[0].mxu0
    %v4238 = vpop.f32.mrb[0].mxu0
    %v4239 = vpop.f32.mrb[0].mxu0
    %4240 = vdwg.mxu0
    %4241 = vst [vmem:[#allocation13] sm:$0xff] %v4236
    // Predicated region
    $region62: #{classifier_forward.1} parent=1 // pred_check
      _
    $region63: #{classifier_forward.1} parent=1 // pred_check_branch
      %4243 = sbr.rel (0) target = $region65
    $region64: #{classifier_forward.1} parent=1 // pred_region
      %s4245 = ssub.s32 128, 128
      %4246 = vsyncadd [#allocation4], %s4245
      %s4248 = sshll.u32 [#allocation13], 4
      %s4249 = int_to_ptr.vmem [resolvable:$true] %s4248
      %4251 = dma.vmem_to_hbm [thread:$0]  %s4249, 128, %s9, [#allocation4]
    $region65: #{classifier_forward.1} parent=1 // pred_fallthru
      _
    // Predicated region
    $region66: #{classifier_forward.1} parent=1 // pred_check
      _
    $region67: #{classifier_forward.1} parent=1 // pred_check_branch
      %4253 = sbr.rel (0) target = $region69
    $region68: #{classifier_forward.1} parent=1 // pred_region
      %4254 = dma.done [#allocation4], 128
    $region69: #{classifier_forward.1} parent=1 // pred_fallthru
      _
    %4255 = vsyncpa [#allocation3], 1
    %4256 = vsyncpa [#allocation6], 1
    %4257 = vsyncpa [#allocation9], 1
    %4258 = vsyncpa [#allocation12], 1
    %4259 = vsyncpa [#allocation4], 1

</llo_original>
